<compile_context>
chip_gen: v6e
topology: v6e:2x2x1
jax: 0.10.0
libtpu: 0.0.40
codegen_flags: <defaults>
</compile_context>

<pallas_src>
import functools

import jax
import jax.numpy as jnp
from jax.experimental import pallas as pl
from jax.experimental.pallas import tpu as pltpu


# ----------------------------- Pallas kernel ------------------------------ #
def transformer_kernel(
    x_ref,                 # (pt, n, dim)              f32
    mask_ref,              # (gt, gt)                  f32 additive block-diag mask
    g1_ref, be1_ref,       # (depth, 1, dim)           f32
    wqkv_ref,              # (depth, dim, 3*inner)     bf16 (head-major columns)
    wout_ref, bout_ref,    # (depth, inner, dim) bf16, (depth, 1, dim) f32
    g2_ref, be2_ref,       # (depth, 1, dim)           f32
    w1_ref, bb1_ref,       # (depth, dim, mlp) bf16,   (depth, 1, mlp) f32
    w2_ref, bb2_ref,       # (depth, mlp, dim) bf16,   (depth, 1, dim) f32
    o_ref,                 # (pt, n, dim)
    slab_ref,              # VMEM scratch (pt*n, inner) bf16
    *, depth, heads, dim_head, group_tokens,
):
    eps = 1e-5
    inner = heads * dim_head
    scale = dim_head ** -0.5
    pt, n, dim = x_ref.shape
    tokens = pt * n
    ng = tokens // group_tokens

    x = x_ref[...].astype(jnp.float32).reshape(tokens, dim)
    mask_bias = mask_ref[...]                         # 0 on own-patch block, -1e30 off

    # Static unroll over depth (small); stacked weights stay VMEM-resident so
    # the activation never round-trips HBM between layers.
    for l in range(depth):
        # ----------------- PreNorm + Attention + residual ----------------- #
        mu = jnp.mean(x, axis=-1, keepdims=True)
        var = jnp.mean((x - mu) ** 2, axis=-1, keepdims=True)
        xn = (x - mu) * jax.lax.rsqrt(var + eps) * g1_ref[l] + be1_ref[l]

        qkv = jnp.dot(xn.astype(jnp.bfloat16), wqkv_ref[l],
                      preferred_element_type=jnp.float32)   # (tokens, 3*inner)

        for h in range(heads):          # short static loop
            base = h * 3 * dim_head     # head-major layout: [q_h | k_h | v_h]
            qh = qkv[:, base:base + dim_head].astype(jnp.bfloat16)
            kh = qkv[:, base + dim_head:base + 2 * dim_head].astype(jnp.bfloat16)
            vh = qkv[:, base + 2 * dim_head:base + 3 * dim_head].astype(jnp.bfloat16)
            qh = qh.reshape(ng, group_tokens, dim_head)
            kh = kh.reshape(ng, group_tokens, dim_head)
            vh = vh.reshape(ng, group_tokens, dim_head)

            # Grouped attention: one (gt, gt) score matrix per group; masked
            # off-diagonal blocks give exactly per-patch softmax(QK^T/sqrt(d))V.
            dots = jnp.einsum('gqd,gkd->gqk', qh, kh,
                              preferred_element_type=jnp.float32)
            dots = dots * scale + mask_bias
            dots = dots - jnp.max(dots, axis=-1, keepdims=True)
            e = jnp.exp(dots)
            attn = e * pl.reciprocal(jnp.sum(e, axis=-1, keepdims=True),
                                     approx=True)

            oh = jnp.einsum('gqk,gkd->gqd', attn.astype(jnp.bfloat16), vh,
                            preferred_element_type=jnp.float32)
            # Stage this head's output at its lane offset; the output
            # projection below is then ONE K=inner matmul.
            slab_ref[:, h * dim_head:(h + 1) * dim_head] = (
                oh.reshape(tokens, dim_head).astype(jnp.bfloat16))

        # bout added exactly once, outside any per-head accumulation.
        attn_out = jnp.dot(slab_ref[...], wout_ref[l],
                           preferred_element_type=jnp.float32) + bout_ref[l]
        x = x + attn_out

        # ----------------- PreNorm + FeedForward + residual --------------- #
        mu2 = jnp.mean(x, axis=-1, keepdims=True)
        var2 = jnp.mean((x - mu2) ** 2, axis=-1, keepdims=True)
        xn2 = (x - mu2) * jax.lax.rsqrt(var2 + eps) * g2_ref[l] + be2_ref[l]

        h1 = jnp.dot(xn2.astype(jnp.bfloat16), w1_ref[l],
                     preferred_element_type=jnp.float32) + bb1_ref[l]
        h1 = h1 * jax.nn.sigmoid(h1)                      # SiLU (f32, v5e-safe)
        ff = jnp.dot(h1.astype(jnp.bfloat16), w2_ref[l],
                     preferred_element_type=jnp.float32) + bb2_ref[l]
        x = x + ff

    # TODO(synk): dim (=32) < 128 keeps this store lane-masked; a lane-dense
    # (pt, n*dim) out_spec needs an in-kernel relayout - only worth it if a
    # bundle dump shows the store epilogue on the critical path.
    o_ref[...] = x.reshape(pt, n, dim).astype(o_ref.dtype)


# ------------------------------- Wrapper ---------------------------------- #
def transformer_forward(x, params, *, heads, dim_head,
                        tokens_per_step=2048, attn_block_tokens=256):
    """x: (b, p, n, dim) float32; params: depth-stacked Transformer weights."""
    g1, be1, wqkv, wout, bout, g2, be2, w1, bb1, w2, bb2 = params
    depth = g1.shape[0]
    b, p, n, dim = x.shape
    inner = heads * dim_head
    mlp = w1.shape[-1]
    bp = b * p

    # Patches per grid step: big enough to fill the MXU M dimension / amortize
    # per-step pipeline overhead; pt = cdiv(bp, num_tiles) minimizes padding.
    # TODO(synk): on v7x force num_tiles >= 2 so the "parallel" axis shards
    # across both TensorCores (pointless at these demo sizes).
    patch_tile = max(1, tokens_per_step // n)
    num_tiles = pl.cdiv(bp, patch_tile)
    pt = pl.cdiv(bp, num_tiles)
    num_tiles = pl.cdiv(bp, pt)
    bp_pad = num_tiles * pt
    tokens = pt * n

    # Attention group: largest divisor of pt with group token count <= target
    # (128 matches the v5e MXU, 256 matches v6e/v7x).
    g = max(1, min(attn_block_tokens // n, pt))
    while pt % g:
        g -= 1
    group_tokens = g * n

    xf = x.reshape(bp, n, dim)
    if bp_pad != bp:
        xf = jnp.pad(xf, ((0, bp_pad - bp), (0, 0), (0, 0)))

    # Additive block-diagonal mask (0 on own-patch block, -1e30 elsewhere),
    # shared by every layer / head / group; built once on the host side.
    pid = jnp.arange(group_tokens, dtype=jnp.int32) // n
    mask_bias = jnp.where(pid[:, None] == pid[None, :], 0.0, -1e30
                          ).astype(jnp.float32)

    # Head-major column order for wqkv so each head's q|k|v is one contiguous
    # lane range (free wrapper-side permutation).
    wqkv_hm = jnp.transpose(
        wqkv.reshape(depth, dim, 3, heads, dim_head),
        (0, 1, 3, 2, 4)).reshape(depth, dim, 3 * inner)

    # bf16 operands for the MXU; norm scales / biases stay f32.
    weights = (g1, be1,
               wqkv_hm.astype(jnp.bfloat16),
               wout.astype(jnp.bfloat16), bout,
               g2, be2,
               w1.astype(jnp.bfloat16), bb1,
               w2.astype(jnp.bfloat16), bb2)

    kernel = functools.partial(transformer_kernel, depth=depth, heads=heads,
                               dim_head=dim_head, group_tokens=group_tokens)

    x_spec = pl.BlockSpec((pt, n, dim), lambda i: (i, 0, 0))

    def full_spec(a):
        # Grid-invariant full-array block (constant index map => fetched once,
        # stays VMEM-resident across grid steps).
        return pl.BlockSpec(a.shape, lambda i, _nd=a.ndim: (0,) * _nd)

    in_specs = [x_spec, full_spec(mask_bias)] + [full_spec(w) for w in weights]

    total_tokens = bp_pad * n
    flops = depth * (2 * total_tokens * dim * 3 * inner          # qkv projection
                     + 4 * heads * total_tokens * group_tokens * dim_head  # attn
                     + 2 * total_tokens * inner * dim            # out projection
                     + 4 * total_tokens * dim * mlp)             # MLP
    transcendentals = depth * (heads * total_tokens * group_tokens
                               + total_tokens * mlp)
    bytes_accessed = (2 * int(xf.size) * 4 + int(mask_bias.size) * 4
                      + sum(int(w.size) * w.dtype.itemsize for w in weights))

    out = pl.pallas_call(
        kernel,
        out_shape=jax.ShapeDtypeStruct((bp_pad, n, dim), x.dtype),
        grid=(num_tiles,),
        in_specs=in_specs,
        out_specs=x_spec,
        scratch_shapes=[pltpu.VMEM((tokens, inner), jnp.bfloat16)],
        compiler_params=pltpu.CompilerParams(
            dimension_semantics=("parallel",),
            vmem_limit_bytes=48 * 1024 * 1024),
        cost_estimate=pl.CostEstimate(flops=int(flops),
                                      transcendentals=int(transcendentals),
                                      bytes_accessed=int(bytes_accessed)),
    )(xf, mask_bias, *weights)

    return out[:bp].reshape(b, p, n, dim)


# --------------------------- Parameter init -------------------------------- #
def init_params(key, depth, dim, heads, dim_head, mlp_dim):
    inner = heads * dim_head
    ks = jax.random.split(key, 10)

    def rnd(k, shape, scale=0.02):
        w = scale * jax.random.normal(k, shape, jnp.float32)
        # Keep weights bf16-representable so kernel (bf16 operands) and
        # reference (f32) use identical weight values.
        return w.astype(jnp.bfloat16).astype(jnp.float32)

    g1 = 1.0 + rnd(ks[0], (depth, 1, dim), 0.1)
    be1 = rnd(ks[1], (depth, 1, dim), 0.1)
    wqkv = rnd(ks[2], (depth, dim, 3 * inner))
    wout = rnd(ks[3], (depth, inner, dim))
    bout = rnd(ks[4], (depth, 1, dim), 0.1)
    g2 = 1.0 + rnd(ks[5], (depth, 1, dim), 0.1)
    be2 = rnd(ks[6], (depth, 1, dim), 0.1)
    w1 = rnd(ks[7], (depth, dim, mlp_dim))
    bb1 = rnd(ks[8], (depth, 1, mlp_dim), 0.1)
    w2 = rnd(ks[9], (depth, mlp_dim, dim))
    bb2 = jnp.zeros((depth, 1, dim), jnp.float32)
    return (g1, be1, wqkv, wout, bout, g2, be2, w1, bb1, w2, bb2)


# ------------------------ Pure-JAX reference ------------------------------- #
def reference_forward(x, params, *, heads, dim_head):
    eps = 1e-5
    g1, be1, wqkv, wout, bout, g2, be2, w1, bb1, w2, bb2 = params
    depth = g1.shape[0]
    inner = heads * dim_head
    scale = dim_head ** -0.5
    b, p, n, dim = x.shape
    for l in range(depth):
        mu = jnp.mean(x, axis=-1, keepdims=True)
        var = jnp.mean((x - mu) ** 2, axis=-1, keepdims=True)
        xn = (x - mu) / jnp.sqrt(var + eps) * g1[l, 0] + be1[l, 0]
        qkv = xn @ wqkv[l]
        q, k, v = jnp.split(qkv, 3, axis=-1)

        def to_heads(t):
            return jnp.transpose(t.reshape(b, p, n, heads, dim_head),
                                 (0, 1, 3, 2, 4))

        qh, kh, vh = to_heads(q), to_heads(k), to_heads(v)
        dots = jnp.einsum('bphnd,bphmd->bphnm', qh, kh) * scale
        attn = jax.nn.softmax(dots, axis=-1)
        out = jnp.einsum('bphnm,bphmd->bphnd', attn, vh)
        out = jnp.transpose(out, (0, 1, 3, 2, 4)).reshape(b, p, n, inner)
        x = x + (out @ wout[l] + bout[l, 0])

        mu2 = jnp.mean(x, axis=-1, keepdims=True)
        var2 = jnp.mean((x - mu2) ** 2, axis=-1, keepdims=True)
        xn2 = (x - mu2) / jnp.sqrt(var2 + eps) * g2[l, 0] + be2[l, 0]
        h1 = xn2 @ w1[l] + bb1[l, 0]
        h1 = h1 * jax.nn.sigmoid(h1)
        x = x + (h1 @ w2[l] + bb2[l, 0])
    return x


# --------------------------------- Main ------------------------------------ #
if __name__ == "__main__":
    # Small, module-consistent shapes: x is (batch, patches, tokens, channels).
    b, p, n = 2, 4, 8
    dim, depth, heads, dim_head, mlp_dim = 32, 2, 2, 16, 64

    key = jax.random.PRNGKey(0)
    kx, kp = jax.random.split(key)
    x = jax.random.normal(kx, (b, p, n, dim), jnp.float32)
    params = init_params(kp, depth, dim, heads, dim_head, mlp_dim)

    out = transformer_forward(x, params, heads=heads, dim_head=dim_head)
    out = jax.block_until_ready(out)

    ref = reference_forward(x, params, heads=heads, dim_head=dim_head)
    assert out.shape == (b, p, n, dim)
    assert bool(jnp.all(jnp.isfinite(out))), "non-finite output"
    # bf16 MXU operands (f32 accumulation / residuals) => slightly loosened tol.
    assert jnp.allclose(out, ref, atol=2e-2, rtol=2e-2), "mismatch vs reference"

    print("KERNEL_OK")
</pallas_src>

<mosaic_0001>
module attributes {stable_mosaic.version = 11 : i64} {
  func.func @transformer_kernel(%arg0: i32, %arg1: memref<8x8x32xf32, #tpu.memory_space<vmem>>, %arg2: memref<64x64xf32, #tpu.memory_space<vmem>>, %arg3: memref<2x1x32xf32, #tpu.memory_space<vmem>>, %arg4: memref<2x1x32xf32, #tpu.memory_space<vmem>>, %arg5: memref<2x32x96xbf16, #tpu.memory_space<vmem>>, %arg6: memref<2x32x32xbf16, #tpu.memory_space<vmem>>, %arg7: memref<2x1x32xf32, #tpu.memory_space<vmem>>, %arg8: memref<2x1x32xf32, #tpu.memory_space<vmem>>, %arg9: memref<2x1x32xf32, #tpu.memory_space<vmem>>, %arg10: memref<2x32x64xbf16, #tpu.memory_space<vmem>>, %arg11: memref<2x1x64xf32, #tpu.memory_space<vmem>>, %arg12: memref<2x64x32xbf16, #tpu.memory_space<vmem>>, %arg13: memref<2x1x32xf32, #tpu.memory_space<vmem>>, %arg14: memref<8x8x32xf32, #tpu.memory_space<vmem>>, %arg15: memref<64x32xbf16, #tpu.memory_space<vmem>>) attributes {dimension_semantics = [#tpu.dimension_semantics<parallel>], iteration_bounds = array<i64: 1>, scalar_prefetch = 0 : i64, scratch_operands = 1 : i64, tpu.core_type = #tpu.core_type<tc>, window_params = [{transform_indices = @transform_0, window_bounds = array<i64: 8, 8, 32>}, {pipeline_mode = #tpu.pipeline_mode<synchronous>, transform_indices = @transform_1, window_bounds = array<i64: 64, 64>}, {pipeline_mode = #tpu.pipeline_mode<synchronous>, transform_indices = @transform_2, window_bounds = array<i64: 2, 1, 32>}, {pipeline_mode = #tpu.pipeline_mode<synchronous>, transform_indices = @transform_3, window_bounds = array<i64: 2, 1, 32>}, {pipeline_mode = #tpu.pipeline_mode<synchronous>, transform_indices = @transform_4, window_bounds = array<i64: 2, 32, 96>}, {pipeline_mode = #tpu.pipeline_mode<synchronous>, transform_indices = @transform_5, window_bounds = array<i64: 2, 32, 32>}, {pipeline_mode = #tpu.pipeline_mode<synchronous>, transform_indices = @transform_6, window_bounds = array<i64: 2, 1, 32>}, {pipeline_mode = #tpu.pipeline_mode<synchronous>, transform_indices = @transform_7, window_bounds = array<i64: 2, 1, 32>}, {pipeline_mode = #tpu.pipeline_mode<synchronous>, transform_indices = @transform_8, window_bounds = array<i64: 2, 1, 32>}, {pipeline_mode = #tpu.pipeline_mode<synchronous>, transform_indices = @transform_9, window_bounds = array<i64: 2, 32, 64>}, {pipeline_mode = #tpu.pipeline_mode<synchronous>, transform_indices = @transform_10, window_bounds = array<i64: 2, 1, 64>}, {pipeline_mode = #tpu.pipeline_mode<synchronous>, transform_indices = @transform_11, window_bounds = array<i64: 2, 64, 32>}, {pipeline_mode = #tpu.pipeline_mode<synchronous>, transform_indices = @transform_12, window_bounds = array<i64: 2, 1, 32>}, {transform_indices = @transform_13, window_bounds = array<i64: 8, 8, 32>}]} {
    %c0 = arith.constant 0 : index
    %c0_0 = arith.constant 0 : index
    %c0_1 = arith.constant 0 : index
    %0 = vector.load %arg1[%c0, %c0_0, %c0_1] : memref<8x8x32xf32, #tpu.memory_space<vmem>>, vector<8x8x32xf32>
    %1 = vector.shape_cast %0 : vector<8x8x32xf32> to vector<64x32xf32>
    %c0_2 = arith.constant 0 : index
    %c0_3 = arith.constant 0 : index
    %2 = vector.load %arg2[%c0_2, %c0_3] : memref<64x64xf32, #tpu.memory_space<vmem>>, vector<64x64xf32>
    %cst = arith.constant dense<0.000000e+00> : vector<64xf32>
    %3 = vector.multi_reduction <add>, %1, %cst [1] : vector<64x32xf32> to vector<64xf32>
    %4 = vector.shape_cast %3 : vector<64xf32> to vector<64x1xf32>
    %cst_4 = arith.constant 3.200000e+01 : f32
    %5 = vector.broadcast %cst_4 : f32 to vector<64x1xf32>
    %6 = arith.divf %4, %5 : vector<64x1xf32>
    %7 = vector.broadcast %6 : vector<64x1xf32> to vector<64x32xf32>
    %8 = arith.subf %1, %7 : vector<64x32xf32>
    %9 = arith.mulf %8, %8 : vector<64x32xf32>
    %cst_5 = arith.constant dense<0.000000e+00> : vector<64xf32>
    %10 = vector.multi_reduction <add>, %9, %cst_5 [1] : vector<64x32xf32> to vector<64xf32>
    %11 = vector.shape_cast %10 : vector<64xf32> to vector<64x1xf32>
    %cst_6 = arith.constant 3.200000e+01 : f32
    %12 = vector.broadcast %cst_6 : f32 to vector<64x1xf32>
    %13 = arith.divf %11, %12 : vector<64x1xf32>
    %14 = vector.broadcast %6 : vector<64x1xf32> to vector<64x32xf32>
    %15 = arith.subf %1, %14 : vector<64x32xf32>
    %cst_7 = arith.constant 9.99999974E-6 : f32
    %16 = vector.broadcast %cst_7 : f32 to vector<64x1xf32>
    %17 = arith.addf %13, %16 : vector<64x1xf32>
    %18 = math.rsqrt %17 : vector<64x1xf32>
    %19 = vector.broadcast %18 : vector<64x1xf32> to vector<64x32xf32>
    %20 = arith.mulf %15, %19 : vector<64x32xf32>
    %c0_8 = arith.constant 0 : index
    %c0_9 = arith.constant 0 : index
    %c0_10 = arith.constant 0 : index
    %21 = vector.load %arg3[%c0_8, %c0_9, %c0_10] : memref<2x1x32xf32, #tpu.memory_space<vmem>>, vector<1x1x32xf32>
    %22 = vector.shape_cast %21 : vector<1x1x32xf32> to vector<1x32xf32>
    %23 = vector.broadcast %22 : vector<1x32xf32> to vector<64x32xf32>
    %24 = arith.mulf %20, %23 : vector<64x32xf32>
    %c0_11 = arith.constant 0 : index
    %c0_12 = arith.constant 0 : index
    %c0_13 = arith.constant 0 : index
    %25 = vector.load %arg4[%c0_11, %c0_12, %c0_13] : memref<2x1x32xf32, #tpu.memory_space<vmem>>, vector<1x1x32xf32>
    %26 = vector.shape_cast %25 : vector<1x1x32xf32> to vector<1x32xf32>
    %27 = vector.broadcast %26 : vector<1x32xf32> to vector<64x32xf32>
    %28 = arith.addf %24, %27 : vector<64x32xf32>
    %29 = arith.truncf %28 : vector<64x32xf32> to vector<64x32xbf16>
    %c0_14 = arith.constant 0 : index
    %c0_15 = arith.constant 0 : index
    %c0_16 = arith.constant 0 : index
    %30 = vector.load %arg5[%c0_14, %c0_15, %c0_16] : memref<2x32x96xbf16, #tpu.memory_space<vmem>>, vector<1x32x96xbf16>
    %31 = vector.shape_cast %30 : vector<1x32x96xbf16> to vector<32x96xbf16>
    %cst_17 = arith.constant dense<0.000000e+00> : vector<64x96xf32>
    %32 = tpu.matmul %29, %31, %cst_17 {dimension_numbers = #tpu.dot_dimension_numbers<[1], [0], [0], [1], [0, 0, 1, 1], [], []>} : vector<64x32xbf16>, vector<32x96xbf16>, vector<64x96xf32> -> vector<64x96xf32>
    %33 = vector.extract_strided_slice %32 {offsets = [0, 0], sizes = [64, 16], strides = [1, 1]} : vector<64x96xf32> to vector<64x16xf32>
    %34 = arith.truncf %33 : vector<64x16xf32> to vector<64x16xbf16>
    %35 = vector.extract_strided_slice %32 {offsets = [0, 16], sizes = [64, 16], strides = [1, 1]} : vector<64x96xf32> to vector<64x16xf32>
    %36 = arith.truncf %35 : vector<64x16xf32> to vector<64x16xbf16>
    %37 = vector.extract_strided_slice %32 {offsets = [0, 32], sizes = [64, 16], strides = [1, 1]} : vector<64x96xf32> to vector<64x16xf32>
    %38 = arith.truncf %37 : vector<64x16xf32> to vector<64x16xbf16>
    %39 = vector.shape_cast %34 : vector<64x16xbf16> to vector<1x64x16xbf16>
    %40 = vector.shape_cast %36 : vector<64x16xbf16> to vector<1x64x16xbf16>
    %41 = vector.shape_cast %38 : vector<64x16xbf16> to vector<1x64x16xbf16>
    "tpu.trace_start"() <{level = 10 : i32, message = "gqd,gkd->gqk"}> : () -> ()
    %cst_18 = arith.constant dense<0.000000e+00> : vector<1x64x64xf32>
    %42 = tpu.matmul %39, %40, %cst_18 {dimension_numbers = #tpu.dot_dimension_numbers<[2], [2], [1], [1], [0, 0, 0, 1, 1, 1], [0], [0]>} : vector<1x64x16xbf16>, vector<1x64x16xbf16>, vector<1x64x64xf32> -> vector<1x64x64xf32>
    "tpu.trace_stop"() : () -> ()
    %cst_19 = arith.constant 2.500000e-01 : f32
    %43 = vector.broadcast %cst_19 : f32 to vector<1x64x64xf32>
    %44 = arith.mulf %42, %43 : vector<1x64x64xf32>
    %45 = vector.shape_cast %2 : vector<64x64xf32> to vector<1x64x64xf32>
    %46 = arith.addf %44, %45 : vector<1x64x64xf32>
    %cst_20 = arith.constant dense<0xFF800000> : vector<1x64xf32>
    %47 = vector.multi_reduction <maximumf>, %46, %cst_20 [2] : vector<1x64x64xf32> to vector<1x64xf32>
    %48 = vector.shape_cast %47 : vector<1x64xf32> to vector<1x64x1xf32>
    %49 = vector.broadcast %48 : vector<1x64x1xf32> to vector<1x64x64xf32>
    %50 = arith.subf %46, %49 : vector<1x64x64xf32>
    %51 = math.exp %50 : vector<1x64x64xf32>
    %cst_21 = arith.constant dense<0.000000e+00> : vector<1x64xf32>
    %52 = vector.multi_reduction <add>, %51, %cst_21 [2] : vector<1x64x64xf32> to vector<1x64xf32>
    %53 = vector.shape_cast %52 : vector<1x64xf32> to vector<1x64x1xf32>
    %54 = tpu.reciprocal %53 {approx = true} : vector<1x64x1xf32> -> vector<1x64x1xf32>
    %55 = vector.broadcast %54 : vector<1x64x1xf32> to vector<1x64x64xf32>
    %56 = arith.mulf %51, %55 : vector<1x64x64xf32>
    %57 = arith.truncf %56 : vector<1x64x64xf32> to vector<1x64x64xbf16>
    "tpu.trace_start"() <{level = 10 : i32, message = "gqk,gkd->gqd"}> : () -> ()
    %cst_22 = arith.constant dense<0.000000e+00> : vector<1x64x16xf32>
    %58 = tpu.matmul %57, %41, %cst_22 {dimension_numbers = #tpu.dot_dimension_numbers<[2], [1], [1], [2], [0, 0, 0, 1, 1, 2], [0], [0]>} : vector<1x64x64xbf16>, vector<1x64x16xbf16>, vector<1x64x16xf32> -> vector<1x64x16xf32>
    "tpu.trace_stop"() : () -> ()
    %59 = vector.shape_cast %58 : vector<1x64x16xf32> to vector<64x16xf32>
    %60 = arith.truncf %59 : vector<64x16xf32> to vector<64x16xbf16>
    %c0_23 = arith.constant 0 : index
    %c0_24 = arith.constant 0 : index
    %61 = vector.load %arg15[%c0_23, %c0_24] : memref<64x32xbf16, #tpu.memory_space<vmem>>, vector<64x16xbf16>
    tpu.vector_store %arg15[%c0_23, %c0_24], %60 {strides = array<i32>} : memref<64x32xbf16, #tpu.memory_space<vmem>>, vector<64x16xbf16>,
    %62 = vector.extract_strided_slice %32 {offsets = [0, 48], sizes = [64, 16], strides = [1, 1]} : vector<64x96xf32> to vector<64x16xf32>
    %63 = arith.truncf %62 : vector<64x16xf32> to vector<64x16xbf16>
    %64 = vector.extract_strided_slice %32 {offsets = [0, 64], sizes = [64, 16], strides = [1, 1]} : vector<64x96xf32> to vector<64x16xf32>
    %65 = arith.truncf %64 : vector<64x16xf32> to vector<64x16xbf16>
    %66 = vector.extract_strided_slice %32 {offsets = [0, 80], sizes = [64, 16], strides = [1, 1]} : vector<64x96xf32> to vector<64x16xf32>
    %67 = arith.truncf %66 : vector<64x16xf32> to vector<64x16xbf16>
    %68 = vector.shape_cast %63 : vector<64x16xbf16> to vector<1x64x16xbf16>
    %69 = vector.shape_cast %65 : vector<64x16xbf16> to vector<1x64x16xbf16>
    %70 = vector.shape_cast %67 : vector<64x16xbf16> to vector<1x64x16xbf16>
    "tpu.trace_start"() <{level = 10 : i32, message = "gqd,gkd->gqk"}> : () -> ()
    %cst_25 = arith.constant dense<0.000000e+00> : vector<1x64x64xf32>
    %71 = tpu.matmul %68, %69, %cst_25 {dimension_numbers = #tpu.dot_dimension_numbers<[2], [2], [1], [1], [0, 0, 0, 1, 1, 1], [0], [0]>} : vector<1x64x16xbf16>, vector<1x64x16xbf16>, vector<1x64x64xf32> -> vector<1x64x64xf32>
    "tpu.trace_stop"() : () -> ()
    %cst_26 = arith.constant 2.500000e-01 : f32
    %72 = vector.broadcast %cst_26 : f32 to vector<1x64x64xf32>
    %73 = arith.mulf %71, %72 : vector<1x64x64xf32>
    %74 = vector.shape_cast %2 : vector<64x64xf32> to vector<1x64x64xf32>
    %75 = arith.addf %73, %74 : vector<1x64x64xf32>
    %cst_27 = arith.constant dense<0xFF800000> : vector<1x64xf32>
    %76 = vector.multi_reduction <maximumf>, %75, %cst_27 [2] : vector<1x64x64xf32> to vector<1x64xf32>
    %77 = vector.shape_cast %76 : vector<1x64xf32> to vector<1x64x1xf32>
    %78 = vector.broadcast %77 : vector<1x64x1xf32> to vector<1x64x64xf32>
    %79 = arith.subf %75, %78 : vector<1x64x64xf32>
    %80 = math.exp %79 : vector<1x64x64xf32>
    %cst_28 = arith.constant dense<0.000000e+00> : vector<1x64xf32>
    %81 = vector.multi_reduction <add>, %80, %cst_28 [2] : vector<1x64x64xf32> to vector<1x64xf32>
    %82 = vector.shape_cast %81 : vector<1x64xf32> to vector<1x64x1xf32>
    %83 = tpu.reciprocal %82 {approx = true} : vector<1x64x1xf32> -> vector<1x64x1xf32>
    %84 = vector.broadcast %83 : vector<1x64x1xf32> to vector<1x64x64xf32>
    %85 = arith.mulf %80, %84 : vector<1x64x64xf32>
    %86 = arith.truncf %85 : vector<1x64x64xf32> to vector<1x64x64xbf16>
    "tpu.trace_start"() <{level = 10 : i32, message = "gqk,gkd->gqd"}> : () -> ()
    %cst_29 = arith.constant dense<0.000000e+00> : vector<1x64x16xf32>
    %87 = tpu.matmul %86, %70, %cst_29 {dimension_numbers = #tpu.dot_dimension_numbers<[2], [1], [1], [2], [0, 0, 0, 1, 1, 2], [0], [0]>} : vector<1x64x64xbf16>, vector<1x64x16xbf16>, vector<1x64x16xf32> -> vector<1x64x16xf32>
    "tpu.trace_stop"() : () -> ()
    %88 = vector.shape_cast %87 : vector<1x64x16xf32> to vector<64x16xf32>
    %89 = arith.truncf %88 : vector<64x16xf32> to vector<64x16xbf16>
    %c0_30 = arith.constant 0 : index
    %c16 = arith.constant 16 : index
    %90 = vector.load %arg15[%c0_30, %c16] : memref<64x32xbf16, #tpu.memory_space<vmem>>, vector<64x16xbf16>
    tpu.vector_store %arg15[%c0_30, %c16], %89 {strides = array<i32>} : memref<64x32xbf16, #tpu.memory_space<vmem>>, vector<64x16xbf16>,
    %c0_31 = arith.constant 0 : index
    %c0_32 = arith.constant 0 : index
    %91 = vector.load %arg15[%c0_31, %c0_32] : memref<64x32xbf16, #tpu.memory_space<vmem>>, vector<64x32xbf16>
    %c0_33 = arith.constant 0 : index
    %c0_34 = arith.constant 0 : index
    %c0_35 = arith.constant 0 : index
    %92 = vector.load %arg6[%c0_33, %c0_34, %c0_35] : memref<2x32x32xbf16, #tpu.memory_space<vmem>>, vector<1x32x32xbf16>
    %93 = vector.shape_cast %92 : vector<1x32x32xbf16> to vector<32x32xbf16>
    %cst_36 = arith.constant dense<0.000000e+00> : vector<64x32xf32>
    %94 = tpu.matmul %91, %93, %cst_36 {dimension_numbers = #tpu.dot_dimension_numbers<[1], [0], [0], [1], [0, 0, 1, 1], [], []>} : vector<64x32xbf16>, vector<32x32xbf16>, vector<64x32xf32> -> vector<64x32xf32>
    %c0_37 = arith.constant 0 : index
    %c0_38 = arith.constant 0 : index
    %c0_39 = arith.constant 0 : index
    %95 = vector.load %arg7[%c0_37, %c0_38, %c0_39] : memref<2x1x32xf32, #tpu.memory_space<vmem>>, vector<1x1x32xf32>
    %96 = vector.shape_cast %95 : vector<1x1x32xf32> to vector<1x32xf32>
    %97 = vector.broadcast %96 : vector<1x32xf32> to vector<64x32xf32>
    %98 = arith.addf %94, %97 : vector<64x32xf32>
    %99 = arith.addf %1, %98 : vector<64x32xf32>
    %cst_40 = arith.constant dense<0.000000e+00> : vector<64xf32>
    %100 = vector.multi_reduction <add>, %99, %cst_40 [1] : vector<64x32xf32> to vector<64xf32>
    %101 = vector.shape_cast %100 : vector<64xf32> to vector<64x1xf32>
    %cst_41 = arith.constant 3.200000e+01 : f32
    %102 = vector.broadcast %cst_41 : f32 to vector<64x1xf32>
    %103 = arith.divf %101, %102 : vector<64x1xf32>
    %104 = vector.broadcast %103 : vector<64x1xf32> to vector<64x32xf32>
    %105 = arith.subf %99, %104 : vector<64x32xf32>
    %106 = arith.mulf %105, %105 : vector<64x32xf32>
    %cst_42 = arith.constant dense<0.000000e+00> : vector<64xf32>
    %107 = vector.multi_reduction <add>, %106, %cst_42 [1] : vector<64x32xf32> to vector<64xf32>
    %108 = vector.shape_cast %107 : vector<64xf32> to vector<64x1xf32>
    %cst_43 = arith.constant 3.200000e+01 : f32
    %109 = vector.broadcast %cst_43 : f32 to vector<64x1xf32>
    %110 = arith.divf %108, %109 : vector<64x1xf32>
    %111 = vector.broadcast %103 : vector<64x1xf32> to vector<64x32xf32>
    %112 = arith.subf %99, %111 : vector<64x32xf32>
    %cst_44 = arith.constant 9.99999974E-6 : f32
    %113 = vector.broadcast %cst_44 : f32 to vector<64x1xf32>
    %114 = arith.addf %110, %113 : vector<64x1xf32>
    %115 = math.rsqrt %114 : vector<64x1xf32>
    %116 = vector.broadcast %115 : vector<64x1xf32> to vector<64x32xf32>
    %117 = arith.mulf %112, %116 : vector<64x32xf32>
    %c0_45 = arith.constant 0 : index
    %c0_46 = arith.constant 0 : index
    %c0_47 = arith.constant 0 : index
    %118 = vector.load %arg8[%c0_45, %c0_46, %c0_47] : memref<2x1x32xf32, #tpu.memory_space<vmem>>, vector<1x1x32xf32>
    %119 = vector.shape_cast %118 : vector<1x1x32xf32> to vector<1x32xf32>
    %120 = vector.broadcast %119 : vector<1x32xf32> to vector<64x32xf32>
    %121 = arith.mulf %117, %120 : vector<64x32xf32>
    %c0_48 = arith.constant 0 : index
    %c0_49 = arith.constant 0 : index
    %c0_50 = arith.constant 0 : index
    %122 = vector.load %arg9[%c0_48, %c0_49, %c0_50] : memref<2x1x32xf32, #tpu.memory_space<vmem>>, vector<1x1x32xf32>
    %123 = vector.shape_cast %122 : vector<1x1x32xf32> to vector<1x32xf32>
    %124 = vector.broadcast %123 : vector<1x32xf32> to vector<64x32xf32>
    %125 = arith.addf %121, %124 : vector<64x32xf32>
    %126 = arith.truncf %125 : vector<64x32xf32> to vector<64x32xbf16>
    %c0_51 = arith.constant 0 : index
    %c0_52 = arith.constant 0 : index
    %c0_53 = arith.constant 0 : index
    %127 = vector.load %arg10[%c0_51, %c0_52, %c0_53] : memref<2x32x64xbf16, #tpu.memory_space<vmem>>, vector<1x32x64xbf16>
    %128 = vector.shape_cast %127 : vector<1x32x64xbf16> to vector<32x64xbf16>
    %cst_54 = arith.constant dense<0.000000e+00> : vector<64x64xf32>
    %129 = tpu.matmul %126, %128, %cst_54 {dimension_numbers = #tpu.dot_dimension_numbers<[1], [0], [0], [1], [0, 0, 1, 1], [], []>} : vector<64x32xbf16>, vector<32x64xbf16>, vector<64x64xf32> -> vector<64x64xf32>
    %c0_55 = arith.constant 0 : index
    %c0_56 = arith.constant 0 : index
    %c0_57 = arith.constant 0 : index
    %130 = vector.load %arg11[%c0_55, %c0_56, %c0_57] : memref<2x1x64xf32, #tpu.memory_space<vmem>>, vector<1x1x64xf32>
    %131 = vector.shape_cast %130 : vector<1x1x64xf32> to vector<1x64xf32>
    %132 = vector.broadcast %131 : vector<1x64xf32> to vector<64x64xf32>
    %133 = arith.addf %129, %132 : vector<64x64xf32>
    %134 = arith.negf %133 : vector<64x64xf32>
    %135 = math.exp %134 : vector<64x64xf32>
    %cst_58 = arith.constant 1.000000e+00 : f32
    %136 = vector.broadcast %cst_58 : f32 to vector<64x64xf32>
    %137 = arith.addf %136, %135 : vector<64x64xf32>
    %138 = arith.divf %136, %137 : vector<64x64xf32>
    %139 = arith.mulf %133, %138 : vector<64x64xf32>
    %140 = arith.truncf %139 : vector<64x64xf32> to vector<64x64xbf16>
    %c0_59 = arith.constant 0 : index
    %c0_60 = arith.constant 0 : index
    %c0_61 = arith.constant 0 : index
    %141 = vector.load %arg12[%c0_59, %c0_60, %c0_61] : memref<2x64x32xbf16, #tpu.memory_space<vmem>>, vector<1x64x32xbf16>
    %142 = vector.shape_cast %141 : vector<1x64x32xbf16> to vector<64x32xbf16>
    %cst_62 = arith.constant dense<0.000000e+00> : vector<64x32xf32>
    %143 = tpu.matmul %140, %142, %cst_62 {dimension_numbers = #tpu.dot_dimension_numbers<[1], [0], [0], [1], [0, 0, 1, 1], [], []>} : vector<64x64xbf16>, vector<64x32xbf16>, vector<64x32xf32> -> vector<64x32xf32>
    %c0_63 = arith.constant 0 : index
    %c0_64 = arith.constant 0 : index
    %c0_65 = arith.constant 0 : index
    %144 = vector.load %arg13[%c0_63, %c0_64, %c0_65] : memref<2x1x32xf32, #tpu.memory_space<vmem>>, vector<1x1x32xf32>
    %145 = vector.shape_cast %144 : vector<1x1x32xf32> to vector<1x32xf32>
    %146 = vector.broadcast %145 : vector<1x32xf32> to vector<64x32xf32>
    %147 = arith.addf %143, %146 : vector<64x32xf32>
    %148 = arith.addf %99, %147 : vector<64x32xf32>
    %cst_66 = arith.constant dense<0.000000e+00> : vector<64xf32>
    %149 = vector.multi_reduction <add>, %148, %cst_66 [1] : vector<64x32xf32> to vector<64xf32>
    %150 = vector.shape_cast %149 : vector<64xf32> to vector<64x1xf32>
    %cst_67 = arith.constant 3.200000e+01 : f32
    %151 = vector.broadcast %cst_67 : f32 to vector<64x1xf32>
    %152 = arith.divf %150, %151 : vector<64x1xf32>
    %153 = vector.broadcast %152 : vector<64x1xf32> to vector<64x32xf32>
    %154 = arith.subf %148, %153 : vector<64x32xf32>
    %155 = arith.mulf %154, %154 : vector<64x32xf32>
    %cst_68 = arith.constant dense<0.000000e+00> : vector<64xf32>
    %156 = vector.multi_reduction <add>, %155, %cst_68 [1] : vector<64x32xf32> to vector<64xf32>
    %157 = vector.shape_cast %156 : vector<64xf32> to vector<64x1xf32>
    %cst_69 = arith.constant 3.200000e+01 : f32
    %158 = vector.broadcast %cst_69 : f32 to vector<64x1xf32>
    %159 = arith.divf %157, %158 : vector<64x1xf32>
    %160 = vector.broadcast %152 : vector<64x1xf32> to vector<64x32xf32>
    %161 = arith.subf %148, %160 : vector<64x32xf32>
    %cst_70 = arith.constant 9.99999974E-6 : f32
    %162 = vector.broadcast %cst_70 : f32 to vector<64x1xf32>
    %163 = arith.addf %159, %162 : vector<64x1xf32>
    %164 = math.rsqrt %163 : vector<64x1xf32>
    %165 = vector.broadcast %164 : vector<64x1xf32> to vector<64x32xf32>
    %166 = arith.mulf %161, %165 : vector<64x32xf32>
    %c1 = arith.constant 1 : index
    %c0_71 = arith.constant 0 : index
    %c0_72 = arith.constant 0 : index
    %167 = vector.load %arg3[%c1, %c0_71, %c0_72] : memref<2x1x32xf32, #tpu.memory_space<vmem>>, vector<1x1x32xf32>
    %168 = vector.shape_cast %167 : vector<1x1x32xf32> to vector<1x32xf32>
    %169 = vector.broadcast %168 : vector<1x32xf32> to vector<64x32xf32>
    %170 = arith.mulf %166, %169 : vector<64x32xf32>
    %c1_73 = arith.constant 1 : index
    %c0_74 = arith.constant 0 : index
    %c0_75 = arith.constant 0 : index
    %171 = vector.load %arg4[%c1_73, %c0_74, %c0_75] : memref<2x1x32xf32, #tpu.memory_space<vmem>>, vector<1x1x32xf32>
    %172 = vector.shape_cast %171 : vector<1x1x32xf32> to vector<1x32xf32>
    %173 = vector.broadcast %172 : vector<1x32xf32> to vector<64x32xf32>
    %174 = arith.addf %170, %173 : vector<64x32xf32>
    %175 = arith.truncf %174 : vector<64x32xf32> to vector<64x32xbf16>
    %c1_76 = arith.constant 1 : index
    %c0_77 = arith.constant 0 : index
    %c0_78 = arith.constant 0 : index
    %176 = vector.load %arg5[%c1_76, %c0_77, %c0_78] : memref<2x32x96xbf16, #tpu.memory_space<vmem>>, vector<1x32x96xbf16>
    %177 = vector.shape_cast %176 : vector<1x32x96xbf16> to vector<32x96xbf16>
    %cst_79 = arith.constant dense<0.000000e+00> : vector<64x96xf32>
    %178 = tpu.matmul %175, %177, %cst_79 {dimension_numbers = #tpu.dot_dimension_numbers<[1], [0], [0], [1], [0, 0, 1, 1], [], []>} : vector<64x32xbf16>, vector<32x96xbf16>, vector<64x96xf32> -> vector<64x96xf32>
    %179 = vector.extract_strided_slice %178 {offsets = [0, 0], sizes = [64, 16], strides = [1, 1]} : vector<64x96xf32> to vector<64x16xf32>
    %180 = arith.truncf %179 : vector<64x16xf32> to vector<64x16xbf16>
    %181 = vector.extract_strided_slice %178 {offsets = [0, 16], sizes = [64, 16], strides = [1, 1]} : vector<64x96xf32> to vector<64x16xf32>
    %182 = arith.truncf %181 : vector<64x16xf32> to vector<64x16xbf16>
    %183 = vector.extract_strided_slice %178 {offsets = [0, 32], sizes = [64, 16], strides = [1, 1]} : vector<64x96xf32> to vector<64x16xf32>
    %184 = arith.truncf %183 : vector<64x16xf32> to vector<64x16xbf16>
    %185 = vector.shape_cast %180 : vector<64x16xbf16> to vector<1x64x16xbf16>
    %186 = vector.shape_cast %182 : vector<64x16xbf16> to vector<1x64x16xbf16>
    %187 = vector.shape_cast %184 : vector<64x16xbf16> to vector<1x64x16xbf16>
    "tpu.trace_start"() <{level = 10 : i32, message = "gqd,gkd->gqk"}> : () -> ()
    %cst_80 = arith.constant dense<0.000000e+00> : vector<1x64x64xf32>
    %188 = tpu.matmul %185, %186, %cst_80 {dimension_numbers = #tpu.dot_dimension_numbers<[2], [2], [1], [1], [0, 0, 0, 1, 1, 1], [0], [0]>} : vector<1x64x16xbf16>, vector<1x64x16xbf16>, vector<1x64x64xf32> -> vector<1x64x64xf32>
    "tpu.trace_stop"() : () -> ()
    %cst_81 = arith.constant 2.500000e-01 : f32
    %189 = vector.broadcast %cst_81 : f32 to vector<1x64x64xf32>
    %190 = arith.mulf %188, %189 : vector<1x64x64xf32>
    %191 = vector.shape_cast %2 : vector<64x64xf32> to vector<1x64x64xf32>
    %192 = arith.addf %190, %191 : vector<1x64x64xf32>
    %cst_82 = arith.constant dense<0xFF800000> : vector<1x64xf32>
    %193 = vector.multi_reduction <maximumf>, %192, %cst_82 [2] : vector<1x64x64xf32> to vector<1x64xf32>
    %194 = vector.shape_cast %193 : vector<1x64xf32> to vector<1x64x1xf32>
    %195 = vector.broadcast %194 : vector<1x64x1xf32> to vector<1x64x64xf32>
    %196 = arith.subf %192, %195 : vector<1x64x64xf32>
    %197 = math.exp %196 : vector<1x64x64xf32>
    %cst_83 = arith.constant dense<0.000000e+00> : vector<1x64xf32>
    %198 = vector.multi_reduction <add>, %197, %cst_83 [2] : vector<1x64x64xf32> to vector<1x64xf32>
    %199 = vector.shape_cast %198 : vector<1x64xf32> to vector<1x64x1xf32>
    %200 = tpu.reciprocal %199 {approx = true} : vector<1x64x1xf32> -> vector<1x64x1xf32>
    %201 = vector.broadcast %200 : vector<1x64x1xf32> to vector<1x64x64xf32>
    %202 = arith.mulf %197, %201 : vector<1x64x64xf32>
    %203 = arith.truncf %202 : vector<1x64x64xf32> to vector<1x64x64xbf16>
    "tpu.trace_start"() <{level = 10 : i32, message = "gqk,gkd->gqd"}> : () -> ()
    %cst_84 = arith.constant dense<0.000000e+00> : vector<1x64x16xf32>
    %204 = tpu.matmul %203, %187, %cst_84 {dimension_numbers = #tpu.dot_dimension_numbers<[2], [1], [1], [2], [0, 0, 0, 1, 1, 2], [0], [0]>} : vector<1x64x64xbf16>, vector<1x64x16xbf16>, vector<1x64x16xf32> -> vector<1x64x16xf32>
    "tpu.trace_stop"() : () -> ()
    %205 = vector.shape_cast %204 : vector<1x64x16xf32> to vector<64x16xf32>
    %206 = arith.truncf %205 : vector<64x16xf32> to vector<64x16xbf16>
    %c0_85 = arith.constant 0 : index
    %c0_86 = arith.constant 0 : index
    %207 = vector.load %arg15[%c0_85, %c0_86] : memref<64x32xbf16, #tpu.memory_space<vmem>>, vector<64x16xbf16>
    tpu.vector_store %arg15[%c0_85, %c0_86], %206 {strides = array<i32>} : memref<64x32xbf16, #tpu.memory_space<vmem>>, vector<64x16xbf16>,
    %208 = vector.extract_strided_slice %178 {offsets = [0, 48], sizes = [64, 16], strides = [1, 1]} : vector<64x96xf32> to vector<64x16xf32>
    %209 = arith.truncf %208 : vector<64x16xf32> to vector<64x16xbf16>
    %210 = vector.extract_strided_slice %178 {offsets = [0, 64], sizes = [64, 16], strides = [1, 1]} : vector<64x96xf32> to vector<64x16xf32>
    %211 = arith.truncf %210 : vector<64x16xf32> to vector<64x16xbf16>
    %212 = vector.extract_strided_slice %178 {offsets = [0, 80], sizes = [64, 16], strides = [1, 1]} : vector<64x96xf32> to vector<64x16xf32>
    %213 = arith.truncf %212 : vector<64x16xf32> to vector<64x16xbf16>
    %214 = vector.shape_cast %209 : vector<64x16xbf16> to vector<1x64x16xbf16>
    %215 = vector.shape_cast %211 : vector<64x16xbf16> to vector<1x64x16xbf16>
    %216 = vector.shape_cast %213 : vector<64x16xbf16> to vector<1x64x16xbf16>
    "tpu.trace_start"() <{level = 10 : i32, message = "gqd,gkd->gqk"}> : () -> ()
    %cst_87 = arith.constant dense<0.000000e+00> : vector<1x64x64xf32>
    %217 = tpu.matmul %214, %215, %cst_87 {dimension_numbers = #tpu.dot_dimension_numbers<[2], [2], [1], [1], [0, 0, 0, 1, 1, 1], [0], [0]>} : vector<1x64x16xbf16>, vector<1x64x16xbf16>, vector<1x64x64xf32> -> vector<1x64x64xf32>
    "tpu.trace_stop"() : () -> ()
    %cst_88 = arith.constant 2.500000e-01 : f32
    %218 = vector.broadcast %cst_88 : f32 to vector<1x64x64xf32>
    %219 = arith.mulf %217, %218 : vector<1x64x64xf32>
    %220 = vector.shape_cast %2 : vector<64x64xf32> to vector<1x64x64xf32>
    %221 = arith.addf %219, %220 : vector<1x64x64xf32>
    %cst_89 = arith.constant dense<0xFF800000> : vector<1x64xf32>
    %222 = vector.multi_reduction <maximumf>, %221, %cst_89 [2] : vector<1x64x64xf32> to vector<1x64xf32>
    %223 = vector.shape_cast %222 : vector<1x64xf32> to vector<1x64x1xf32>
    %224 = vector.broadcast %223 : vector<1x64x1xf32> to vector<1x64x64xf32>
    %225 = arith.subf %221, %224 : vector<1x64x64xf32>
    %226 = math.exp %225 : vector<1x64x64xf32>
    %cst_90 = arith.constant dense<0.000000e+00> : vector<1x64xf32>
    %227 = vector.multi_reduction <add>, %226, %cst_90 [2] : vector<1x64x64xf32> to vector<1x64xf32>
    %228 = vector.shape_cast %227 : vector<1x64xf32> to vector<1x64x1xf32>
    %229 = tpu.reciprocal %228 {approx = true} : vector<1x64x1xf32> -> vector<1x64x1xf32>
    %230 = vector.broadcast %229 : vector<1x64x1xf32> to vector<1x64x64xf32>
    %231 = arith.mulf %226, %230 : vector<1x64x64xf32>
    %232 = arith.truncf %231 : vector<1x64x64xf32> to vector<1x64x64xbf16>
    "tpu.trace_start"() <{level = 10 : i32, message = "gqk,gkd->gqd"}> : () -> ()
    %cst_91 = arith.constant dense<0.000000e+00> : vector<1x64x16xf32>
    %233 = tpu.matmul %232, %216, %cst_91 {dimension_numbers = #tpu.dot_dimension_numbers<[2], [1], [1], [2], [0, 0, 0, 1, 1, 2], [0], [0]>} : vector<1x64x64xbf16>, vector<1x64x16xbf16>, vector<1x64x16xf32> -> vector<1x64x16xf32>
    "tpu.trace_stop"() : () -> ()
    %234 = vector.shape_cast %233 : vector<1x64x16xf32> to vector<64x16xf32>
    %235 = arith.truncf %234 : vector<64x16xf32> to vector<64x16xbf16>
    %c0_92 = arith.constant 0 : index
    %c16_93 = arith.constant 16 : index
    %236 = vector.load %arg15[%c0_92, %c16_93] : memref<64x32xbf16, #tpu.memory_space<vmem>>, vector<64x16xbf16>
    tpu.vector_store %arg15[%c0_92, %c16_93], %235 {strides = array<i32>} : memref<64x32xbf16, #tpu.memory_space<vmem>>, vector<64x16xbf16>,
    %c0_94 = arith.constant 0 : index
    %c0_95 = arith.constant 0 : index
    %237 = vector.load %arg15[%c0_94, %c0_95] : memref<64x32xbf16, #tpu.memory_space<vmem>>, vector<64x32xbf16>
    %c1_96 = arith.constant 1 : index
    %c0_97 = arith.constant 0 : index
    %c0_98 = arith.constant 0 : index
    %238 = vector.load %arg6[%c1_96, %c0_97, %c0_98] : memref<2x32x32xbf16, #tpu.memory_space<vmem>>, vector<1x32x32xbf16>
    %239 = vector.shape_cast %238 : vector<1x32x32xbf16> to vector<32x32xbf16>
    %cst_99 = arith.constant dense<0.000000e+00> : vector<64x32xf32>
    %240 = tpu.matmul %237, %239, %cst_99 {dimension_numbers = #tpu.dot_dimension_numbers<[1], [0], [0], [1], [0, 0, 1, 1], [], []>} : vector<64x32xbf16>, vector<32x32xbf16>, vector<64x32xf32> -> vector<64x32xf32>
    %c1_100 = arith.constant 1 : index
    %c0_101 = arith.constant 0 : index
    %c0_102 = arith.constant 0 : index
    %241 = vector.load %arg7[%c1_100, %c0_101, %c0_102] : memref<2x1x32xf32, #tpu.memory_space<vmem>>, vector<1x1x32xf32>
    %242 = vector.shape_cast %241 : vector<1x1x32xf32> to vector<1x32xf32>
    %243 = vector.broadcast %242 : vector<1x32xf32> to vector<64x32xf32>
    %244 = arith.addf %240, %243 : vector<64x32xf32>
    %245 = arith.addf %148, %244 : vector<64x32xf32>
    %cst_103 = arith.constant dense<0.000000e+00> : vector<64xf32>
    %246 = vector.multi_reduction <add>, %245, %cst_103 [1] : vector<64x32xf32> to vector<64xf32>
    %247 = vector.shape_cast %246 : vector<64xf32> to vector<64x1xf32>
    %cst_104 = arith.constant 3.200000e+01 : f32
    %248 = vector.broadcast %cst_104 : f32 to vector<64x1xf32>
    %249 = arith.divf %247, %248 : vector<64x1xf32>
    %250 = vector.broadcast %249 : vector<64x1xf32> to vector<64x32xf32>
    %251 = arith.subf %245, %250 : vector<64x32xf32>
    %252 = arith.mulf %251, %251 : vector<64x32xf32>
    %cst_105 = arith.constant dense<0.000000e+00> : vector<64xf32>
    %253 = vector.multi_reduction <add>, %252, %cst_105 [1] : vector<64x32xf32> to vector<64xf32>
    %254 = vector.shape_cast %253 : vector<64xf32> to vector<64x1xf32>
    %cst_106 = arith.constant 3.200000e+01 : f32
    %255 = vector.broadcast %cst_106 : f32 to vector<64x1xf32>
    %256 = arith.divf %254, %255 : vector<64x1xf32>
    %257 = vector.broadcast %249 : vector<64x1xf32> to vector<64x32xf32>
    %258 = arith.subf %245, %257 : vector<64x32xf32>
    %cst_107 = arith.constant 9.99999974E-6 : f32
    %259 = vector.broadcast %cst_107 : f32 to vector<64x1xf32>
    %260 = arith.addf %256, %259 : vector<64x1xf32>
    %261 = math.rsqrt %260 : vector<64x1xf32>
    %262 = vector.broadcast %261 : vector<64x1xf32> to vector<64x32xf32>
    %263 = arith.mulf %258, %262 : vector<64x32xf32>
    %c1_108 = arith.constant 1 : index
    %c0_109 = arith.constant 0 : index
    %c0_110 = arith.constant 0 : index
    %264 = vector.load %arg8[%c1_108, %c0_109, %c0_110] : memref<2x1x32xf32, #tpu.memory_space<vmem>>, vector<1x1x32xf32>
    %265 = vector.shape_cast %264 : vector<1x1x32xf32> to vector<1x32xf32>
    %266 = vector.broadcast %265 : vector<1x32xf32> to vector<64x32xf32>
    %267 = arith.mulf %263, %266 : vector<64x32xf32>
    %c1_111 = arith.constant 1 : index
    %c0_112 = arith.constant 0 : index
    %c0_113 = arith.constant 0 : index
    %268 = vector.load %arg9[%c1_111, %c0_112, %c0_113] : memref<2x1x32xf32, #tpu.memory_space<vmem>>, vector<1x1x32xf32>
    %269 = vector.shape_cast %268 : vector<1x1x32xf32> to vector<1x32xf32>
    %270 = vector.broadcast %269 : vector<1x32xf32> to vector<64x32xf32>
    %271 = arith.addf %267, %270 : vector<64x32xf32>
    %272 = arith.truncf %271 : vector<64x32xf32> to vector<64x32xbf16>
    %c1_114 = arith.constant 1 : index
    %c0_115 = arith.constant 0 : index
    %c0_116 = arith.constant 0 : index
    %273 = vector.load %arg10[%c1_114, %c0_115, %c0_116] : memref<2x32x64xbf16, #tpu.memory_space<vmem>>, vector<1x32x64xbf16>
    %274 = vector.shape_cast %273 : vector<1x32x64xbf16> to vector<32x64xbf16>
    %cst_117 = arith.constant dense<0.000000e+00> : vector<64x64xf32>
    %275 = tpu.matmul %272, %274, %cst_117 {dimension_numbers = #tpu.dot_dimension_numbers<[1], [0], [0], [1], [0, 0, 1, 1], [], []>} : vector<64x32xbf16>, vector<32x64xbf16>, vector<64x64xf32> -> vector<64x64xf32>
    %c1_118 = arith.constant 1 : index
    %c0_119 = arith.constant 0 : index
    %c0_120 = arith.constant 0 : index
    %276 = vector.load %arg11[%c1_118, %c0_119, %c0_120] : memref<2x1x64xf32, #tpu.memory_space<vmem>>, vector<1x1x64xf32>
    %277 = vector.shape_cast %276 : vector<1x1x64xf32> to vector<1x64xf32>
    %278 = vector.broadcast %277 : vector<1x64xf32> to vector<64x64xf32>
    %279 = arith.addf %275, %278 : vector<64x64xf32>
    %280 = arith.negf %279 : vector<64x64xf32>
    %281 = math.exp %280 : vector<64x64xf32>
    %cst_121 = arith.constant 1.000000e+00 : f32
    %282 = vector.broadcast %cst_121 : f32 to vector<64x64xf32>
    %283 = arith.addf %282, %281 : vector<64x64xf32>
    %284 = arith.divf %282, %283 : vector<64x64xf32>
    %285 = arith.mulf %279, %284 : vector<64x64xf32>
    %286 = arith.truncf %285 : vector<64x64xf32> to vector<64x64xbf16>
    %c1_122 = arith.constant 1 : index
    %c0_123 = arith.constant 0 : index
    %c0_124 = arith.constant 0 : index
    %287 = vector.load %arg12[%c1_122, %c0_123, %c0_124] : memref<2x64x32xbf16, #tpu.memory_space<vmem>>, vector<1x64x32xbf16>
    %288 = vector.shape_cast %287 : vector<1x64x32xbf16> to vector<64x32xbf16>
    %cst_125 = arith.constant dense<0.000000e+00> : vector<64x32xf32>
    %289 = tpu.matmul %286, %288, %cst_125 {dimension_numbers = #tpu.dot_dimension_numbers<[1], [0], [0], [1], [0, 0, 1, 1], [], []>} : vector<64x64xbf16>, vector<64x32xbf16>, vector<64x32xf32> -> vector<64x32xf32>
    %c1_126 = arith.constant 1 : index
    %c0_127 = arith.constant 0 : index
    %c0_128 = arith.constant 0 : index
    %290 = vector.load %arg13[%c1_126, %c0_127, %c0_128] : memref<2x1x32xf32, #tpu.memory_space<vmem>>, vector<1x1x32xf32>
    %291 = vector.shape_cast %290 : vector<1x1x32xf32> to vector<1x32xf32>
    %292 = vector.broadcast %291 : vector<1x32xf32> to vector<64x32xf32>
    %293 = arith.addf %289, %292 : vector<64x32xf32>
    %294 = arith.addf %245, %293 : vector<64x32xf32>
    %295 = vector.shape_cast %294 : vector<64x32xf32> to vector<8x8x32xf32>
    %c0_129 = arith.constant 0 : index
    %c0_130 = arith.constant 0 : index
    %c0_131 = arith.constant 0 : index
    %296 = vector.load %arg14[%c0_129, %c0_130, %c0_131] : memref<8x8x32xf32, #tpu.memory_space<vmem>>, vector<8x8x32xf32>
    tpu.vector_store %arg14[%c0_129, %c0_130, %c0_131], %295 {strides = array<i32>} : memref<8x8x32xf32, #tpu.memory_space<vmem>>, vector<8x8x32xf32>,
    return
  }
  func.func @transform_0(%arg0: i32) -> (i32, i32, i32) {
    %c0_i32 = arith.constant 0 : i32
    %c0_i32_0 = arith.constant 0 : i32
    %c0_i32_1 = arith.constant 0 : i32
    return %arg0, %c0_i32, %c0_i32_0 : i32, i32, i32
  }
  func.func @transform_1(%arg0: i32) -> (i32, i32) {
    %c0_i32 = arith.constant 0 : i32
    %c0_i32_0 = arith.constant 0 : i32
    %c0_i32_1 = arith.constant 0 : i32
    return %c0_i32, %c0_i32_0 : i32, i32
  }
  func.func @transform_2(%arg0: i32) -> (i32, i32, i32) {
    %c0_i32 = arith.constant 0 : i32
    %c0_i32_0 = arith.constant 0 : i32
    %c0_i32_1 = arith.constant 0 : i32
    %c0_i32_2 = arith.constant 0 : i32
    return %c0_i32, %c0_i32_0, %c0_i32_1 : i32, i32, i32
  }
  func.func @transform_3(%arg0: i32) -> (i32, i32, i32) {
    %c0_i32 = arith.constant 0 : i32
    %c0_i32_0 = arith.constant 0 : i32
    %c0_i32_1 = arith.constant 0 : i32
    %c0_i32_2 = arith.constant 0 : i32
    return %c0_i32, %c0_i32_0, %c0_i32_1 : i32, i32, i32
  }
  func.func @transform_4(%arg0: i32) -> (i32, i32, i32) {
    %c0_i32 = arith.constant 0 : i32
    %c0_i32_0 = arith.constant 0 : i32
    %c0_i32_1 = arith.constant 0 : i32
    %c0_i32_2 = arith.constant 0 : i32
    return %c0_i32, %c0_i32_0, %c0_i32_1 : i32, i32, i32
  }
  func.func @transform_5(%arg0: i32) -> (i32, i32, i32) {
    %c0_i32 = arith.constant 0 : i32
    %c0_i32_0 = arith.constant 0 : i32
    %c0_i32_1 = arith.constant 0 : i32
    %c0_i32_2 = arith.constant 0 : i32
    return %c0_i32, %c0_i32_0, %c0_i32_1 : i32, i32, i32
  }
  func.func @transform_6(%arg0: i32) -> (i32, i32, i32) {
    %c0_i32 = arith.constant 0 : i32
    %c0_i32_0 = arith.constant 0 : i32
    %c0_i32_1 = arith.constant 0 : i32
    %c0_i32_2 = arith.constant 0 : i32
    return %c0_i32, %c0_i32_0, %c0_i32_1 : i32, i32, i32
  }
  func.func @transform_7(%arg0: i32) -> (i32, i32, i32) {
    %c0_i32 = arith.constant 0 : i32
    %c0_i32_0 = arith.constant 0 : i32
    %c0_i32_1 = arith.constant 0 : i32
    %c0_i32_2 = arith.constant 0 : i32
    return %c0_i32, %c0_i32_0, %c0_i32_1 : i32, i32, i32
  }
  func.func @transform_8(%arg0: i32) -> (i32, i32, i32) {
    %c0_i32 = arith.constant 0 : i32
    %c0_i32_0 = arith.constant 0 : i32
    %c0_i32_1 = arith.constant 0 : i32
    %c0_i32_2 = arith.constant 0 : i32
    return %c0_i32, %c0_i32_0, %c0_i32_1 : i32, i32, i32
  }
  func.func @transform_9(%arg0: i32) -> (i32, i32, i32) {
    %c0_i32 = arith.constant 0 : i32
    %c0_i32_0 = arith.constant 0 : i32
    %c0_i32_1 = arith.constant 0 : i32
    %c0_i32_2 = arith.constant 0 : i32
    return %c0_i32, %c0_i32_0, %c0_i32_1 : i32, i32, i32
  }
  func.func @transform_10(%arg0: i32) -> (i32, i32, i32) {
    %c0_i32 = arith.constant 0 : i32
    %c0_i32_0 = arith.constant 0 : i32
    %c0_i32_1 = arith.constant 0 : i32
    %c0_i32_2 = arith.constant 0 : i32
    return %c0_i32, %c0_i32_0, %c0_i32_1 : i32, i32, i32
  }
  func.func @transform_11(%arg0: i32) -> (i32, i32, i32) {
    %c0_i32 = arith.constant 0 : i32
    %c0_i32_0 = arith.constant 0 : i32
    %c0_i32_1 = arith.constant 0 : i32
    %c0_i32_2 = arith.constant 0 : i32
    return %c0_i32, %c0_i32_0, %c0_i32_1 : i32, i32, i32
  }
  func.func @transform_12(%arg0: i32) -> (i32, i32, i32) {
    %c0_i32 = arith.constant 0 : i32
    %c0_i32_0 = arith.constant 0 : i32
    %c0_i32_1 = arith.constant 0 : i32
    %c0_i32_2 = arith.constant 0 : i32
    return %c0_i32, %c0_i32_0, %c0_i32_1 : i32, i32, i32
  }
  func.func @transform_13(%arg0: i32) -> (i32, i32, i32) {
    %c0_i32 = arith.constant 0 : i32
    %c0_i32_0 = arith.constant 0 : i32
    %c0_i32_1 = arith.constant 0 : i32
    return %arg0, %c0_i32, %c0_i32_0 : i32, i32, i32
  }
}

</mosaic_0001>

<llo_original>
// kernel: tpu_custom_call.1
$region0: #{tpu_custom_call.1}
  #allocation0 [shape = 'u32[]', space=smem, size = 0x4, offset = 0x4, fixed_abs, tag = 'smem constant byte address 0x4 - core index']
  #allocation1 [shape = 'u32[144,128]{1,0:T(1,128)}', space=vmem, size = 0x12000, scoped, tag = 'internal scratch']
  #allocation2 [shape = 'bf16[64,32]{1,0:T(8,128)(2,1)}', space=vmem, size = 0x4000, scoped, tag = 'scratch operand']
  %s0 = inlined_call_operand.vmem [shape: f32[8,8,32], index: 0, kind: input, shape index: {}]
  %s1 = inlined_call_operand.hbm [shape: f32[64,64], index: 1, kind: input, shape index: {}]
  %s2 = inlined_call_operand.vmem [shape: f32[2,1,32], index: 2, kind: input, shape index: {}]
  %s3 = inlined_call_operand.vmem [shape: f32[2,1,32], index: 3, kind: input, shape index: {}]
  %s4 = inlined_call_operand.vmem [shape: bf16[2,32,96], index: 4, kind: input, shape index: {}]
  %s5 = inlined_call_operand.hbm [shape: bf16[2,32,32], index: 5, kind: input, shape index: {}]
  %s6 = inlined_call_operand.vmem [shape: f32[2,1,32], index: 6, kind: input, shape index: {}]
  %s7 = inlined_call_operand.vmem [shape: f32[2,1,32], index: 7, kind: input, shape index: {}]
  %s8 = inlined_call_operand.vmem [shape: f32[2,1,32], index: 8, kind: input, shape index: {}]
  %s9 = inlined_call_operand.hbm [shape: bf16[2,32,64], index: 9, kind: input, shape index: {}]
  %s10 = inlined_call_operand.vmem [shape: f32[2,1,64], index: 10, kind: input, shape index: {}]
  %s11 = inlined_call_operand.vmem [shape: bf16[2,64,32], index: 11, kind: input, shape index: {}]
  %s12 = inlined_call_operand.vmem [shape: f32[2,1,32], index: 12, kind: input, shape index: {}]
  %s13 = inlined_call_operand.hbm [shape: f32[8,8,32], index: 13, kind: output, shape index: {}]
  %s14 = sld [smem:[#allocation0]]
  $region74: #{tpu_custom_call.1} parent=0
    _
  %s16 = ssub.s32 1, %s14
  %s17 = scalar_select 0, %s16, %s14
  $region1: #{tpu_custom_call.1} parent=0
    #allocation3 [shape = 'u8[32768]{0}', space=vmem, size = 0x8000, scoped, tag = 'input window, operand 1, single buffered']
    #allocation4 [shape = 's32[1]{0}', space=sflag, size = 0x4, scoped, tag = 'scoped memory for tpu_custom_call.1']
    #allocation5 [shape = 's32[1]{0}', space=sflag, size = 0x4, scoped, tag = 'scoped memory for tpu_custom_call.1']
    #allocation6 [shape = 'u8[16384]{0}', space=vmem, size = 0x4000, scoped, tag = 'input window, operand 5, single buffered']
    #allocation7 [shape = 's32[1]{0}', space=sflag, size = 0x4, scoped, tag = 'scoped memory for tpu_custom_call.1']
    #allocation8 [shape = 'u8[16384]{0}', space=vmem, size = 0x4000, scoped, tag = 'input window, operand 9, single buffered']
    #allocation9 [shape = 'u8[32768]{0}', space=vmem, size = 0x8000, scoped, tag = 'output window, operand 0, single buffered']
    %18 = vsyncpa [#allocation4], 0
    %19 = vsyncpa [#allocation7], 0
    %20 = vsyncpa [#allocation5], 0
    // Predicated region
    $region2: #{tpu_custom_call.1} parent=1 // pred_check
      _
    $region3: #{tpu_custom_call.1} parent=1 // pred_check_branch
      %22 = sbr.rel (0) target = $region5
    $region4: #{tpu_custom_call.1} parent=1 // pred_region
      _
    $region5: #{tpu_custom_call.1} parent=1 // pred_fallthru
      _
    // Predicated region
    $region6: #{tpu_custom_call.1} parent=1 // pred_check
      _
    $region7: #{tpu_custom_call.1} parent=1 // pred_check_branch
      %24 = sbr.rel (0) target = $region9
    $region8: #{tpu_custom_call.1} parent=1 // pred_region
      %s26 = ssub.s32 1024, 1024
      %27 = vsyncadd [#allocation4], %s26
      %s28 = sshll.u32 [#allocation3], 4
      %s29 = int_to_ptr.vmem [resolvable:$true] %s28
      %34 = dma.hbm_to_vmem [thread:$0]  %s1, 1024, %s29, [#allocation4], 128, 128, 8
    $region9: #{tpu_custom_call.1} parent=1 // pred_fallthru
      _
    // Predicated region
    $region10: #{tpu_custom_call.1} parent=1 // pred_check
      _
    $region11: #{tpu_custom_call.1} parent=1 // pred_check_branch
      %36 = sbr.rel (0) target = $region13
    $region12: #{tpu_custom_call.1} parent=1 // pred_region
      _
    $region13: #{tpu_custom_call.1} parent=1 // pred_fallthru
      _
    // Predicated region
    $region14: #{tpu_custom_call.1} parent=1 // pred_check
      _
    $region15: #{tpu_custom_call.1} parent=1 // pred_check_branch
      %38 = sbr.rel (0) target = $region17
    $region16: #{tpu_custom_call.1} parent=1 // pred_region
      _
    $region17: #{tpu_custom_call.1} parent=1 // pred_fallthru
      _
    // Predicated region
    $region18: #{tpu_custom_call.1} parent=1 // pred_check
      _
    $region19: #{tpu_custom_call.1} parent=1 // pred_check_branch
      %40 = sbr.rel (0) target = $region21
    $region20: #{tpu_custom_call.1} parent=1 // pred_region
      _
    $region21: #{tpu_custom_call.1} parent=1 // pred_fallthru
      _
    // Predicated region
    $region22: #{tpu_custom_call.1} parent=1 // pred_check
      _
    $region23: #{tpu_custom_call.1} parent=1 // pred_check_branch
      %42 = sbr.rel (0) target = $region25
    $region24: #{tpu_custom_call.1} parent=1 // pred_region
      %s44 = ssub.s32 512, 512
      %45 = vsyncadd [#allocation7], %s44
      %s46 = sshll.u32 [#allocation6], 4
      %s47 = int_to_ptr.vmem [resolvable:$true] %s46
      %52 = dma.hbm_to_vmem [thread:$0]  %s5, 512, %s47, [#allocation7], 64, 64, 4
    $region25: #{tpu_custom_call.1} parent=1 // pred_fallthru
      _
    // Predicated region
    $region26: #{tpu_custom_call.1} parent=1 // pred_check
      _
    $region27: #{tpu_custom_call.1} parent=1 // pred_check_branch
      %54 = sbr.rel (0) target = $region29
    $region28: #{tpu_custom_call.1} parent=1 // pred_region
      _
    $region29: #{tpu_custom_call.1} parent=1 // pred_fallthru
      _
    // Predicated region
    $region30: #{tpu_custom_call.1} parent=1 // pred_check
      _
    $region31: #{tpu_custom_call.1} parent=1 // pred_check_branch
      %56 = sbr.rel (0) target = $region33
    $region32: #{tpu_custom_call.1} parent=1 // pred_region
      _
    $region33: #{tpu_custom_call.1} parent=1 // pred_fallthru
      _
    // Predicated region
    $region34: #{tpu_custom_call.1} parent=1 // pred_check
      _
    $region35: #{tpu_custom_call.1} parent=1 // pred_check_branch
      %58 = sbr.rel (0) target = $region37
    $region36: #{tpu_custom_call.1} parent=1 // pred_region
      _
    $region37: #{tpu_custom_call.1} parent=1 // pred_fallthru
      _
    // Predicated region
    $region38: #{tpu_custom_call.1} parent=1 // pred_check
      _
    $region39: #{tpu_custom_call.1} parent=1 // pred_check_branch
      %60 = sbr.rel (0) target = $region41
    $region40: #{tpu_custom_call.1} parent=1 // pred_region
      %s62 = ssub.s32 512, 512
      %63 = vsyncadd [#allocation7], %s62
      %s64 = sshll.u32 [#allocation8], 4
      %s65 = int_to_ptr.vmem [resolvable:$true] %s64
      %70 = dma.hbm_to_vmem [thread:$0]  %s9, 512, %s65, [#allocation7], 64, 64, 4
    $region41: #{tpu_custom_call.1} parent=1 // pred_fallthru
      _
    // Predicated region
    $region42: #{tpu_custom_call.1} parent=1 // pred_check
      _
    $region43: #{tpu_custom_call.1} parent=1 // pred_check_branch
      %72 = sbr.rel (0) target = $region45
    $region44: #{tpu_custom_call.1} parent=1 // pred_region
      _
    $region45: #{tpu_custom_call.1} parent=1 // pred_fallthru
      _
    // Predicated region
    $region46: #{tpu_custom_call.1} parent=1 // pred_check
      _
    $region47: #{tpu_custom_call.1} parent=1 // pred_check_branch
      %74 = sbr.rel (0) target = $region49
    $region48: #{tpu_custom_call.1} parent=1 // pred_region
      _
    $region49: #{tpu_custom_call.1} parent=1 // pred_fallthru
      _
    // Predicated region
    $region50: #{tpu_custom_call.1} parent=1 // pred_check
      _
    $region51: #{tpu_custom_call.1} parent=1 // pred_check_branch
      %76 = sbr.rel (0) target = $region53
    $region52: #{tpu_custom_call.1} parent=1 // pred_region
      _
    $region53: #{tpu_custom_call.1} parent=1 // pred_fallthru
      _
    // Predicated region
    $region54: #{tpu_custom_call.1} parent=1 // pred_check
      _
    $region55: #{tpu_custom_call.1} parent=1 // pred_check_branch
      %78 = sbr.rel (0) target = $region57
    $region56: #{tpu_custom_call.1} parent=1 // pred_region
      %79 = dma.done [#allocation4], 1024
    $region57: #{tpu_custom_call.1} parent=1 // pred_fallthru
      _
    // Predicated region
    $region58: #{tpu_custom_call.1} parent=1 // pred_check
      _
    $region59: #{tpu_custom_call.1} parent=1 // pred_check_branch
      %81 = sbr.rel (0) target = $region61
    $region60: #{tpu_custom_call.1} parent=1 // pred_region
      %82 = dma.done [#allocation7], 512
    $region61: #{tpu_custom_call.1} parent=1 // pred_fallthru
      _
    // Predicated region
    $region62: #{tpu_custom_call.1} parent=1 // pred_check
      _
    $region63: #{tpu_custom_call.1} parent=1 // pred_check_branch
      %84 = sbr.rel (0) target = $region65
    $region64: #{tpu_custom_call.1} parent=1 // pred_region
      %85 = dma.done [#allocation7], 512
    $region65: #{tpu_custom_call.1} parent=1 // pred_fallthru
      _
    %v87 = vld [vmem:[%s0] sm:$0xff]
    %v88 = vld [vmem:[%s0 + $0x8] sm:$0xff]
    %v89 = vld [vmem:[%s0 + $0x10] sm:$0xff]
    %v90 = vld [vmem:[%s0 + $0x18] sm:$0xff]
    %v91 = vld [vmem:[%s0 + $0x20] sm:$0xff]
    %v92 = vld [vmem:[%s0 + $0x28] sm:$0xff]
    %v93 = vld [vmem:[%s0 + $0x30] sm:$0xff]
    %v94 = vld [vmem:[%s0 + $0x38] sm:$0xff]
    %v95 = vld [vmem:[#allocation3] sm:$0xff]
    %v96 = vld [vmem:[#allocation3 + $0x8] sm:$0xff]
    %v97 = vld [vmem:[#allocation3 + $0x10] sm:$0xff]
    %v98 = vld [vmem:[#allocation3 + $0x18] sm:$0xff]
    %v99 = vld [vmem:[#allocation3 + $0x20] sm:$0xff]
    %v100 = vld [vmem:[#allocation3 + $0x28] sm:$0xff]
    %v101 = vld [vmem:[#allocation3 + $0x30] sm:$0xff]
    %v102 = vld [vmem:[#allocation3 + $0x38] sm:$0xff]
    %vm103 = vcmask 261120
    %v104 = vsel %vm103, %v87, 0.0
    %105 = vadd.xlane.f32.xlu0 %v104
    %v106 = vpop.xlane.xlu0 %105
    %v107 = vsel %vm103, %v88, 0.0
    %108 = vadd.xlane.f32.xlu0 %v107
    %v109 = vpop.xlane.xlu0 %108
    %v110 = vsel %vm103, %v89, 0.0
    %111 = vadd.xlane.f32.xlu0 %v110
    %v112 = vpop.xlane.xlu0 %111
    %v113 = vsel %vm103, %v90, 0.0
    %114 = vadd.xlane.f32.xlu0 %v113
    %v115 = vpop.xlane.xlu0 %114
    %v116 = vsel %vm103, %v91, 0.0
    %117 = vadd.xlane.f32.xlu0 %v116
    %v118 = vpop.xlane.xlu0 %117
    %v119 = vsel %vm103, %v92, 0.0
    %120 = vadd.xlane.f32.xlu0 %v119
    %v121 = vpop.xlane.xlu0 %120
    %v122 = vsel %vm103, %v93, 0.0
    %123 = vadd.xlane.f32.xlu0 %v122
    %v124 = vpop.xlane.xlu0 %123
    %v125 = vsel %vm103, %v94, 0.0
    %126 = vadd.xlane.f32.xlu0 %v125
    %v127 = vpop.xlane.xlu0 %126
    %v128 = vrcp.pop 32.0
    %v129 = vmul.f32 %v106, %v128
    %v130 = vmul.f32 %v109, %v128
    %v131 = vmul.f32 %v112, %v128
    %v132 = vmul.f32 %v115, %v128
    %v133 = vmul.f32 %v118, %v128
    %v134 = vmul.f32 %v121, %v128
    %v135 = vmul.f32 %v124, %v128
    %v136 = vmul.f32 %v127, %v128
    %v137 = vsub.f32 %v87, %v129
    %v138 = vsub.f32 %v88, %v130
    %v139 = vsub.f32 %v89, %v131
    %v140 = vsub.f32 %v90, %v132
    %v141 = vsub.f32 %v91, %v133
    %v142 = vsub.f32 %v92, %v134
    %v143 = vsub.f32 %v93, %v135
    %v144 = vsub.f32 %v94, %v136
    %v145 = vmul.f32 %v137, %v137
    %v146 = vmul.f32 %v138, %v138
    %v147 = vmul.f32 %v139, %v139
    %v148 = vmul.f32 %v140, %v140
    %v149 = vmul.f32 %v141, %v141
    %v150 = vmul.f32 %v142, %v142
    %v151 = vmul.f32 %v143, %v143
    %v152 = vmul.f32 %v144, %v144
    %v153 = vsel %vm103, %v145, 0.0
    %154 = vadd.xlane.f32.xlu0 %v153
    %v155 = vpop.xlane.xlu0 %154
    %v156 = vsel %vm103, %v146, 0.0
    %157 = vadd.xlane.f32.xlu0 %v156
    %v158 = vpop.xlane.xlu0 %157
    %v159 = vsel %vm103, %v147, 0.0
    %160 = vadd.xlane.f32.xlu0 %v159
    %v161 = vpop.xlane.xlu0 %160
    %v162 = vsel %vm103, %v148, 0.0
    %163 = vadd.xlane.f32.xlu0 %v162
    %v164 = vpop.xlane.xlu0 %163
    %v165 = vsel %vm103, %v149, 0.0
    %166 = vadd.xlane.f32.xlu0 %v165
    %v167 = vpop.xlane.xlu0 %166
    %v168 = vsel %vm103, %v150, 0.0
    %169 = vadd.xlane.f32.xlu0 %v168
    %v170 = vpop.xlane.xlu0 %169
    %v171 = vsel %vm103, %v151, 0.0
    %172 = vadd.xlane.f32.xlu0 %v171
    %v173 = vpop.xlane.xlu0 %172
    %v174 = vsel %vm103, %v152, 0.0
    %175 = vadd.xlane.f32.xlu0 %v174
    %v176 = vpop.xlane.xlu0 %175
    %v177 = vmul.f32 %v155, %v128
    %v178 = vmul.f32 %v158, %v128
    %v179 = vmul.f32 %v161, %v128
    %v180 = vmul.f32 %v164, %v128
    %v181 = vmul.f32 %v167, %v128
    %v182 = vmul.f32 %v170, %v128
    %v183 = vmul.f32 %v173, %v128
    %v184 = vmul.f32 %v176, %v128
    %v185 = vadd.f32 %v177, 1e-05
    %v186 = vadd.f32 %v178, 1e-05
    %v187 = vadd.f32 %v179, 1e-05
    %v188 = vadd.f32 %v180, 1e-05
    %v189 = vadd.f32 %v181, 1e-05
    %v190 = vadd.f32 %v182, 1e-05
    %v191 = vadd.f32 %v183, 1e-05
    %v192 = vadd.f32 %v184, 1e-05
    %v193 = vrsqrt.pop %v185
    %v194 = vrsqrt.pop %v186
    %v195 = vrsqrt.pop %v187
    %v196 = vrsqrt.pop %v188
    %v197 = vrsqrt.pop %v189
    %v198 = vrsqrt.pop %v190
    %v199 = vrsqrt.pop %v191
    %v200 = vrsqrt.pop %v192
    %v201 = vmul.f32 %v137, %v193
    %v202 = vmul.f32 %v138, %v194
    %v203 = vmul.f32 %v139, %v195
    %v204 = vmul.f32 %v140, %v196
    %v205 = vmul.f32 %v141, %v197
    %v206 = vmul.f32 %v142, %v198
    %v207 = vmul.f32 %v143, %v199
    %v208 = vmul.f32 %v144, %v200
    %v209 = vld [vmem:[%s2] sm:$0x1]
    %v211 = vlaneseq
    %v212 = vshrl.u32 %v211, 7
    %v213 = vsub.s32 0, %v212
    %v214 = vrot.slane %v209, %v213
    %v216 = vmul.f32 %v201, %v214
    %v217 = vmul.f32 %v202, %v214
    %v218 = vmul.f32 %v203, %v214
    %v219 = vmul.f32 %v204, %v214
    %v220 = vmul.f32 %v205, %v214
    %v221 = vmul.f32 %v206, %v214
    %v222 = vmul.f32 %v207, %v214
    %v223 = vmul.f32 %v208, %v214
    %v224 = vld [vmem:[%s3] sm:$0x1]
    %v226 = vlaneseq
    %v227 = vshrl.u32 %v226, 7
    %v228 = vsub.s32 0, %v227
    %v229 = vrot.slane %v224, %v228
    %v231 = vadd.f32 %v216, %v229
    %v232 = vadd.f32 %v217, %v229
    %v233 = vadd.f32 %v218, %v229
    %v234 = vadd.f32 %v219, %v229
    %v235 = vadd.f32 %v220, %v229
    %v236 = vadd.f32 %v221, %v229
    %v237 = vadd.f32 %v222, %v229
    %v238 = vadd.f32 %v223, %v229
    %v239 = vpack.c.bf16 %v232, %v231
    %v240 = vpack.c.bf16 %v234, %v233
    %v241 = vpack.c.bf16 %v236, %v235
    %v242 = vpack.c.bf16 %v238, %v237
    %v243 = vld [vmem:[%s4] sm:$0xf]
    %v244 = vld [vmem:[%s4 + $0x4] sm:$0xf]
    %v245 = vld [vmem:[%s4 + $0x8] sm:$0xf]
    %v246 = vld [vmem:[%s4 + $0xc] sm:$0xf]
    %v251 = vunpack.c.l.b16 %v243
    %v252 = vunpack.c.l.b16 %v244
    %v253 = vunpack.c.l.b16 %v245
    %v254 = vunpack.c.l.b16 %v246
    %v255 = vpack.c.b16 %v252, %v251
    %v256 = vpack.c.b16 %v254, %v253
    %v260 = vsel %vm103, %v239, 0
    %v263 = vsel %vm103, %v240, 0
    %v266 = vsel %vm103, %v241, 0
    %v269 = vsel %vm103, %v242, 0
    %271 = vmatprep.subr.bf16.mxu0 0
    %272 = vmatpush1.bf16.msra.mxu0 0
    %273 = vmatprep.subr.bf16.mxu0 0
    %274 = vmatpush1.bf16.msra.mxu0 0
    %275 = vmatprep.subr.bf16.mxu0 0
    %276 = vmatpush1.bf16.msra.mxu0 0
    %277 = vmatprep.subr.bf16.mxu0 0
    %278 = vmatpush1.bf16.msra.mxu0 0
    %279 = vmatprep.subr.bf16.mxu0 0
    %280 = vmatpush1.bf16.msra.mxu0 0
    %281 = vmatprep.subr.bf16.mxu0 0
    %282 = vmatpush1.bf16.msra.mxu0 0
    %283 = vmatprep.subr.bf16.mxu0 0
    %284 = vmatpush1.bf16.msra.mxu0 %v256
    %285 = vmatprep.subr.bf16.mxu0 0
    %286 = vmatpush1.bf16.msra.mxu0 %v255
    %287 = vmatprep.subr.bf16.mxu0 0
    %288 = vmatpush2.bf16.msra.mxu0 0
    %289 = vmatprep.subr.bf16.mxu0 0
    %290 = vmatpush2.bf16.msra.mxu0 0
    %291 = vmatprep.subr.bf16.mxu0 0
    %292 = vmatpush2.bf16.msra.mxu0 0
    %293 = vmatprep.subr.bf16.mxu0 0
    %294 = vmatpush2.bf16.msra.mxu0 0
    %295 = vmatprep.subr.bf16.mxu0 0
    %296 = vmatpush2.bf16.msra.mxu0 0
    %297 = vmatprep.subr.bf16.mxu0 0
    %298 = vmatpush2.bf16.msra.mxu0 0
    %299 = vmatprep.subr.bf16.mxu0 0
    %300 = vmatpush2.bf16.msra.mxu0 0
    %301 = vmatprep.subr.bf16.mxu0 0
    %302 = vmatpush2.bf16.msra.mxu0 0
    %303 = vmatprep.mubr.bf16.mxu0 0
    %304 = vmatmul.mubr.bf16.gmra.mxu0 %v260
    %v305 = vpop.f32.mrf.mxu0
    %v306 = vadd.f32 0.0, %v305
    %v307 = vpop.f32.mrf.mxu0
    %v308 = vpop.f32.mrf.mxu0
    %v309 = vadd.f32 0.0, %v308
    %v310 = vpop.f32.mrf.mxu0
    %311 = vmatprep.mubr.bf16.mxu0 0
    %312 = vmatmul.mubr.bf16.gmra.mxu0 %v263
    %v313 = vpop.f32.mrf.mxu0
    %v314 = vadd.f32 0.0, %v313
    %v315 = vpop.f32.mrf.mxu0
    %v316 = vpop.f32.mrf.mxu0
    %v317 = vadd.f32 0.0, %v316
    %v318 = vpop.f32.mrf.mxu0
    %319 = vmatprep.mubr.bf16.mxu0 0
    %320 = vmatmul.mubr.bf16.gmra.mxu0 %v266
    %v321 = vpop.f32.mrf.mxu0
    %v322 = vadd.f32 0.0, %v321
    %v323 = vpop.f32.mrf.mxu0
    %v324 = vpop.f32.mrf.mxu0
    %v325 = vadd.f32 0.0, %v324
    %v326 = vpop.f32.mrf.mxu0
    %327 = vmatprep.mubr.bf16.mxu0 0
    %328 = vmatmul.mubr.bf16.gmra.mxu0 %v269
    %v329 = vpop.f32.mrf.mxu0
    %v330 = vadd.f32 0.0, %v329
    %v331 = vpop.f32.mrf.mxu0
    %v332 = vpop.f32.mrf.mxu0
    %v333 = vadd.f32 0.0, %v332
    %v334 = vpop.f32.mrf.mxu0
    %335 = vdwg.mxu0
    %v336 = vpack.c.bf16 %v309, %v306
    %v337 = vpack.c.bf16 %v317, %v314
    %v338 = vpack.c.bf16 %v325, %v322
    %v339 = vpack.c.bf16 %v333, %v330
    %344 = vrot.lane.b32.xlu0 %v336, 112
    %v345 = vpop.permute.xlu0 %344
    %346 = vrot.lane.b32.xlu0 %v337, 112
    %v347 = vpop.permute.xlu0 %346
    %348 = vrot.lane.b32.xlu0 %v338, 112
    %v349 = vpop.permute.xlu0 %348
    %350 = vrot.lane.b32.xlu0 %v339, 112
    %v351 = vpop.permute.xlu0 %350
    %vm352 = vcmask 130048
    %v354 = vsel %vm352, %v336, 0
    %v357 = vsel %vm352, %v337, 0
    %v360 = vsel %vm352, %v338, 0
    %v363 = vsel %vm352, %v339, 0
    %v366 = vsel %vm352, %v345, 0
    %v369 = vsel %vm352, %v347, 0
    %v372 = vsel %vm352, %v349, 0
    %v375 = vsel %vm352, %v351, 0
    %377 = vmatprep.subr.bf16.mxu0 0
    %378 = vmatpush1.bf16.xpose.msra.mxu0 0
    %379 = vmatprep.subr.bf16.mxu0 0
    %380 = vmatpush1.bf16.xpose.msra.mxu0 0
    %381 = vmatprep.subr.bf16.mxu0 0
    %382 = vmatpush1.bf16.xpose.msra.mxu0 0
    %383 = vmatprep.subr.bf16.mxu0 0
    %384 = vmatpush1.bf16.xpose.msra.mxu0 0
    %385 = vmatprep.subr.bf16.mxu0 0
    %386 = vmatpush1.bf16.xpose.msra.mxu0 %v375
    %387 = vmatprep.subr.bf16.mxu0 0
    %388 = vmatpush1.bf16.xpose.msra.mxu0 %v372
    %389 = vmatprep.subr.bf16.mxu0 0
    %390 = vmatpush1.bf16.xpose.msra.mxu0 %v369
    %391 = vmatprep.subr.bf16.mxu0 0
    %392 = vmatpush1.bf16.xpose.msra.mxu0 %v366
    %393 = vmatprep.subr.bf16.mxu0 0
    %394 = vmatpush2.bf16.xpose.msra.mxu0 0
    %395 = vmatprep.subr.bf16.mxu0 0
    %396 = vmatpush2.bf16.xpose.msra.mxu0 0
    %397 = vmatprep.subr.bf16.mxu0 0
    %398 = vmatpush2.bf16.xpose.msra.mxu0 0
    %399 = vmatprep.subr.bf16.mxu0 0
    %400 = vmatpush2.bf16.xpose.msra.mxu0 0
    %401 = vmatprep.subr.bf16.mxu0 0
    %402 = vmatpush2.bf16.xpose.msra.mxu0 0
    %403 = vmatprep.subr.bf16.mxu0 0
    %404 = vmatpush2.bf16.xpose.msra.mxu0 0
    %405 = vmatprep.subr.bf16.mxu0 0
    %406 = vmatpush2.bf16.xpose.msra.mxu0 0
    %407 = vmatprep.subr.bf16.mxu0 0
    %408 = vmatpush2.bf16.xpose.msra.mxu0 0
    %409 = vmatprep.mubr.bf16.mxu0 0
    %410 = vmatmul.mubr.bf16.gmra.mxu0 %v354
    %v411 = vpop.f32.mrf.mxu0
    %v412 = vadd.f32 0.0, %v411
    %v413 = vpop.f32.mrf.mxu0
    %v414 = vpop.f32.mrf.mxu0
    %v415 = vadd.f32 0.0, %v414
    %v416 = vpop.f32.mrf.mxu0
    %417 = vmatprep.mubr.bf16.mxu0 0
    %418 = vmatmul.mubr.bf16.gmra.mxu0 %v357
    %v419 = vpop.f32.mrf.mxu0
    %v420 = vadd.f32 0.0, %v419
    %v421 = vpop.f32.mrf.mxu0
    %v422 = vpop.f32.mrf.mxu0
    %v423 = vadd.f32 0.0, %v422
    %v424 = vpop.f32.mrf.mxu0
    %425 = vmatprep.mubr.bf16.mxu0 0
    %426 = vmatmul.mubr.bf16.gmra.mxu0 %v360
    %v427 = vpop.f32.mrf.mxu0
    %v428 = vadd.f32 0.0, %v427
    %v429 = vpop.f32.mrf.mxu0
    %v430 = vpop.f32.mrf.mxu0
    %v431 = vadd.f32 0.0, %v430
    %v432 = vpop.f32.mrf.mxu0
    %433 = vmatprep.mubr.bf16.mxu0 0
    %434 = vmatmul.mubr.bf16.gmra.mxu0 %v363
    %v435 = vpop.f32.mrf.mxu0
    %v436 = vadd.f32 0.0, %v435
    %v437 = vpop.f32.mrf.mxu0
    %v438 = vpop.f32.mrf.mxu0
    %v439 = vadd.f32 0.0, %v438
    %v440 = vpop.f32.mrf.mxu0
    %441 = vdwg.mxu0
    %v442 = vmul.f32 %v412, 0.25
    %v443 = vmul.f32 %v415, 0.25
    %v444 = vmul.f32 %v420, 0.25
    %v445 = vmul.f32 %v423, 0.25
    %v446 = vmul.f32 %v428, 0.25
    %v447 = vmul.f32 %v431, 0.25
    %v448 = vmul.f32 %v436, 0.25
    %v449 = vmul.f32 %v439, 0.25
    %v450 = vadd.f32 %v442, %v95
    %v451 = vadd.f32 %v443, %v96
    %v452 = vadd.f32 %v444, %v97
    %v453 = vadd.f32 %v445, %v98
    %v454 = vadd.f32 %v446, %v99
    %v455 = vadd.f32 %v447, %v100
    %v456 = vadd.f32 %v448, %v101
    %v457 = vadd.f32 %v449, %v102
    %vm458 = vcmask 523264
    %v459 = vsel %vm458, %v450, -inf
    %460 = vmax.xlane.f32.xlu0 %v459
    %v461 = vpop.xlane.xlu0 %460
    %v462 = vsel %vm458, %v451, -inf
    %463 = vmax.xlane.f32.xlu0 %v462
    %v464 = vpop.xlane.xlu0 %463
    %v465 = vsel %vm458, %v452, -inf
    %466 = vmax.xlane.f32.xlu0 %v465
    %v467 = vpop.xlane.xlu0 %466
    %v468 = vsel %vm458, %v453, -inf
    %469 = vmax.xlane.f32.xlu0 %v468
    %v470 = vpop.xlane.xlu0 %469
    %v471 = vsel %vm458, %v454, -inf
    %472 = vmax.xlane.f32.xlu0 %v471
    %v473 = vpop.xlane.xlu0 %472
    %v474 = vsel %vm458, %v455, -inf
    %475 = vmax.xlane.f32.xlu0 %v474
    %v476 = vpop.xlane.xlu0 %475
    %v477 = vsel %vm458, %v456, -inf
    %478 = vmax.xlane.f32.xlu0 %v477
    %v479 = vpop.xlane.xlu0 %478
    %v480 = vsel %vm458, %v457, -inf
    %481 = vmax.xlane.f32.xlu0 %v480
    %v482 = vpop.xlane.xlu0 %481
    %v483 = vsub.f32 %v450, %v461
    %v484 = vsub.f32 %v451, %v464
    %v485 = vsub.f32 %v452, %v467
    %v486 = vsub.f32 %v453, %v470
    %v487 = vsub.f32 %v454, %v473
    %v488 = vsub.f32 %v455, %v476
    %v489 = vsub.f32 %v456, %v479
    %v490 = vsub.f32 %v457, %v482
    %v491 = vmul.f32 %v483, 1.442695
    %v492 = vpow.pop %v491
    %v493 = vmul.f32 %v484, 1.442695
    %v494 = vpow.pop %v493
    %v495 = vmul.f32 %v485, 1.442695
    %v496 = vpow.pop %v495
    %v497 = vmul.f32 %v486, 1.442695
    %v498 = vpow.pop %v497
    %v499 = vmul.f32 %v487, 1.442695
    %v500 = vpow.pop %v499
    %v501 = vmul.f32 %v488, 1.442695
    %v502 = vpow.pop %v501
    %v503 = vmul.f32 %v489, 1.442695
    %v504 = vpow.pop %v503
    %v505 = vmul.f32 %v490, 1.442695
    %v506 = vpow.pop %v505
    %v507 = vsel %vm458, %v492, 0.0
    %508 = vadd.xlane.f32.xlu0 %v507
    %v509 = vpop.xlane.xlu0 %508
    %v510 = vsel %vm458, %v494, 0.0
    %511 = vadd.xlane.f32.xlu0 %v510
    %v512 = vpop.xlane.xlu0 %511
    %v513 = vsel %vm458, %v496, 0.0
    %514 = vadd.xlane.f32.xlu0 %v513
    %v515 = vpop.xlane.xlu0 %514
    %v516 = vsel %vm458, %v498, 0.0
    %517 = vadd.xlane.f32.xlu0 %v516
    %v518 = vpop.xlane.xlu0 %517
    %v519 = vsel %vm458, %v500, 0.0
    %520 = vadd.xlane.f32.xlu0 %v519
    %v521 = vpop.xlane.xlu0 %520
    %v522 = vsel %vm458, %v502, 0.0
    %523 = vadd.xlane.f32.xlu0 %v522
    %v524 = vpop.xlane.xlu0 %523
    %v525 = vsel %vm458, %v504, 0.0
    %526 = vadd.xlane.f32.xlu0 %v525
    %v527 = vpop.xlane.xlu0 %526
    %v528 = vsel %vm458, %v506, 0.0
    %529 = vadd.xlane.f32.xlu0 %v528
    %v530 = vpop.xlane.xlu0 %529
    %v531 = vrcp.pop %v509
    %v532 = vrcp.pop %v512
    %v533 = vrcp.pop %v515
    %v534 = vrcp.pop %v518
    %v535 = vrcp.pop %v521
    %v536 = vrcp.pop %v524
    %v537 = vrcp.pop %v527
    %v538 = vrcp.pop %v530
    %v539 = vmul.f32 %v492, %v531
    %v540 = vmul.f32 %v494, %v532
    %v541 = vmul.f32 %v496, %v533
    %v542 = vmul.f32 %v498, %v534
    %v543 = vmul.f32 %v500, %v535
    %v544 = vmul.f32 %v502, %v536
    %v545 = vmul.f32 %v504, %v537
    %v546 = vmul.f32 %v506, %v538
    %v547 = vpack.c.bf16 %v540, %v539
    %v548 = vpack.c.bf16 %v542, %v541
    %v549 = vpack.c.bf16 %v544, %v543
    %v550 = vpack.c.bf16 %v546, %v545
    %551 = vrot.lane.b32.xlu0 %v336, 96
    %v552 = vpop.permute.xlu0 %551
    %553 = vrot.lane.b32.xlu0 %v337, 96
    %v554 = vpop.permute.xlu0 %553
    %555 = vrot.lane.b32.xlu0 %v338, 96
    %v556 = vpop.permute.xlu0 %555
    %557 = vrot.lane.b32.xlu0 %v339, 96
    %v558 = vpop.permute.xlu0 %557
    %v564 = vsel %vm458, %v547, 0
    %v567 = vsel %vm458, %v548, 0
    %v570 = vsel %vm458, %v549, 0
    %v573 = vsel %vm458, %v550, 0
    %575 = vmatprep.subr.bf16.mxu0 0
    %576 = vmatpush1.bf16.msra.mxu0 0
    %577 = vmatprep.subr.bf16.mxu0 0
    %578 = vmatpush1.bf16.msra.mxu0 0
    %579 = vmatprep.subr.bf16.mxu0 0
    %580 = vmatpush1.bf16.msra.mxu0 0
    %581 = vmatprep.subr.bf16.mxu0 0
    %582 = vmatpush1.bf16.msra.mxu0 0
    %583 = vmatprep.subr.bf16.mxu0 0
    %584 = vmatpush1.bf16.msra.mxu0 %v558
    %585 = vmatprep.subr.bf16.mxu0 0
    %586 = vmatpush1.bf16.msra.mxu0 %v556
    %587 = vmatprep.subr.bf16.mxu0 0
    %588 = vmatpush1.bf16.msra.mxu0 %v554
    %589 = vmatprep.subr.bf16.mxu0 0
    %590 = vmatpush1.bf16.msra.mxu0 %v552
    %591 = vmatprep.subr.bf16.mxu0 0
    %592 = vmatpush2.bf16.msra.mxu0 0
    %593 = vmatprep.subr.bf16.mxu0 0
    %594 = vmatpush2.bf16.msra.mxu0 0
    %595 = vmatprep.subr.bf16.mxu0 0
    %596 = vmatpush2.bf16.msra.mxu0 0
    %597 = vmatprep.subr.bf16.mxu0 0
    %598 = vmatpush2.bf16.msra.mxu0 0
    %599 = vmatprep.subr.bf16.mxu0 0
    %600 = vmatpush2.bf16.msra.mxu0 0
    %601 = vmatprep.subr.bf16.mxu0 0
    %602 = vmatpush2.bf16.msra.mxu0 0
    %603 = vmatprep.subr.bf16.mxu0 0
    %604 = vmatpush2.bf16.msra.mxu0 0
    %605 = vmatprep.subr.bf16.mxu0 0
    %606 = vmatpush2.bf16.msra.mxu0 0
    %607 = vmatprep.mubr.bf16.mxu0 0
    %608 = vmatmul.mubr.bf16.gmra.mxu0 %v564
    %v609 = vpop.f32.mrf.mxu0
    %v610 = vadd.f32 0.0, %v609
    %v611 = vpop.f32.mrf.mxu0
    %v612 = vpop.f32.mrf.mxu0
    %v613 = vadd.f32 0.0, %v612
    %v614 = vpop.f32.mrf.mxu0
    %615 = vmatprep.mubr.bf16.mxu0 0
    %616 = vmatmul.mubr.bf16.gmra.mxu0 %v567
    %v617 = vpop.f32.mrf.mxu0
    %v618 = vadd.f32 0.0, %v617
    %v619 = vpop.f32.mrf.mxu0
    %v620 = vpop.f32.mrf.mxu0
    %v621 = vadd.f32 0.0, %v620
    %v622 = vpop.f32.mrf.mxu0
    %623 = vmatprep.mubr.bf16.mxu0 0
    %624 = vmatmul.mubr.bf16.gmra.mxu0 %v570
    %v625 = vpop.f32.mrf.mxu0
    %v626 = vadd.f32 0.0, %v625
    %v627 = vpop.f32.mrf.mxu0
    %v628 = vpop.f32.mrf.mxu0
    %v629 = vadd.f32 0.0, %v628
    %v630 = vpop.f32.mrf.mxu0
    %631 = vmatprep.mubr.bf16.mxu0 0
    %632 = vmatmul.mubr.bf16.gmra.mxu0 %v573
    %v633 = vpop.f32.mrf.mxu0
    %v634 = vadd.f32 0.0, %v633
    %v635 = vpop.f32.mrf.mxu0
    %v636 = vpop.f32.mrf.mxu0
    %v637 = vadd.f32 0.0, %v636
    %v638 = vpop.f32.mrf.mxu0
    %639 = vdwg.mxu0
    %v640 = vpack.c.bf16 %v613, %v610
    %v641 = vpack.c.bf16 %v621, %v618
    %v642 = vpack.c.bf16 %v629, %v626
    %v643 = vpack.c.bf16 %v637, %v634
    %v648 = vunpack.c.l.b16 %v640
    %v649 = vunpack.c.h.b16 %v640
    %v650 = vunpack.c.l.b16 %v641
    %v651 = vunpack.c.h.b16 %v641
    %v652 = vunpack.c.l.b16 %v642
    %v653 = vunpack.c.h.b16 %v642
    %v654 = vunpack.c.l.b16 %v643
    %v655 = vunpack.c.h.b16 %v643
    %v656 = vpack.c.b16 %v648, %v648
    %v657 = vpack.c.b16 %v649, %v649
    %v658 = vpack.c.b16 %v650, %v650
    %v659 = vpack.c.b16 %v651, %v651
    %v660 = vpack.c.b16 %v652, %v652
    %v661 = vpack.c.b16 %v653, %v653
    %v662 = vpack.c.b16 %v654, %v654
    %v663 = vpack.c.b16 %v655, %v655
    %vm672 = vcmask 125952
    %673 = vst.msk [vmem:[#allocation2] sm:$0xf] %vm672, %v656
    %674 = vst.msk [vmem:[#allocation2 + $0x4] sm:$0xf] %vm672, %v657
    %675 = vst.msk [vmem:[#allocation2 + $0x8] sm:$0xf] %vm672, %v658
    %676 = vst.msk [vmem:[#allocation2 + $0xc] sm:$0xf] %vm672, %v659
    %677 = vst.msk [vmem:[#allocation2 + $0x10] sm:$0xf] %vm672, %v660
    %678 = vst.msk [vmem:[#allocation2 + $0x14] sm:$0xf] %vm672, %v661
    %679 = vst.msk [vmem:[#allocation2 + $0x18] sm:$0xf] %vm672, %v662
    %680 = vst.msk [vmem:[#allocation2 + $0x1c] sm:$0xf] %vm672, %v663
    %681 = vrot.lane.b32.xlu0 %v336, 80
    %v682 = vpop.permute.xlu0 %681
    %683 = vrot.lane.b32.xlu0 %v337, 80
    %v684 = vpop.permute.xlu0 %683
    %685 = vrot.lane.b32.xlu0 %v338, 80
    %v686 = vpop.permute.xlu0 %685
    %687 = vrot.lane.b32.xlu0 %v339, 80
    %v688 = vpop.permute.xlu0 %687
    %689 = vrot.lane.b32.xlu0 %v336, 64
    %v690 = vpop.permute.xlu0 %689
    %691 = vrot.lane.b32.xlu0 %v337, 64
    %v692 = vpop.permute.xlu0 %691
    %693 = vrot.lane.b32.xlu0 %v338, 64
    %v694 = vpop.permute.xlu0 %693
    %695 = vrot.lane.b32.xlu0 %v339, 64
    %v696 = vpop.permute.xlu0 %695
    %v698 = vsel %vm352, %v682, 0
    %v701 = vsel %vm352, %v684, 0
    %v704 = vsel %vm352, %v686, 0
    %v707 = vsel %vm352, %v688, 0
    %v710 = vsel %vm352, %v690, 0
    %v713 = vsel %vm352, %v692, 0
    %v716 = vsel %vm352, %v694, 0
    %v719 = vsel %vm352, %v696, 0
    %721 = vmatprep.subr.bf16.mxu0 0
    %722 = vmatpush1.bf16.xpose.msra.mxu0 0
    %723 = vmatprep.subr.bf16.mxu0 0
    %724 = vmatpush1.bf16.xpose.msra.mxu0 0
    %725 = vmatprep.subr.bf16.mxu0 0
    %726 = vmatpush1.bf16.xpose.msra.mxu0 0
    %727 = vmatprep.subr.bf16.mxu0 0
    %728 = vmatpush1.bf16.xpose.msra.mxu0 0
    %729 = vmatprep.subr.bf16.mxu0 0
    %730 = vmatpush1.bf16.xpose.msra.mxu0 %v719
    %731 = vmatprep.subr.bf16.mxu0 0
    %732 = vmatpush1.bf16.xpose.msra.mxu0 %v716
    %733 = vmatprep.subr.bf16.mxu0 0
    %734 = vmatpush1.bf16.xpose.msra.mxu0 %v713
    %735 = vmatprep.subr.bf16.mxu0 0
    %736 = vmatpush1.bf16.xpose.msra.mxu0 %v710
    %737 = vmatprep.subr.bf16.mxu0 0
    %738 = vmatpush2.bf16.xpose.msra.mxu0 0
    %739 = vmatprep.subr.bf16.mxu0 0
    %740 = vmatpush2.bf16.xpose.msra.mxu0 0
    %741 = vmatprep.subr.bf16.mxu0 0
    %742 = vmatpush2.bf16.xpose.msra.mxu0 0
    %743 = vmatprep.subr.bf16.mxu0 0
    %744 = vmatpush2.bf16.xpose.msra.mxu0 0
    %745 = vmatprep.subr.bf16.mxu0 0
    %746 = vmatpush2.bf16.xpose.msra.mxu0 0
    %747 = vmatprep.subr.bf16.mxu0 0
    %748 = vmatpush2.bf16.xpose.msra.mxu0 0
    %749 = vmatprep.subr.bf16.mxu0 0
    %750 = vmatpush2.bf16.xpose.msra.mxu0 0
    %751 = vmatprep.subr.bf16.mxu0 0
    %752 = vmatpush2.bf16.xpose.msra.mxu0 0
    %753 = vmatprep.mubr.bf16.mxu0 0
    %754 = vmatmul.mubr.bf16.gmra.mxu0 %v698
    %v755 = vpop.f32.mrf.mxu0
    %v756 = vadd.f32 0.0, %v755
    %v757 = vpop.f32.mrf.mxu0
    %v758 = vpop.f32.mrf.mxu0
    %v759 = vadd.f32 0.0, %v758
    %v760 = vpop.f32.mrf.mxu0
    %761 = vmatprep.mubr.bf16.mxu0 0
    %762 = vmatmul.mubr.bf16.gmra.mxu0 %v701
    %v763 = vpop.f32.mrf.mxu0
    %v764 = vadd.f32 0.0, %v763
    %v765 = vpop.f32.mrf.mxu0
    %v766 = vpop.f32.mrf.mxu0
    %v767 = vadd.f32 0.0, %v766
    %v768 = vpop.f32.mrf.mxu0
    %769 = vmatprep.mubr.bf16.mxu0 0
    %770 = vmatmul.mubr.bf16.gmra.mxu0 %v704
    %v771 = vpop.f32.mrf.mxu0
    %v772 = vadd.f32 0.0, %v771
    %v773 = vpop.f32.mrf.mxu0
    %v774 = vpop.f32.mrf.mxu0
    %v775 = vadd.f32 0.0, %v774
    %v776 = vpop.f32.mrf.mxu0
    %777 = vmatprep.mubr.bf16.mxu0 0
    %778 = vmatmul.mubr.bf16.gmra.mxu0 %v707
    %v779 = vpop.f32.mrf.mxu0
    %v780 = vadd.f32 0.0, %v779
    %v781 = vpop.f32.mrf.mxu0
    %v782 = vpop.f32.mrf.mxu0
    %v783 = vadd.f32 0.0, %v782
    %v784 = vpop.f32.mrf.mxu0
    %785 = vdwg.mxu0
    %v786 = vmul.f32 %v756, 0.25
    %v787 = vmul.f32 %v759, 0.25
    %v788 = vmul.f32 %v764, 0.25
    %v789 = vmul.f32 %v767, 0.25
    %v790 = vmul.f32 %v772, 0.25
    %v791 = vmul.f32 %v775, 0.25
    %v792 = vmul.f32 %v780, 0.25
    %v793 = vmul.f32 %v783, 0.25
    %v794 = vadd.f32 %v786, %v95
    %v795 = vadd.f32 %v787, %v96
    %v796 = vadd.f32 %v788, %v97
    %v797 = vadd.f32 %v789, %v98
    %v798 = vadd.f32 %v790, %v99
    %v799 = vadd.f32 %v791, %v100
    %v800 = vadd.f32 %v792, %v101
    %v801 = vadd.f32 %v793, %v102
    %v802 = vsel %vm458, %v794, -inf
    %803 = vmax.xlane.f32.xlu0 %v802
    %v804 = vpop.xlane.xlu0 %803
    %v805 = vsel %vm458, %v795, -inf
    %806 = vmax.xlane.f32.xlu0 %v805
    %v807 = vpop.xlane.xlu0 %806
    %v808 = vsel %vm458, %v796, -inf
    %809 = vmax.xlane.f32.xlu0 %v808
    %v810 = vpop.xlane.xlu0 %809
    %v811 = vsel %vm458, %v797, -inf
    %812 = vmax.xlane.f32.xlu0 %v811
    %v813 = vpop.xlane.xlu0 %812
    %v814 = vsel %vm458, %v798, -inf
    %815 = vmax.xlane.f32.xlu0 %v814
    %v816 = vpop.xlane.xlu0 %815
    %v817 = vsel %vm458, %v799, -inf
    %818 = vmax.xlane.f32.xlu0 %v817
    %v819 = vpop.xlane.xlu0 %818
    %v820 = vsel %vm458, %v800, -inf
    %821 = vmax.xlane.f32.xlu0 %v820
    %v822 = vpop.xlane.xlu0 %821
    %v823 = vsel %vm458, %v801, -inf
    %824 = vmax.xlane.f32.xlu0 %v823
    %v825 = vpop.xlane.xlu0 %824
    %v826 = vsub.f32 %v794, %v804
    %v827 = vsub.f32 %v795, %v807
    %v828 = vsub.f32 %v796, %v810
    %v829 = vsub.f32 %v797, %v813
    %v830 = vsub.f32 %v798, %v816
    %v831 = vsub.f32 %v799, %v819
    %v832 = vsub.f32 %v800, %v822
    %v833 = vsub.f32 %v801, %v825
    %v834 = vmul.f32 %v826, 1.442695
    %v835 = vpow.pop %v834
    %v836 = vmul.f32 %v827, 1.442695
    %v837 = vpow.pop %v836
    %v838 = vmul.f32 %v828, 1.442695
    %v839 = vpow.pop %v838
    %v840 = vmul.f32 %v829, 1.442695
    %v841 = vpow.pop %v840
    %v842 = vmul.f32 %v830, 1.442695
    %v843 = vpow.pop %v842
    %v844 = vmul.f32 %v831, 1.442695
    %v845 = vpow.pop %v844
    %v846 = vmul.f32 %v832, 1.442695
    %v847 = vpow.pop %v846
    %v848 = vmul.f32 %v833, 1.442695
    %v849 = vpow.pop %v848
    %v850 = vsel %vm458, %v835, 0.0
    %851 = vadd.xlane.f32.xlu0 %v850
    %v852 = vpop.xlane.xlu0 %851
    %v853 = vsel %vm458, %v837, 0.0
    %854 = vadd.xlane.f32.xlu0 %v853
    %v855 = vpop.xlane.xlu0 %854
    %v856 = vsel %vm458, %v839, 0.0
    %857 = vadd.xlane.f32.xlu0 %v856
    %v858 = vpop.xlane.xlu0 %857
    %v859 = vsel %vm458, %v841, 0.0
    %860 = vadd.xlane.f32.xlu0 %v859
    %v861 = vpop.xlane.xlu0 %860
    %v862 = vsel %vm458, %v843, 0.0
    %863 = vadd.xlane.f32.xlu0 %v862
    %v864 = vpop.xlane.xlu0 %863
    %v865 = vsel %vm458, %v845, 0.0
    %866 = vadd.xlane.f32.xlu0 %v865
    %v867 = vpop.xlane.xlu0 %866
    %v868 = vsel %vm458, %v847, 0.0
    %869 = vadd.xlane.f32.xlu0 %v868
    %v870 = vpop.xlane.xlu0 %869
    %v871 = vsel %vm458, %v849, 0.0
    %872 = vadd.xlane.f32.xlu0 %v871
    %v873 = vpop.xlane.xlu0 %872
    %v874 = vrcp.pop %v852
    %v875 = vrcp.pop %v855
    %v876 = vrcp.pop %v858
    %v877 = vrcp.pop %v861
    %v878 = vrcp.pop %v864
    %v879 = vrcp.pop %v867
    %v880 = vrcp.pop %v870
    %v881 = vrcp.pop %v873
    %v882 = vmul.f32 %v835, %v874
    %v883 = vmul.f32 %v837, %v875
    %v884 = vmul.f32 %v839, %v876
    %v885 = vmul.f32 %v841, %v877
    %v886 = vmul.f32 %v843, %v878
    %v887 = vmul.f32 %v845, %v879
    %v888 = vmul.f32 %v847, %v880
    %v889 = vmul.f32 %v849, %v881
    %v890 = vpack.c.bf16 %v883, %v882
    %v891 = vpack.c.bf16 %v885, %v884
    %v892 = vpack.c.bf16 %v887, %v886
    %v893 = vpack.c.bf16 %v889, %v888
    %894 = vrot.lane.b32.xlu0 %v336, 48
    %v895 = vpop.permute.xlu0 %894
    %896 = vrot.lane.b32.xlu0 %v337, 48
    %v897 = vpop.permute.xlu0 %896
    %898 = vrot.lane.b32.xlu0 %v338, 48
    %v899 = vpop.permute.xlu0 %898
    %900 = vrot.lane.b32.xlu0 %v339, 48
    %v901 = vpop.permute.xlu0 %900
    %v907 = vsel %vm458, %v890, 0
    %v910 = vsel %vm458, %v891, 0
    %v913 = vsel %vm458, %v892, 0
    %v916 = vsel %vm458, %v893, 0
    %918 = vmatprep.subr.bf16.mxu0 0
    %919 = vmatpush1.bf16.msra.mxu0 0
    %920 = vmatprep.subr.bf16.mxu0 0
    %921 = vmatpush1.bf16.msra.mxu0 0
    %922 = vmatprep.subr.bf16.mxu0 0
    %923 = vmatpush1.bf16.msra.mxu0 0
    %924 = vmatprep.subr.bf16.mxu0 0
    %925 = vmatpush1.bf16.msra.mxu0 0
    %926 = vmatprep.subr.bf16.mxu0 0
    %927 = vmatpush1.bf16.msra.mxu0 %v901
    %928 = vmatprep.subr.bf16.mxu0 0
    %929 = vmatpush1.bf16.msra.mxu0 %v899
    %930 = vmatprep.subr.bf16.mxu0 0
    %931 = vmatpush1.bf16.msra.mxu0 %v897
    %932 = vmatprep.subr.bf16.mxu0 0
    %933 = vmatpush1.bf16.msra.mxu0 %v895
    %934 = vmatprep.subr.bf16.mxu0 0
    %935 = vmatpush2.bf16.msra.mxu0 0
    %936 = vmatprep.subr.bf16.mxu0 0
    %937 = vmatpush2.bf16.msra.mxu0 0
    %938 = vmatprep.subr.bf16.mxu0 0
    %939 = vmatpush2.bf16.msra.mxu0 0
    %940 = vmatprep.subr.bf16.mxu0 0
    %941 = vmatpush2.bf16.msra.mxu0 0
    %942 = vmatprep.subr.bf16.mxu0 0
    %943 = vmatpush2.bf16.msra.mxu0 0
    %944 = vmatprep.subr.bf16.mxu0 0
    %945 = vmatpush2.bf16.msra.mxu0 0
    %946 = vmatprep.subr.bf16.mxu0 0
    %947 = vmatpush2.bf16.msra.mxu0 0
    %948 = vmatprep.subr.bf16.mxu0 0
    %949 = vmatpush2.bf16.msra.mxu0 0
    %950 = vmatprep.mubr.bf16.mxu0 0
    %951 = vmatmul.mubr.bf16.gmra.mxu0 %v907
    %v952 = vpop.f32.mrf.mxu0
    %v953 = vadd.f32 0.0, %v952
    %v954 = vpop.f32.mrf.mxu0
    %v955 = vpop.f32.mrf.mxu0
    %v956 = vadd.f32 0.0, %v955
    %v957 = vpop.f32.mrf.mxu0
    %958 = vmatprep.mubr.bf16.mxu0 0
    %959 = vmatmul.mubr.bf16.gmra.mxu0 %v910
    %v960 = vpop.f32.mrf.mxu0
    %v961 = vadd.f32 0.0, %v960
    %v962 = vpop.f32.mrf.mxu0
    %v963 = vpop.f32.mrf.mxu0
    %v964 = vadd.f32 0.0, %v963
    %v965 = vpop.f32.mrf.mxu0
    %966 = vmatprep.mubr.bf16.mxu0 0
    %967 = vmatmul.mubr.bf16.gmra.mxu0 %v913
    %v968 = vpop.f32.mrf.mxu0
    %v969 = vadd.f32 0.0, %v968
    %v970 = vpop.f32.mrf.mxu0
    %v971 = vpop.f32.mrf.mxu0
    %v972 = vadd.f32 0.0, %v971
    %v973 = vpop.f32.mrf.mxu0
    %974 = vmatprep.mubr.bf16.mxu0 0
    %975 = vmatmul.mubr.bf16.gmra.mxu0 %v916
    %v976 = vpop.f32.mrf.mxu0
    %v977 = vadd.f32 0.0, %v976
    %v978 = vpop.f32.mrf.mxu0
    %v979 = vpop.f32.mrf.mxu0
    %v980 = vadd.f32 0.0, %v979
    %v981 = vpop.f32.mrf.mxu0
    %982 = vdwg.mxu0
    %v983 = vpack.c.bf16 %v956, %v953
    %v984 = vpack.c.bf16 %v964, %v961
    %v985 = vpack.c.bf16 %v972, %v969
    %v986 = vpack.c.bf16 %v980, %v977
    %v991 = vunpack.c.l.b16 %v983
    %v992 = vunpack.c.h.b16 %v983
    %v993 = vunpack.c.l.b16 %v984
    %v994 = vunpack.c.h.b16 %v984
    %v995 = vunpack.c.l.b16 %v985
    %v996 = vunpack.c.h.b16 %v985
    %v997 = vunpack.c.l.b16 %v986
    %v998 = vunpack.c.h.b16 %v986
    %v999 = vpack.c.b16 %v991, %v991
    %v1000 = vpack.c.b16 %v992, %v992
    %v1001 = vpack.c.b16 %v993, %v993
    %v1002 = vpack.c.b16 %v994, %v994
    %v1003 = vpack.c.b16 %v995, %v995
    %v1004 = vpack.c.b16 %v996, %v996
    %v1005 = vpack.c.b16 %v997, %v997
    %v1006 = vpack.c.b16 %v998, %v998
    %1007 = vrot.lane.b32.xlu0 %v999, 16
    %v1008 = vpop.permute.xlu0 %1007
    %1009 = vrot.lane.b32.xlu0 %v1000, 16
    %v1010 = vpop.permute.xlu0 %1009
    %1011 = vrot.lane.b32.xlu0 %v1001, 16
    %v1012 = vpop.permute.xlu0 %1011
    %1013 = vrot.lane.b32.xlu0 %v1002, 16
    %v1014 = vpop.permute.xlu0 %1013
    %1015 = vrot.lane.b32.xlu0 %v1003, 16
    %v1016 = vpop.permute.xlu0 %1015
    %1017 = vrot.lane.b32.xlu0 %v1004, 16
    %v1018 = vpop.permute.xlu0 %1017
    %1019 = vrot.lane.b32.xlu0 %v1005, 16
    %v1020 = vpop.permute.xlu0 %1019
    %1021 = vrot.lane.b32.xlu0 %v1006, 16
    %v1022 = vpop.permute.xlu0 %1021
    %vm1031 = vcmask 257152
    %1032 = vst.msk [vmem:[#allocation2] sm:$0xf] %vm1031, %v1008
    %1033 = vst.msk [vmem:[#allocation2 + $0x4] sm:$0xf] %vm1031, %v1010
    %1034 = vst.msk [vmem:[#allocation2 + $0x8] sm:$0xf] %vm1031, %v1012
    %1035 = vst.msk [vmem:[#allocation2 + $0xc] sm:$0xf] %vm1031, %v1014
    %1036 = vst.msk [vmem:[#allocation2 + $0x10] sm:$0xf] %vm1031, %v1016
    %1037 = vst.msk [vmem:[#allocation2 + $0x14] sm:$0xf] %vm1031, %v1018
    %1038 = vst.msk [vmem:[#allocation2 + $0x18] sm:$0xf] %vm1031, %v1020
    %1039 = vst.msk [vmem:[#allocation2 + $0x1c] sm:$0xf] %vm1031, %v1022
    %v1040 = vld [vmem:[#allocation2] sm:$0xf]
    %v1041 = vld [vmem:[#allocation2 + $0x4] sm:$0xf]
    %v1042 = vld [vmem:[#allocation2 + $0x8] sm:$0xf]
    %v1043 = vld [vmem:[#allocation2 + $0xc] sm:$0xf]
    %v1044 = vld [vmem:[#allocation2 + $0x10] sm:$0xf]
    %v1045 = vld [vmem:[#allocation2 + $0x14] sm:$0xf]
    %v1046 = vld [vmem:[#allocation2 + $0x18] sm:$0xf]
    %v1047 = vld [vmem:[#allocation2 + $0x1c] sm:$0xf]
    %v1048 = vld [vmem:[#allocation6] sm:$0xf]
    %v1049 = vld [vmem:[#allocation6 + $0x4] sm:$0xf]
    %v1050 = vld [vmem:[#allocation6 + $0x8] sm:$0xf]
    %v1051 = vld [vmem:[#allocation6 + $0xc] sm:$0xf]
    %v1052 = vld [vmem:[%s6] sm:$0x1]
    %v1054 = vlaneseq
    %v1055 = vshrl.u32 %v1054, 7
    %v1056 = vsub.s32 0, %v1055
    %v1057 = vrot.slane %v1052, %v1056
    %v1067 = vunpack.c.l.b16 %v1040
    %v1068 = vunpack.c.l.b16 %v1041
    %v1069 = vunpack.c.l.b16 %v1042
    %v1070 = vunpack.c.l.b16 %v1043
    %v1071 = vunpack.c.l.b16 %v1044
    %v1072 = vunpack.c.l.b16 %v1045
    %v1073 = vunpack.c.l.b16 %v1046
    %v1074 = vunpack.c.l.b16 %v1047
    %v1075 = vpack.c.b16 %v1068, %v1067
    %v1076 = vpack.c.b16 %v1070, %v1069
    %v1077 = vpack.c.b16 %v1072, %v1071
    %v1078 = vpack.c.b16 %v1074, %v1073
    %v1083 = vunpack.c.l.b16 %v1048
    %v1084 = vunpack.c.l.b16 %v1049
    %v1085 = vunpack.c.l.b16 %v1050
    %v1086 = vunpack.c.l.b16 %v1051
    %v1087 = vpack.c.b16 %v1084, %v1083
    %v1088 = vpack.c.b16 %v1086, %v1085
    %v1092 = vsel %vm103, %v1075, 0
    %v1095 = vsel %vm103, %v1076, 0
    %v1098 = vsel %vm103, %v1077, 0
    %v1101 = vsel %vm103, %v1078, 0
    %1103 = vmatprep.subr.bf16.mxu0 0
    %1104 = vmatpush1.bf16.msra.mxu0 0
    %1105 = vmatprep.subr.bf16.mxu0 0
    %1106 = vmatpush1.bf16.msra.mxu0 0
    %1107 = vmatprep.subr.bf16.mxu0 0
    %1108 = vmatpush1.bf16.msra.mxu0 0
    %1109 = vmatprep.subr.bf16.mxu0 0
    %1110 = vmatpush1.bf16.msra.mxu0 0
    %1111 = vmatprep.subr.bf16.mxu0 0
    %1112 = vmatpush1.bf16.msra.mxu0 0
    %1113 = vmatprep.subr.bf16.mxu0 0
    %1114 = vmatpush1.bf16.msra.mxu0 0
    %1115 = vmatprep.subr.bf16.mxu0 0
    %1116 = vmatpush1.bf16.msra.mxu0 %v1088
    %1117 = vmatprep.subr.bf16.mxu0 0
    %1118 = vmatpush1.bf16.msra.mxu0 %v1087
    %1119 = vmatprep.subr.bf16.mxu0 0
    %1120 = vmatpush2.bf16.msra.mxu0 0
    %1121 = vmatprep.subr.bf16.mxu0 0
    %1122 = vmatpush2.bf16.msra.mxu0 0
    %1123 = vmatprep.subr.bf16.mxu0 0
    %1124 = vmatpush2.bf16.msra.mxu0 0
    %1125 = vmatprep.subr.bf16.mxu0 0
    %1126 = vmatpush2.bf16.msra.mxu0 0
    %1127 = vmatprep.subr.bf16.mxu0 0
    %1128 = vmatpush2.bf16.msra.mxu0 0
    %1129 = vmatprep.subr.bf16.mxu0 0
    %1130 = vmatpush2.bf16.msra.mxu0 0
    %1131 = vmatprep.subr.bf16.mxu0 0
    %1132 = vmatpush2.bf16.msra.mxu0 0
    %1133 = vmatprep.subr.bf16.mxu0 0
    %1134 = vmatpush2.bf16.msra.mxu0 0
    %1135 = vmatprep.mubr.bf16.mxu0 0
    %1136 = vmatmul.mubr.bf16.gmra.mxu0 %v1092
    %v1137 = vpop.f32.mrf.mxu0
    %v1138 = vadd.f32 %v1057, %v1137
    %v1139 = vpop.f32.mrf.mxu0
    %v1140 = vpop.f32.mrf.mxu0
    %v1141 = vadd.f32 %v1057, %v1140
    %v1142 = vpop.f32.mrf.mxu0
    %1143 = vmatprep.mubr.bf16.mxu0 0
    %1144 = vmatmul.mubr.bf16.gmra.mxu0 %v1095
    %v1145 = vpop.f32.mrf.mxu0
    %v1146 = vadd.f32 %v1057, %v1145
    %v1147 = vpop.f32.mrf.mxu0
    %v1148 = vpop.f32.mrf.mxu0
    %v1149 = vadd.f32 %v1057, %v1148
    %v1150 = vpop.f32.mrf.mxu0
    %1151 = vmatprep.mubr.bf16.mxu0 0
    %1152 = vmatmul.mubr.bf16.gmra.mxu0 %v1098
    %v1153 = vpop.f32.mrf.mxu0
    %v1154 = vadd.f32 %v1057, %v1153
    %v1155 = vpop.f32.mrf.mxu0
    %v1156 = vpop.f32.mrf.mxu0
    %v1157 = vadd.f32 %v1057, %v1156
    %v1158 = vpop.f32.mrf.mxu0
    %1159 = vmatprep.mubr.bf16.mxu0 0
    %1160 = vmatmul.mubr.bf16.gmra.mxu0 %v1101
    %v1161 = vpop.f32.mrf.mxu0
    %v1162 = vadd.f32 %v1057, %v1161
    %v1163 = vpop.f32.mrf.mxu0
    %v1164 = vpop.f32.mrf.mxu0
    %v1165 = vadd.f32 %v1057, %v1164
    %v1166 = vpop.f32.mrf.mxu0
    %1167 = vdwg.mxu0
    %v1168 = vadd.f32 %v87, %v1138
    %v1169 = vadd.f32 %v88, %v1141
    %v1170 = vadd.f32 %v89, %v1146
    %v1171 = vadd.f32 %v90, %v1149
    %v1172 = vadd.f32 %v91, %v1154
    %v1173 = vadd.f32 %v92, %v1157
    %v1174 = vadd.f32 %v93, %v1162
    %v1175 = vadd.f32 %v94, %v1165
    %v1176 = vsel %vm103, %v1168, 0.0
    %1177 = vadd.xlane.f32.xlu0 %v1176
    %v1178 = vpop.xlane.xlu0 %1177
    %v1179 = vsel %vm103, %v1169, 0.0
    %1180 = vadd.xlane.f32.xlu0 %v1179
    %v1181 = vpop.xlane.xlu0 %1180
    %v1182 = vsel %vm103, %v1170, 0.0
    %1183 = vadd.xlane.f32.xlu0 %v1182
    %v1184 = vpop.xlane.xlu0 %1183
    %v1185 = vsel %vm103, %v1171, 0.0
    %1186 = vadd.xlane.f32.xlu0 %v1185
    %v1187 = vpop.xlane.xlu0 %1186
    %v1188 = vsel %vm103, %v1172, 0.0
    %1189 = vadd.xlane.f32.xlu0 %v1188
    %v1190 = vpop.xlane.xlu0 %1189
    %v1191 = vsel %vm103, %v1173, 0.0
    %1192 = vadd.xlane.f32.xlu0 %v1191
    %v1193 = vpop.xlane.xlu0 %1192
    %v1194 = vsel %vm103, %v1174, 0.0
    %1195 = vadd.xlane.f32.xlu0 %v1194
    %v1196 = vpop.xlane.xlu0 %1195
    %v1197 = vsel %vm103, %v1175, 0.0
    %1198 = vadd.xlane.f32.xlu0 %v1197
    %v1199 = vpop.xlane.xlu0 %1198
    %v1200 = vmul.f32 %v1178, %v128
    %v1201 = vmul.f32 %v1181, %v128
    %v1202 = vmul.f32 %v1184, %v128
    %v1203 = vmul.f32 %v1187, %v128
    %v1204 = vmul.f32 %v1190, %v128
    %v1205 = vmul.f32 %v1193, %v128
    %v1206 = vmul.f32 %v1196, %v128
    %v1207 = vmul.f32 %v1199, %v128
    %v1208 = vsub.f32 %v1168, %v1200
    %v1209 = vsub.f32 %v1169, %v1201
    %v1210 = vsub.f32 %v1170, %v1202
    %v1211 = vsub.f32 %v1171, %v1203
    %v1212 = vsub.f32 %v1172, %v1204
    %v1213 = vsub.f32 %v1173, %v1205
    %v1214 = vsub.f32 %v1174, %v1206
    %v1215 = vsub.f32 %v1175, %v1207
    %v1216 = vmul.f32 %v1208, %v1208
    %v1217 = vmul.f32 %v1209, %v1209
    %v1218 = vmul.f32 %v1210, %v1210
    %v1219 = vmul.f32 %v1211, %v1211
    %v1220 = vmul.f32 %v1212, %v1212
    %v1221 = vmul.f32 %v1213, %v1213
    %v1222 = vmul.f32 %v1214, %v1214
    %v1223 = vmul.f32 %v1215, %v1215
    %v1224 = vsel %vm103, %v1216, 0.0
    %1225 = vadd.xlane.f32.xlu0 %v1224
    %v1226 = vpop.xlane.xlu0 %1225
    %v1227 = vsel %vm103, %v1217, 0.0
    %1228 = vadd.xlane.f32.xlu0 %v1227
    %v1229 = vpop.xlane.xlu0 %1228
    %v1230 = vsel %vm103, %v1218, 0.0
    %1231 = vadd.xlane.f32.xlu0 %v1230
    %v1232 = vpop.xlane.xlu0 %1231
    %v1233 = vsel %vm103, %v1219, 0.0
    %1234 = vadd.xlane.f32.xlu0 %v1233
    %v1235 = vpop.xlane.xlu0 %1234
    %v1236 = vsel %vm103, %v1220, 0.0
    %1237 = vadd.xlane.f32.xlu0 %v1236
    %v1238 = vpop.xlane.xlu0 %1237
    %v1239 = vsel %vm103, %v1221, 0.0
    %1240 = vadd.xlane.f32.xlu0 %v1239
    %v1241 = vpop.xlane.xlu0 %1240
    %v1242 = vsel %vm103, %v1222, 0.0
    %1243 = vadd.xlane.f32.xlu0 %v1242
    %v1244 = vpop.xlane.xlu0 %1243
    %v1245 = vsel %vm103, %v1223, 0.0
    %1246 = vadd.xlane.f32.xlu0 %v1245
    %v1247 = vpop.xlane.xlu0 %1246
    %v1248 = vmul.f32 %v1226, %v128
    %v1249 = vmul.f32 %v1229, %v128
    %v1250 = vmul.f32 %v1232, %v128
    %v1251 = vmul.f32 %v1235, %v128
    %v1252 = vmul.f32 %v1238, %v128
    %v1253 = vmul.f32 %v1241, %v128
    %v1254 = vmul.f32 %v1244, %v128
    %v1255 = vmul.f32 %v1247, %v128
    %v1256 = vadd.f32 %v1248, 1e-05
    %v1257 = vadd.f32 %v1249, 1e-05
    %v1258 = vadd.f32 %v1250, 1e-05
    %v1259 = vadd.f32 %v1251, 1e-05
    %v1260 = vadd.f32 %v1252, 1e-05
    %v1261 = vadd.f32 %v1253, 1e-05
    %v1262 = vadd.f32 %v1254, 1e-05
    %v1263 = vadd.f32 %v1255, 1e-05
    %v1264 = vrsqrt.pop %v1256
    %v1265 = vrsqrt.pop %v1257
    %v1266 = vrsqrt.pop %v1258
    %v1267 = vrsqrt.pop %v1259
    %v1268 = vrsqrt.pop %v1260
    %v1269 = vrsqrt.pop %v1261
    %v1270 = vrsqrt.pop %v1262
    %v1271 = vrsqrt.pop %v1263
    %v1272 = vmul.f32 %v1208, %v1264
    %v1273 = vmul.f32 %v1209, %v1265
    %v1274 = vmul.f32 %v1210, %v1266
    %v1275 = vmul.f32 %v1211, %v1267
    %v1276 = vmul.f32 %v1212, %v1268
    %v1277 = vmul.f32 %v1213, %v1269
    %v1278 = vmul.f32 %v1214, %v1270
    %v1279 = vmul.f32 %v1215, %v1271
    %v1280 = vld [vmem:[%s7] sm:$0x1]
    %v1282 = vlaneseq
    %v1283 = vshrl.u32 %v1282, 7
    %v1284 = vsub.s32 0, %v1283
    %v1285 = vrot.slane %v1280, %v1284
    %v1287 = vmul.f32 %v1272, %v1285
    %v1288 = vmul.f32 %v1273, %v1285
    %v1289 = vmul.f32 %v1274, %v1285
    %v1290 = vmul.f32 %v1275, %v1285
    %v1291 = vmul.f32 %v1276, %v1285
    %v1292 = vmul.f32 %v1277, %v1285
    %v1293 = vmul.f32 %v1278, %v1285
    %v1294 = vmul.f32 %v1279, %v1285
    %v1295 = vld [vmem:[%s8] sm:$0x1]
    %v1297 = vlaneseq
    %v1298 = vshrl.u32 %v1297, 7
    %v1299 = vsub.s32 0, %v1298
    %v1300 = vrot.slane %v1295, %v1299
    %v1302 = vadd.f32 %v1287, %v1300
    %v1303 = vadd.f32 %v1288, %v1300
    %v1304 = vadd.f32 %v1289, %v1300
    %v1305 = vadd.f32 %v1290, %v1300
    %v1306 = vadd.f32 %v1291, %v1300
    %v1307 = vadd.f32 %v1292, %v1300
    %v1308 = vadd.f32 %v1293, %v1300
    %v1309 = vadd.f32 %v1294, %v1300
    %v1310 = vpack.c.bf16 %v1303, %v1302
    %v1311 = vpack.c.bf16 %v1305, %v1304
    %v1312 = vpack.c.bf16 %v1307, %v1306
    %v1313 = vpack.c.bf16 %v1309, %v1308
    %v1314 = vld [vmem:[#allocation8] sm:$0xf]
    %v1315 = vld [vmem:[#allocation8 + $0x4] sm:$0xf]
    %v1316 = vld [vmem:[#allocation8 + $0x8] sm:$0xf]
    %v1317 = vld [vmem:[#allocation8 + $0xc] sm:$0xf]
    %v1318 = vld [vmem:[%s10] sm:$0x1]
    %v1320 = vlaneseq
    %v1321 = vshrl.u32 %v1320, 7
    %v1322 = vsub.s32 0, %v1321
    %v1323 = vrot.slane %v1318, %v1322
    %v1329 = vunpack.c.l.b16 %v1314
    %v1330 = vunpack.c.l.b16 %v1315
    %v1331 = vunpack.c.l.b16 %v1316
    %v1332 = vunpack.c.l.b16 %v1317
    %v1333 = vpack.c.b16 %v1330, %v1329
    %v1334 = vpack.c.b16 %v1332, %v1331
    %v1338 = vsel %vm103, %v1310, 0
    %v1341 = vsel %vm103, %v1311, 0
    %v1344 = vsel %vm103, %v1312, 0
    %v1347 = vsel %vm103, %v1313, 0
    %1349 = vmatprep.subr.bf16.mxu0 0
    %1350 = vmatpush1.bf16.msra.mxu0 0
    %1351 = vmatprep.subr.bf16.mxu0 0
    %1352 = vmatpush1.bf16.msra.mxu0 0
    %1353 = vmatprep.subr.bf16.mxu0 0
    %1354 = vmatpush1.bf16.msra.mxu0 0
    %1355 = vmatprep.subr.bf16.mxu0 0
    %1356 = vmatpush1.bf16.msra.mxu0 0
    %1357 = vmatprep.subr.bf16.mxu0 0
    %1358 = vmatpush1.bf16.msra.mxu0 0
    %1359 = vmatprep.subr.bf16.mxu0 0
    %1360 = vmatpush1.bf16.msra.mxu0 0
    %1361 = vmatprep.subr.bf16.mxu0 0
    %1362 = vmatpush1.bf16.msra.mxu0 %v1334
    %1363 = vmatprep.subr.bf16.mxu0 0
    %1364 = vmatpush1.bf16.msra.mxu0 %v1333
    %1365 = vmatprep.subr.bf16.mxu0 0
    %1366 = vmatpush2.bf16.msra.mxu0 0
    %1367 = vmatprep.subr.bf16.mxu0 0
    %1368 = vmatpush2.bf16.msra.mxu0 0
    %1369 = vmatprep.subr.bf16.mxu0 0
    %1370 = vmatpush2.bf16.msra.mxu0 0
    %1371 = vmatprep.subr.bf16.mxu0 0
    %1372 = vmatpush2.bf16.msra.mxu0 0
    %1373 = vmatprep.subr.bf16.mxu0 0
    %1374 = vmatpush2.bf16.msra.mxu0 0
    %1375 = vmatprep.subr.bf16.mxu0 0
    %1376 = vmatpush2.bf16.msra.mxu0 0
    %1377 = vmatprep.subr.bf16.mxu0 0
    %1378 = vmatpush2.bf16.msra.mxu0 0
    %1379 = vmatprep.subr.bf16.mxu0 0
    %1380 = vmatpush2.bf16.msra.mxu0 0
    %1381 = vmatprep.mubr.bf16.mxu0 0
    %1382 = vmatmul.mubr.bf16.gmra.mxu0 %v1338
    %v1383 = vpop.f32.mrf.mxu0
    %v1384 = vadd.f32 %v1323, %v1383
    %v1385 = vpop.f32.mrf.mxu0
    %v1386 = vpop.f32.mrf.mxu0
    %v1387 = vadd.f32 %v1323, %v1386
    %v1388 = vpop.f32.mrf.mxu0
    %1389 = vmatprep.mubr.bf16.mxu0 0
    %1390 = vmatmul.mubr.bf16.gmra.mxu0 %v1341
    %v1391 = vpop.f32.mrf.mxu0
    %v1392 = vadd.f32 %v1323, %v1391
    %v1393 = vpop.f32.mrf.mxu0
    %v1394 = vpop.f32.mrf.mxu0
    %v1395 = vadd.f32 %v1323, %v1394
    %v1396 = vpop.f32.mrf.mxu0
    %1397 = vmatprep.mubr.bf16.mxu0 0
    %1398 = vmatmul.mubr.bf16.gmra.mxu0 %v1344
    %v1399 = vpop.f32.mrf.mxu0
    %v1400 = vadd.f32 %v1323, %v1399
    %v1401 = vpop.f32.mrf.mxu0
    %v1402 = vpop.f32.mrf.mxu0
    %v1403 = vadd.f32 %v1323, %v1402
    %v1404 = vpop.f32.mrf.mxu0
    %1405 = vmatprep.mubr.bf16.mxu0 0
    %1406 = vmatmul.mubr.bf16.gmra.mxu0 %v1347
    %v1407 = vpop.f32.mrf.mxu0
    %v1408 = vadd.f32 %v1323, %v1407
    %v1409 = vpop.f32.mrf.mxu0
    %v1410 = vpop.f32.mrf.mxu0
    %v1411 = vadd.f32 %v1323, %v1410
    %v1412 = vpop.f32.mrf.mxu0
    %1413 = vdwg.mxu0
    %v1414 = vxor.u32 %v1384, 2147483648
    %v1415 = vxor.u32 %v1387, 2147483648
    %v1416 = vxor.u32 %v1392, 2147483648
    %v1417 = vxor.u32 %v1395, 2147483648
    %v1418 = vxor.u32 %v1400, 2147483648
    %v1419 = vxor.u32 %v1403, 2147483648
    %v1420 = vxor.u32 %v1408, 2147483648
    %v1421 = vxor.u32 %v1411, 2147483648
    %v1422 = vmul.f32 %v1414, 1.442695
    %v1423 = vpow.pop %v1422
    %v1424 = vmul.f32 %v1415, 1.442695
    %v1425 = vpow.pop %v1424
    %v1426 = vmul.f32 %v1416, 1.442695
    %v1427 = vpow.pop %v1426
    %v1428 = vmul.f32 %v1417, 1.442695
    %v1429 = vpow.pop %v1428
    %v1430 = vmul.f32 %v1418, 1.442695
    %v1431 = vpow.pop %v1430
    %v1432 = vmul.f32 %v1419, 1.442695
    %v1433 = vpow.pop %v1432
    %v1434 = vmul.f32 %v1420, 1.442695
    %v1435 = vpow.pop %v1434
    %v1436 = vmul.f32 %v1421, 1.442695
    %v1437 = vpow.pop %v1436
    %v1438 = vadd.f32 %v1423, 1.0
    %v1439 = vadd.f32 %v1425, 1.0
    %v1440 = vadd.f32 %v1427, 1.0
    %v1441 = vadd.f32 %v1429, 1.0
    %v1442 = vadd.f32 %v1431, 1.0
    %v1443 = vadd.f32 %v1433, 1.0
    %v1444 = vadd.f32 %v1435, 1.0
    %v1445 = vadd.f32 %v1437, 1.0
    %v1446 = vrcp.pop %v1438
    %v1447 = vmul.f32 1.0, %v1446
    %v1448 = vrcp.pop %v1439
    %v1449 = vmul.f32 1.0, %v1448
    %v1450 = vrcp.pop %v1440
    %v1451 = vmul.f32 1.0, %v1450
    %v1452 = vrcp.pop %v1441
    %v1453 = vmul.f32 1.0, %v1452
    %v1454 = vrcp.pop %v1442
    %v1455 = vmul.f32 1.0, %v1454
    %v1456 = vrcp.pop %v1443
    %v1457 = vmul.f32 1.0, %v1456
    %v1458 = vrcp.pop %v1444
    %v1459 = vmul.f32 1.0, %v1458
    %v1460 = vrcp.pop %v1445
    %v1461 = vmul.f32 1.0, %v1460
    %v1462 = vmul.f32 %v1384, %v1447
    %v1463 = vmul.f32 %v1387, %v1449
    %v1464 = vmul.f32 %v1392, %v1451
    %v1465 = vmul.f32 %v1395, %v1453
    %v1466 = vmul.f32 %v1400, %v1455
    %v1467 = vmul.f32 %v1403, %v1457
    %v1468 = vmul.f32 %v1408, %v1459
    %v1469 = vmul.f32 %v1411, %v1461
    %v1470 = vpack.c.bf16 %v1463, %v1462
    %v1471 = vpack.c.bf16 %v1465, %v1464
    %v1472 = vpack.c.bf16 %v1467, %v1466
    %v1473 = vpack.c.bf16 %v1469, %v1468
    %v1474 = vld [vmem:[%s11] sm:$0xf]
    %v1475 = vld [vmem:[%s11 + $0x4] sm:$0xf]
    %v1476 = vld [vmem:[%s11 + $0x8] sm:$0xf]
    %v1477 = vld [vmem:[%s11 + $0xc] sm:$0xf]
    %v1478 = vld [vmem:[%s11 + $0x10] sm:$0xf]
    %v1479 = vld [vmem:[%s11 + $0x14] sm:$0xf]
    %v1480 = vld [vmem:[%s11 + $0x18] sm:$0xf]
    %v1481 = vld [vmem:[%s11 + $0x1c] sm:$0xf]
    %v1482 = vld [vmem:[%s12] sm:$0x1]
    %v1484 = vlaneseq
    %v1485 = vshrl.u32 %v1484, 7
    %v1486 = vsub.s32 0, %v1485
    %v1487 = vrot.slane %v1482, %v1486
    %v1497 = vunpack.c.l.b16 %v1474
    %v1498 = vunpack.c.l.b16 %v1475
    %v1499 = vunpack.c.l.b16 %v1476
    %v1500 = vunpack.c.l.b16 %v1477
    %v1501 = vunpack.c.l.b16 %v1478
    %v1502 = vunpack.c.l.b16 %v1479
    %v1503 = vunpack.c.l.b16 %v1480
    %v1504 = vunpack.c.l.b16 %v1481
    %v1505 = vpack.c.b16 %v1498, %v1497
    %v1506 = vpack.c.b16 %v1500, %v1499
    %v1507 = vpack.c.b16 %v1502, %v1501
    %v1508 = vpack.c.b16 %v1504, %v1503
    %v1514 = vsel %vm458, %v1470, 0
    %v1517 = vsel %vm458, %v1471, 0
    %v1520 = vsel %vm458, %v1472, 0
    %v1523 = vsel %vm458, %v1473, 0
    %1525 = vmatprep.subr.bf16.mxu0 0
    %1526 = vmatpush1.bf16.msra.mxu0 0
    %1527 = vmatprep.subr.bf16.mxu0 0
    %1528 = vmatpush1.bf16.msra.mxu0 0
    %1529 = vmatprep.subr.bf16.mxu0 0
    %1530 = vmatpush1.bf16.msra.mxu0 0
    %1531 = vmatprep.subr.bf16.mxu0 0
    %1532 = vmatpush1.bf16.msra.mxu0 0
    %1533 = vmatprep.subr.bf16.mxu0 0
    %1534 = vmatpush1.bf16.msra.mxu0 %v1508
    %1535 = vmatprep.subr.bf16.mxu0 0
    %1536 = vmatpush1.bf16.msra.mxu0 %v1507
    %1537 = vmatprep.subr.bf16.mxu0 0
    %1538 = vmatpush1.bf16.msra.mxu0 %v1506
    %1539 = vmatprep.subr.bf16.mxu0 0
    %1540 = vmatpush1.bf16.msra.mxu0 %v1505
    %1541 = vmatprep.subr.bf16.mxu0 0
    %1542 = vmatpush2.bf16.msra.mxu0 0
    %1543 = vmatprep.subr.bf16.mxu0 0
    %1544 = vmatpush2.bf16.msra.mxu0 0
    %1545 = vmatprep.subr.bf16.mxu0 0
    %1546 = vmatpush2.bf16.msra.mxu0 0
    %1547 = vmatprep.subr.bf16.mxu0 0
    %1548 = vmatpush2.bf16.msra.mxu0 0
    %1549 = vmatprep.subr.bf16.mxu0 0
    %1550 = vmatpush2.bf16.msra.mxu0 0
    %1551 = vmatprep.subr.bf16.mxu0 0
    %1552 = vmatpush2.bf16.msra.mxu0 0
    %1553 = vmatprep.subr.bf16.mxu0 0
    %1554 = vmatpush2.bf16.msra.mxu0 0
    %1555 = vmatprep.subr.bf16.mxu0 0
    %1556 = vmatpush2.bf16.msra.mxu0 0
    %1557 = vmatprep.mubr.bf16.mxu0 0
    %1558 = vmatmul.mubr.bf16.gmra.mxu0 %v1514
    %v1559 = vpop.f32.mrf.mxu0
    %v1560 = vadd.f32 %v1487, %v1559
    %v1561 = vpop.f32.mrf.mxu0
    %v1562 = vpop.f32.mrf.mxu0
    %v1563 = vadd.f32 %v1487, %v1562
    %v1564 = vpop.f32.mrf.mxu0
    %1565 = vmatprep.mubr.bf16.mxu0 0
    %1566 = vmatmul.mubr.bf16.gmra.mxu0 %v1517
    %v1567 = vpop.f32.mrf.mxu0
    %v1568 = vadd.f32 %v1487, %v1567
    %v1569 = vpop.f32.mrf.mxu0
    %v1570 = vpop.f32.mrf.mxu0
    %v1571 = vadd.f32 %v1487, %v1570
    %v1572 = vpop.f32.mrf.mxu0
    %1573 = vmatprep.mubr.bf16.mxu0 0
    %1574 = vmatmul.mubr.bf16.gmra.mxu0 %v1520
    %v1575 = vpop.f32.mrf.mxu0
    %v1576 = vadd.f32 %v1487, %v1575
    %v1577 = vpop.f32.mrf.mxu0
    %v1578 = vpop.f32.mrf.mxu0
    %v1579 = vadd.f32 %v1487, %v1578
    %v1580 = vpop.f32.mrf.mxu0
    %1581 = vmatprep.mubr.bf16.mxu0 0
    %1582 = vmatmul.mubr.bf16.gmra.mxu0 %v1523
    %v1583 = vpop.f32.mrf.mxu0
    %v1584 = vadd.f32 %v1487, %v1583
    %v1585 = vpop.f32.mrf.mxu0
    %v1586 = vpop.f32.mrf.mxu0
    %v1587 = vadd.f32 %v1487, %v1586
    %v1588 = vpop.f32.mrf.mxu0
    %1589 = vdwg.mxu0
    %v1590 = vadd.f32 %v1168, %v1560
    %v1591 = vadd.f32 %v1169, %v1563
    %v1592 = vadd.f32 %v1170, %v1568
    %v1593 = vadd.f32 %v1171, %v1571
    %v1594 = vadd.f32 %v1172, %v1576
    %v1595 = vadd.f32 %v1173, %v1579
    %v1596 = vadd.f32 %v1174, %v1584
    %v1597 = vadd.f32 %v1175, %v1587
    %v1598 = vsel %vm103, %v1590, 0.0
    %1599 = vadd.xlane.f32.xlu0 %v1598
    %v1600 = vpop.xlane.xlu0 %1599
    %v1601 = vsel %vm103, %v1591, 0.0
    %1602 = vadd.xlane.f32.xlu0 %v1601
    %v1603 = vpop.xlane.xlu0 %1602
    %v1604 = vsel %vm103, %v1592, 0.0
    %1605 = vadd.xlane.f32.xlu0 %v1604
    %v1606 = vpop.xlane.xlu0 %1605
    %v1607 = vsel %vm103, %v1593, 0.0
    %1608 = vadd.xlane.f32.xlu0 %v1607
    %v1609 = vpop.xlane.xlu0 %1608
    %v1610 = vsel %vm103, %v1594, 0.0
    %1611 = vadd.xlane.f32.xlu0 %v1610
    %v1612 = vpop.xlane.xlu0 %1611
    %v1613 = vsel %vm103, %v1595, 0.0
    %1614 = vadd.xlane.f32.xlu0 %v1613
    %v1615 = vpop.xlane.xlu0 %1614
    %v1616 = vsel %vm103, %v1596, 0.0
    %1617 = vadd.xlane.f32.xlu0 %v1616
    %v1618 = vpop.xlane.xlu0 %1617
    %v1619 = vsel %vm103, %v1597, 0.0
    %1620 = vadd.xlane.f32.xlu0 %v1619
    %v1621 = vpop.xlane.xlu0 %1620
    %v1622 = vmul.f32 %v1600, %v128
    %v1623 = vmul.f32 %v1603, %v128
    %v1624 = vmul.f32 %v1606, %v128
    %v1625 = vmul.f32 %v1609, %v128
    %v1626 = vmul.f32 %v1612, %v128
    %v1627 = vmul.f32 %v1615, %v128
    %v1628 = vmul.f32 %v1618, %v128
    %v1629 = vmul.f32 %v1621, %v128
    %v1630 = vsub.f32 %v1590, %v1622
    %v1631 = vsub.f32 %v1591, %v1623
    %v1632 = vsub.f32 %v1592, %v1624
    %v1633 = vsub.f32 %v1593, %v1625
    %v1634 = vsub.f32 %v1594, %v1626
    %v1635 = vsub.f32 %v1595, %v1627
    %v1636 = vsub.f32 %v1596, %v1628
    %v1637 = vsub.f32 %v1597, %v1629
    %v1638 = vmul.f32 %v1630, %v1630
    %v1639 = vmul.f32 %v1631, %v1631
    %v1640 = vmul.f32 %v1632, %v1632
    %v1641 = vmul.f32 %v1633, %v1633
    %v1642 = vmul.f32 %v1634, %v1634
    %v1643 = vmul.f32 %v1635, %v1635
    %v1644 = vmul.f32 %v1636, %v1636
    %v1645 = vmul.f32 %v1637, %v1637
    %v1646 = vsel %vm103, %v1638, 0.0
    %1647 = vadd.xlane.f32.xlu0 %v1646
    %v1648 = vpop.xlane.xlu0 %1647
    %v1649 = vsel %vm103, %v1639, 0.0
    %1650 = vadd.xlane.f32.xlu0 %v1649
    %v1651 = vpop.xlane.xlu0 %1650
    %v1652 = vsel %vm103, %v1640, 0.0
    %1653 = vadd.xlane.f32.xlu0 %v1652
    %v1654 = vpop.xlane.xlu0 %1653
    %v1655 = vsel %vm103, %v1641, 0.0
    %1656 = vadd.xlane.f32.xlu0 %v1655
    %v1657 = vpop.xlane.xlu0 %1656
    %v1658 = vsel %vm103, %v1642, 0.0
    %1659 = vadd.xlane.f32.xlu0 %v1658
    %v1660 = vpop.xlane.xlu0 %1659
    %v1661 = vsel %vm103, %v1643, 0.0
    %1662 = vadd.xlane.f32.xlu0 %v1661
    %v1663 = vpop.xlane.xlu0 %1662
    %v1664 = vsel %vm103, %v1644, 0.0
    %1665 = vadd.xlane.f32.xlu0 %v1664
    %v1666 = vpop.xlane.xlu0 %1665
    %v1667 = vsel %vm103, %v1645, 0.0
    %1668 = vadd.xlane.f32.xlu0 %v1667
    %v1669 = vpop.xlane.xlu0 %1668
    %v1670 = vmul.f32 %v1648, %v128
    %v1671 = vmul.f32 %v1651, %v128
    %v1672 = vmul.f32 %v1654, %v128
    %v1673 = vmul.f32 %v1657, %v128
    %v1674 = vmul.f32 %v1660, %v128
    %v1675 = vmul.f32 %v1663, %v128
    %v1676 = vmul.f32 %v1666, %v128
    %v1677 = vmul.f32 %v1669, %v128
    %v1678 = vadd.f32 %v1670, 1e-05
    %v1679 = vadd.f32 %v1671, 1e-05
    %v1680 = vadd.f32 %v1672, 1e-05
    %v1681 = vadd.f32 %v1673, 1e-05
    %v1682 = vadd.f32 %v1674, 1e-05
    %v1683 = vadd.f32 %v1675, 1e-05
    %v1684 = vadd.f32 %v1676, 1e-05
    %v1685 = vadd.f32 %v1677, 1e-05
    %v1686 = vrsqrt.pop %v1678
    %v1687 = vrsqrt.pop %v1679
    %v1688 = vrsqrt.pop %v1680
    %v1689 = vrsqrt.pop %v1681
    %v1690 = vrsqrt.pop %v1682
    %v1691 = vrsqrt.pop %v1683
    %v1692 = vrsqrt.pop %v1684
    %v1693 = vrsqrt.pop %v1685
    %v1694 = vmul.f32 %v1630, %v1686
    %v1695 = vmul.f32 %v1631, %v1687
    %v1696 = vmul.f32 %v1632, %v1688
    %v1697 = vmul.f32 %v1633, %v1689
    %v1698 = vmul.f32 %v1634, %v1690
    %v1699 = vmul.f32 %v1635, %v1691
    %v1700 = vmul.f32 %v1636, %v1692
    %v1701 = vmul.f32 %v1637, %v1693
    %s1702 = scalar_lea.vmem %s2, 1
    %v1703 = vld [vmem:[%s1702] sm:$0x1]
    %v1705 = vlaneseq
    %v1706 = vshrl.u32 %v1705, 7
    %v1707 = vsub.s32 0, %v1706
    %v1708 = vrot.slane %v1703, %v1707
    %v1710 = vmul.f32 %v1694, %v1708
    %v1711 = vmul.f32 %v1695, %v1708
    %v1712 = vmul.f32 %v1696, %v1708
    %v1713 = vmul.f32 %v1697, %v1708
    %v1714 = vmul.f32 %v1698, %v1708
    %v1715 = vmul.f32 %v1699, %v1708
    %v1716 = vmul.f32 %v1700, %v1708
    %v1717 = vmul.f32 %v1701, %v1708
    %s1718 = scalar_lea.vmem %s3, 1
    %v1719 = vld [vmem:[%s1718] sm:$0x1]
    %v1721 = vlaneseq
    %v1722 = vshrl.u32 %v1721, 7
    %v1723 = vsub.s32 0, %v1722
    %v1724 = vrot.slane %v1719, %v1723
    %v1726 = vadd.f32 %v1710, %v1724
    %v1727 = vadd.f32 %v1711, %v1724
    %v1728 = vadd.f32 %v1712, %v1724
    %v1729 = vadd.f32 %v1713, %v1724
    %v1730 = vadd.f32 %v1714, %v1724
    %v1731 = vadd.f32 %v1715, %v1724
    %v1732 = vadd.f32 %v1716, %v1724
    %v1733 = vadd.f32 %v1717, %v1724
    %v1734 = vpack.c.bf16 %v1727, %v1726
    %v1735 = vpack.c.bf16 %v1729, %v1728
    %v1736 = vpack.c.bf16 %v1731, %v1730
    %v1737 = vpack.c.bf16 %v1733, %v1732
    %s1738 = scalar_lea.vmem %s4, 16
    %v1739 = vld [vmem:[%s1738] sm:$0xf]
    %v1740 = vld [vmem:[%s1738 + $0x4] sm:$0xf]
    %v1741 = vld [vmem:[%s1738 + $0x8] sm:$0xf]
    %v1742 = vld [vmem:[%s1738 + $0xc] sm:$0xf]
    %v1747 = vunpack.c.l.b16 %v1739
    %v1748 = vunpack.c.l.b16 %v1740
    %v1749 = vunpack.c.l.b16 %v1741
    %v1750 = vunpack.c.l.b16 %v1742
    %v1751 = vpack.c.b16 %v1748, %v1747
    %v1752 = vpack.c.b16 %v1750, %v1749
    %v1756 = vsel %vm103, %v1734, 0
    %v1759 = vsel %vm103, %v1735, 0
    %v1762 = vsel %vm103, %v1736, 0
    %v1765 = vsel %vm103, %v1737, 0
    %1767 = vmatprep.subr.bf16.mxu0 0
    %1768 = vmatpush1.bf16.msra.mxu0 0
    %1769 = vmatprep.subr.bf16.mxu0 0
    %1770 = vmatpush1.bf16.msra.mxu0 0
    %1771 = vmatprep.subr.bf16.mxu0 0
    %1772 = vmatpush1.bf16.msra.mxu0 0
    %1773 = vmatprep.subr.bf16.mxu0 0
    %1774 = vmatpush1.bf16.msra.mxu0 0
    %1775 = vmatprep.subr.bf16.mxu0 0
    %1776 = vmatpush1.bf16.msra.mxu0 0
    %1777 = vmatprep.subr.bf16.mxu0 0
    %1778 = vmatpush1.bf16.msra.mxu0 0
    %1779 = vmatprep.subr.bf16.mxu0 0
    %1780 = vmatpush1.bf16.msra.mxu0 %v1752
    %1781 = vmatprep.subr.bf16.mxu0 0
    %1782 = vmatpush1.bf16.msra.mxu0 %v1751
    %1783 = vmatprep.subr.bf16.mxu0 0
    %1784 = vmatpush2.bf16.msra.mxu0 0
    %1785 = vmatprep.subr.bf16.mxu0 0
    %1786 = vmatpush2.bf16.msra.mxu0 0
    %1787 = vmatprep.subr.bf16.mxu0 0
    %1788 = vmatpush2.bf16.msra.mxu0 0
    %1789 = vmatprep.subr.bf16.mxu0 0
    %1790 = vmatpush2.bf16.msra.mxu0 0
    %1791 = vmatprep.subr.bf16.mxu0 0
    %1792 = vmatpush2.bf16.msra.mxu0 0
    %1793 = vmatprep.subr.bf16.mxu0 0
    %1794 = vmatpush2.bf16.msra.mxu0 0
    %1795 = vmatprep.subr.bf16.mxu0 0
    %1796 = vmatpush2.bf16.msra.mxu0 0
    %1797 = vmatprep.subr.bf16.mxu0 0
    %1798 = vmatpush2.bf16.msra.mxu0 0
    %1799 = vmatprep.mubr.bf16.mxu0 0
    %1800 = vmatmul.mubr.bf16.gmra.mxu0 %v1756
    %v1801 = vpop.f32.mrf.mxu0
    %v1802 = vadd.f32 0.0, %v1801
    %v1803 = vpop.f32.mrf.mxu0
    %v1804 = vpop.f32.mrf.mxu0
    %v1805 = vadd.f32 0.0, %v1804
    %v1806 = vpop.f32.mrf.mxu0
    %1807 = vmatprep.mubr.bf16.mxu0 0
    %1808 = vmatmul.mubr.bf16.gmra.mxu0 %v1759
    %v1809 = vpop.f32.mrf.mxu0
    %v1810 = vadd.f32 0.0, %v1809
    %v1811 = vpop.f32.mrf.mxu0
    %v1812 = vpop.f32.mrf.mxu0
    %v1813 = vadd.f32 0.0, %v1812
    %v1814 = vpop.f32.mrf.mxu0
    %1815 = vmatprep.mubr.bf16.mxu0 0
    %1816 = vmatmul.mubr.bf16.gmra.mxu0 %v1762
    %v1817 = vpop.f32.mrf.mxu0
    %v1818 = vadd.f32 0.0, %v1817
    %v1819 = vpop.f32.mrf.mxu0
    %v1820 = vpop.f32.mrf.mxu0
    %v1821 = vadd.f32 0.0, %v1820
    %v1822 = vpop.f32.mrf.mxu0
    %1823 = vmatprep.mubr.bf16.mxu0 0
    %1824 = vmatmul.mubr.bf16.gmra.mxu0 %v1765
    %v1825 = vpop.f32.mrf.mxu0
    %v1826 = vadd.f32 0.0, %v1825
    %v1827 = vpop.f32.mrf.mxu0
    %v1828 = vpop.f32.mrf.mxu0
    %v1829 = vadd.f32 0.0, %v1828
    %v1830 = vpop.f32.mrf.mxu0
    %1831 = vdwg.mxu0
    %v1832 = vpack.c.bf16 %v1805, %v1802
    %v1833 = vpack.c.bf16 %v1813, %v1810
    %v1834 = vpack.c.bf16 %v1821, %v1818
    %v1835 = vpack.c.bf16 %v1829, %v1826
    %1840 = vrot.lane.b32.xlu0 %v1832, 112
    %v1841 = vpop.permute.xlu0 %1840
    %1842 = vrot.lane.b32.xlu0 %v1833, 112
    %v1843 = vpop.permute.xlu0 %1842
    %1844 = vrot.lane.b32.xlu0 %v1834, 112
    %v1845 = vpop.permute.xlu0 %1844
    %1846 = vrot.lane.b32.xlu0 %v1835, 112
    %v1847 = vpop.permute.xlu0 %1846
    %v1849 = vsel %vm352, %v1832, 0
    %v1852 = vsel %vm352, %v1833, 0
    %v1855 = vsel %vm352, %v1834, 0
    %v1858 = vsel %vm352, %v1835, 0
    %v1861 = vsel %vm352, %v1841, 0
    %v1864 = vsel %vm352, %v1843, 0
    %v1867 = vsel %vm352, %v1845, 0
    %v1870 = vsel %vm352, %v1847, 0
    %1872 = vmatprep.subr.bf16.mxu0 0
    %1873 = vmatpush1.bf16.xpose.msra.mxu0 0
    %1874 = vmatprep.subr.bf16.mxu0 0
    %1875 = vmatpush1.bf16.xpose.msra.mxu0 0
    %1876 = vmatprep.subr.bf16.mxu0 0
    %1877 = vmatpush1.bf16.xpose.msra.mxu0 0
    %1878 = vmatprep.subr.bf16.mxu0 0
    %1879 = vmatpush1.bf16.xpose.msra.mxu0 0
    %1880 = vmatprep.subr.bf16.mxu0 0
    %1881 = vmatpush1.bf16.xpose.msra.mxu0 %v1870
    %1882 = vmatprep.subr.bf16.mxu0 0
    %1883 = vmatpush1.bf16.xpose.msra.mxu0 %v1867
    %1884 = vmatprep.subr.bf16.mxu0 0
    %1885 = vmatpush1.bf16.xpose.msra.mxu0 %v1864
    %1886 = vmatprep.subr.bf16.mxu0 0
    %1887 = vmatpush1.bf16.xpose.msra.mxu0 %v1861
    %1888 = vmatprep.subr.bf16.mxu0 0
    %1889 = vmatpush2.bf16.xpose.msra.mxu0 0
    %1890 = vmatprep.subr.bf16.mxu0 0
    %1891 = vmatpush2.bf16.xpose.msra.mxu0 0
    %1892 = vmatprep.subr.bf16.mxu0 0
    %1893 = vmatpush2.bf16.xpose.msra.mxu0 0
    %1894 = vmatprep.subr.bf16.mxu0 0
    %1895 = vmatpush2.bf16.xpose.msra.mxu0 0
    %1896 = vmatprep.subr.bf16.mxu0 0
    %1897 = vmatpush2.bf16.xpose.msra.mxu0 0
    %1898 = vmatprep.subr.bf16.mxu0 0
    %1899 = vmatpush2.bf16.xpose.msra.mxu0 0
    %1900 = vmatprep.subr.bf16.mxu0 0
    %1901 = vmatpush2.bf16.xpose.msra.mxu0 0
    %1902 = vmatprep.subr.bf16.mxu0 0
    %1903 = vmatpush2.bf16.xpose.msra.mxu0 0
    %1904 = vmatprep.mubr.bf16.mxu0 0
    %1905 = vmatmul.mubr.bf16.gmra.mxu0 %v1849
    %v1906 = vpop.f32.mrf.mxu0
    %v1907 = vadd.f32 0.0, %v1906
    %v1908 = vpop.f32.mrf.mxu0
    %v1909 = vpop.f32.mrf.mxu0
    %v1910 = vadd.f32 0.0, %v1909
    %v1911 = vpop.f32.mrf.mxu0
    %1912 = vmatprep.mubr.bf16.mxu0 0
    %1913 = vmatmul.mubr.bf16.gmra.mxu0 %v1852
    %v1914 = vpop.f32.mrf.mxu0
    %v1915 = vadd.f32 0.0, %v1914
    %v1916 = vpop.f32.mrf.mxu0
    %v1917 = vpop.f32.mrf.mxu0
    %v1918 = vadd.f32 0.0, %v1917
    %v1919 = vpop.f32.mrf.mxu0
    %1920 = vmatprep.mubr.bf16.mxu0 0
    %1921 = vmatmul.mubr.bf16.gmra.mxu0 %v1855
    %v1922 = vpop.f32.mrf.mxu0
    %v1923 = vadd.f32 0.0, %v1922
    %v1924 = vpop.f32.mrf.mxu0
    %v1925 = vpop.f32.mrf.mxu0
    %v1926 = vadd.f32 0.0, %v1925
    %v1927 = vpop.f32.mrf.mxu0
    %1928 = vmatprep.mubr.bf16.mxu0 0
    %1929 = vmatmul.mubr.bf16.gmra.mxu0 %v1858
    %v1930 = vpop.f32.mrf.mxu0
    %v1931 = vadd.f32 0.0, %v1930
    %v1932 = vpop.f32.mrf.mxu0
    %v1933 = vpop.f32.mrf.mxu0
    %v1934 = vadd.f32 0.0, %v1933
    %v1935 = vpop.f32.mrf.mxu0
    %1936 = vdwg.mxu0
    %v1937 = vmul.f32 %v1907, 0.25
    %v1938 = vmul.f32 %v1910, 0.25
    %v1939 = vmul.f32 %v1915, 0.25
    %v1940 = vmul.f32 %v1918, 0.25
    %v1941 = vmul.f32 %v1923, 0.25
    %v1942 = vmul.f32 %v1926, 0.25
    %v1943 = vmul.f32 %v1931, 0.25
    %v1944 = vmul.f32 %v1934, 0.25
    %v1945 = vadd.f32 %v1937, %v95
    %v1946 = vadd.f32 %v1938, %v96
    %v1947 = vadd.f32 %v1939, %v97
    %v1948 = vadd.f32 %v1940, %v98
    %v1949 = vadd.f32 %v1941, %v99
    %v1950 = vadd.f32 %v1942, %v100
    %v1951 = vadd.f32 %v1943, %v101
    %v1952 = vadd.f32 %v1944, %v102
    %v1953 = vsel %vm458, %v1945, -inf
    %1954 = vmax.xlane.f32.xlu0 %v1953
    %v1955 = vpop.xlane.xlu0 %1954
    %v1956 = vsel %vm458, %v1946, -inf
    %1957 = vmax.xlane.f32.xlu0 %v1956
    %v1958 = vpop.xlane.xlu0 %1957
    %v1959 = vsel %vm458, %v1947, -inf
    %1960 = vmax.xlane.f32.xlu0 %v1959
    %v1961 = vpop.xlane.xlu0 %1960
    %v1962 = vsel %vm458, %v1948, -inf
    %1963 = vmax.xlane.f32.xlu0 %v1962
    %v1964 = vpop.xlane.xlu0 %1963
    %v1965 = vsel %vm458, %v1949, -inf
    %1966 = vmax.xlane.f32.xlu0 %v1965
    %v1967 = vpop.xlane.xlu0 %1966
    %v1968 = vsel %vm458, %v1950, -inf
    %1969 = vmax.xlane.f32.xlu0 %v1968
    %v1970 = vpop.xlane.xlu0 %1969
    %v1971 = vsel %vm458, %v1951, -inf
    %1972 = vmax.xlane.f32.xlu0 %v1971
    %v1973 = vpop.xlane.xlu0 %1972
    %v1974 = vsel %vm458, %v1952, -inf
    %1975 = vmax.xlane.f32.xlu0 %v1974
    %v1976 = vpop.xlane.xlu0 %1975
    %v1977 = vsub.f32 %v1945, %v1955
    %v1978 = vsub.f32 %v1946, %v1958
    %v1979 = vsub.f32 %v1947, %v1961
    %v1980 = vsub.f32 %v1948, %v1964
    %v1981 = vsub.f32 %v1949, %v1967
    %v1982 = vsub.f32 %v1950, %v1970
    %v1983 = vsub.f32 %v1951, %v1973
    %v1984 = vsub.f32 %v1952, %v1976
    %v1985 = vmul.f32 %v1977, 1.442695
    %v1986 = vpow.pop %v1985
    %v1987 = vmul.f32 %v1978, 1.442695
    %v1988 = vpow.pop %v1987
    %v1989 = vmul.f32 %v1979, 1.442695
    %v1990 = vpow.pop %v1989
    %v1991 = vmul.f32 %v1980, 1.442695
    %v1992 = vpow.pop %v1991
    %v1993 = vmul.f32 %v1981, 1.442695
    %v1994 = vpow.pop %v1993
    %v1995 = vmul.f32 %v1982, 1.442695
    %v1996 = vpow.pop %v1995
    %v1997 = vmul.f32 %v1983, 1.442695
    %v1998 = vpow.pop %v1997
    %v1999 = vmul.f32 %v1984, 1.442695
    %v2000 = vpow.pop %v1999
    %v2001 = vsel %vm458, %v1986, 0.0
    %2002 = vadd.xlane.f32.xlu0 %v2001
    %v2003 = vpop.xlane.xlu0 %2002
    %v2004 = vsel %vm458, %v1988, 0.0
    %2005 = vadd.xlane.f32.xlu0 %v2004
    %v2006 = vpop.xlane.xlu0 %2005
    %v2007 = vsel %vm458, %v1990, 0.0
    %2008 = vadd.xlane.f32.xlu0 %v2007
    %v2009 = vpop.xlane.xlu0 %2008
    %v2010 = vsel %vm458, %v1992, 0.0
    %2011 = vadd.xlane.f32.xlu0 %v2010
    %v2012 = vpop.xlane.xlu0 %2011
    %v2013 = vsel %vm458, %v1994, 0.0
    %2014 = vadd.xlane.f32.xlu0 %v2013
    %v2015 = vpop.xlane.xlu0 %2014
    %v2016 = vsel %vm458, %v1996, 0.0
    %2017 = vadd.xlane.f32.xlu0 %v2016
    %v2018 = vpop.xlane.xlu0 %2017
    %v2019 = vsel %vm458, %v1998, 0.0
    %2020 = vadd.xlane.f32.xlu0 %v2019
    %v2021 = vpop.xlane.xlu0 %2020
    %v2022 = vsel %vm458, %v2000, 0.0
    %2023 = vadd.xlane.f32.xlu0 %v2022
    %v2024 = vpop.xlane.xlu0 %2023
    %v2025 = vrcp.pop %v2003
    %v2026 = vrcp.pop %v2006
    %v2027 = vrcp.pop %v2009
    %v2028 = vrcp.pop %v2012
    %v2029 = vrcp.pop %v2015
    %v2030 = vrcp.pop %v2018
    %v2031 = vrcp.pop %v2021
    %v2032 = vrcp.pop %v2024
    %v2033 = vmul.f32 %v1986, %v2025
    %v2034 = vmul.f32 %v1988, %v2026
    %v2035 = vmul.f32 %v1990, %v2027
    %v2036 = vmul.f32 %v1992, %v2028
    %v2037 = vmul.f32 %v1994, %v2029
    %v2038 = vmul.f32 %v1996, %v2030
    %v2039 = vmul.f32 %v1998, %v2031
    %v2040 = vmul.f32 %v2000, %v2032
    %v2041 = vpack.c.bf16 %v2034, %v2033
    %v2042 = vpack.c.bf16 %v2036, %v2035
    %v2043 = vpack.c.bf16 %v2038, %v2037
    %v2044 = vpack.c.bf16 %v2040, %v2039
    %2045 = vrot.lane.b32.xlu0 %v1832, 96
    %v2046 = vpop.permute.xlu0 %2045
    %2047 = vrot.lane.b32.xlu0 %v1833, 96
    %v2048 = vpop.permute.xlu0 %2047
    %2049 = vrot.lane.b32.xlu0 %v1834, 96
    %v2050 = vpop.permute.xlu0 %2049
    %2051 = vrot.lane.b32.xlu0 %v1835, 96
    %v2052 = vpop.permute.xlu0 %2051
    %v2058 = vsel %vm458, %v2041, 0
    %v2061 = vsel %vm458, %v2042, 0
    %v2064 = vsel %vm458, %v2043, 0
    %v2067 = vsel %vm458, %v2044, 0
    %2069 = vmatprep.subr.bf16.mxu0 0
    %2070 = vmatpush1.bf16.msra.mxu0 0
    %2071 = vmatprep.subr.bf16.mxu0 0
    %2072 = vmatpush1.bf16.msra.mxu0 0
    %2073 = vmatprep.subr.bf16.mxu0 0
    %2074 = vmatpush1.bf16.msra.mxu0 0
    %2075 = vmatprep.subr.bf16.mxu0 0
    %2076 = vmatpush1.bf16.msra.mxu0 0
    %2077 = vmatprep.subr.bf16.mxu0 0
    %2078 = vmatpush1.bf16.msra.mxu0 %v2052
    %2079 = vmatprep.subr.bf16.mxu0 0
    %2080 = vmatpush1.bf16.msra.mxu0 %v2050
    %2081 = vmatprep.subr.bf16.mxu0 0
    %2082 = vmatpush1.bf16.msra.mxu0 %v2048
    %2083 = vmatprep.subr.bf16.mxu0 0
    %2084 = vmatpush1.bf16.msra.mxu0 %v2046
    %2085 = vmatprep.subr.bf16.mxu0 0
    %2086 = vmatpush2.bf16.msra.mxu0 0
    %2087 = vmatprep.subr.bf16.mxu0 0
    %2088 = vmatpush2.bf16.msra.mxu0 0
    %2089 = vmatprep.subr.bf16.mxu0 0
    %2090 = vmatpush2.bf16.msra.mxu0 0
    %2091 = vmatprep.subr.bf16.mxu0 0
    %2092 = vmatpush2.bf16.msra.mxu0 0
    %2093 = vmatprep.subr.bf16.mxu0 0
    %2094 = vmatpush2.bf16.msra.mxu0 0
    %2095 = vmatprep.subr.bf16.mxu0 0
    %2096 = vmatpush2.bf16.msra.mxu0 0
    %2097 = vmatprep.subr.bf16.mxu0 0
    %2098 = vmatpush2.bf16.msra.mxu0 0
    %2099 = vmatprep.subr.bf16.mxu0 0
    %2100 = vmatpush2.bf16.msra.mxu0 0
    %2101 = vmatprep.mubr.bf16.mxu0 0
    %2102 = vmatmul.mubr.bf16.gmra.mxu0 %v2058
    %v2103 = vpop.f32.mrf.mxu0
    %v2104 = vadd.f32 0.0, %v2103
    %v2105 = vpop.f32.mrf.mxu0
    %v2106 = vpop.f32.mrf.mxu0
    %v2107 = vadd.f32 0.0, %v2106
    %v2108 = vpop.f32.mrf.mxu0
    %2109 = vmatprep.mubr.bf16.mxu0 0
    %2110 = vmatmul.mubr.bf16.gmra.mxu0 %v2061
    %v2111 = vpop.f32.mrf.mxu0
    %v2112 = vadd.f32 0.0, %v2111
    %v2113 = vpop.f32.mrf.mxu0
    %v2114 = vpop.f32.mrf.mxu0
    %v2115 = vadd.f32 0.0, %v2114
    %v2116 = vpop.f32.mrf.mxu0
    %2117 = vmatprep.mubr.bf16.mxu0 0
    %2118 = vmatmul.mubr.bf16.gmra.mxu0 %v2064
    %v2119 = vpop.f32.mrf.mxu0
    %v2120 = vadd.f32 0.0, %v2119
    %v2121 = vpop.f32.mrf.mxu0
    %v2122 = vpop.f32.mrf.mxu0
    %v2123 = vadd.f32 0.0, %v2122
    %v2124 = vpop.f32.mrf.mxu0
    %2125 = vmatprep.mubr.bf16.mxu0 0
    %2126 = vmatmul.mubr.bf16.gmra.mxu0 %v2067
    %v2127 = vpop.f32.mrf.mxu0
    %v2128 = vadd.f32 0.0, %v2127
    %v2129 = vpop.f32.mrf.mxu0
    %v2130 = vpop.f32.mrf.mxu0
    %v2131 = vadd.f32 0.0, %v2130
    %v2132 = vpop.f32.mrf.mxu0
    %2133 = vdwg.mxu0
    %v2134 = vpack.c.bf16 %v2107, %v2104
    %v2135 = vpack.c.bf16 %v2115, %v2112
    %v2136 = vpack.c.bf16 %v2123, %v2120
    %v2137 = vpack.c.bf16 %v2131, %v2128
    %v2142 = vunpack.c.l.b16 %v2134
    %v2143 = vunpack.c.h.b16 %v2134
    %v2144 = vunpack.c.l.b16 %v2135
    %v2145 = vunpack.c.h.b16 %v2135
    %v2146 = vunpack.c.l.b16 %v2136
    %v2147 = vunpack.c.h.b16 %v2136
    %v2148 = vunpack.c.l.b16 %v2137
    %v2149 = vunpack.c.h.b16 %v2137
    %v2150 = vpack.c.b16 %v2142, %v2142
    %v2151 = vpack.c.b16 %v2143, %v2143
    %v2152 = vpack.c.b16 %v2144, %v2144
    %v2153 = vpack.c.b16 %v2145, %v2145
    %v2154 = vpack.c.b16 %v2146, %v2146
    %v2155 = vpack.c.b16 %v2147, %v2147
    %v2156 = vpack.c.b16 %v2148, %v2148
    %v2157 = vpack.c.b16 %v2149, %v2149
    %2166 = vst.msk [vmem:[#allocation2] sm:$0xf] %vm672, %v2150
    %2167 = vst.msk [vmem:[#allocation2 + $0x4] sm:$0xf] %vm672, %v2151
    %2168 = vst.msk [vmem:[#allocation2 + $0x8] sm:$0xf] %vm672, %v2152
    %2169 = vst.msk [vmem:[#allocation2 + $0xc] sm:$0xf] %vm672, %v2153
    %2170 = vst.msk [vmem:[#allocation2 + $0x10] sm:$0xf] %vm672, %v2154
    %2171 = vst.msk [vmem:[#allocation2 + $0x14] sm:$0xf] %vm672, %v2155
    %2172 = vst.msk [vmem:[#allocation2 + $0x18] sm:$0xf] %vm672, %v2156
    %2173 = vst.msk [vmem:[#allocation2 + $0x1c] sm:$0xf] %vm672, %v2157
    %2174 = vrot.lane.b32.xlu0 %v1832, 80
    %v2175 = vpop.permute.xlu0 %2174
    %2176 = vrot.lane.b32.xlu0 %v1833, 80
    %v2177 = vpop.permute.xlu0 %2176
    %2178 = vrot.lane.b32.xlu0 %v1834, 80
    %v2179 = vpop.permute.xlu0 %2178
    %2180 = vrot.lane.b32.xlu0 %v1835, 80
    %v2181 = vpop.permute.xlu0 %2180
    %2182 = vrot.lane.b32.xlu0 %v1832, 64
    %v2183 = vpop.permute.xlu0 %2182
    %2184 = vrot.lane.b32.xlu0 %v1833, 64
    %v2185 = vpop.permute.xlu0 %2184
    %2186 = vrot.lane.b32.xlu0 %v1834, 64
    %v2187 = vpop.permute.xlu0 %2186
    %2188 = vrot.lane.b32.xlu0 %v1835, 64
    %v2189 = vpop.permute.xlu0 %2188
    %v2191 = vsel %vm352, %v2175, 0
    %v2194 = vsel %vm352, %v2177, 0
    %v2197 = vsel %vm352, %v2179, 0
    %v2200 = vsel %vm352, %v2181, 0
    %v2203 = vsel %vm352, %v2183, 0
    %v2206 = vsel %vm352, %v2185, 0
    %v2209 = vsel %vm352, %v2187, 0
    %v2212 = vsel %vm352, %v2189, 0
    %2214 = vmatprep.subr.bf16.mxu0 0
    %2215 = vmatpush1.bf16.xpose.msra.mxu0 0
    %2216 = vmatprep.subr.bf16.mxu0 0
    %2217 = vmatpush1.bf16.xpose.msra.mxu0 0
    %2218 = vmatprep.subr.bf16.mxu0 0
    %2219 = vmatpush1.bf16.xpose.msra.mxu0 0
    %2220 = vmatprep.subr.bf16.mxu0 0
    %2221 = vmatpush1.bf16.xpose.msra.mxu0 0
    %2222 = vmatprep.subr.bf16.mxu0 0
    %2223 = vmatpush1.bf16.xpose.msra.mxu0 %v2212
    %2224 = vmatprep.subr.bf16.mxu0 0
    %2225 = vmatpush1.bf16.xpose.msra.mxu0 %v2209
    %2226 = vmatprep.subr.bf16.mxu0 0
    %2227 = vmatpush1.bf16.xpose.msra.mxu0 %v2206
    %2228 = vmatprep.subr.bf16.mxu0 0
    %2229 = vmatpush1.bf16.xpose.msra.mxu0 %v2203
    %2230 = vmatprep.subr.bf16.mxu0 0
    %2231 = vmatpush2.bf16.xpose.msra.mxu0 0
    %2232 = vmatprep.subr.bf16.mxu0 0
    %2233 = vmatpush2.bf16.xpose.msra.mxu0 0
    %2234 = vmatprep.subr.bf16.mxu0 0
    %2235 = vmatpush2.bf16.xpose.msra.mxu0 0
    %2236 = vmatprep.subr.bf16.mxu0 0
    %2237 = vmatpush2.bf16.xpose.msra.mxu0 0
    %2238 = vmatprep.subr.bf16.mxu0 0
    %2239 = vmatpush2.bf16.xpose.msra.mxu0 0
    %2240 = vmatprep.subr.bf16.mxu0 0
    %2241 = vmatpush2.bf16.xpose.msra.mxu0 0
    %2242 = vmatprep.subr.bf16.mxu0 0
    %2243 = vmatpush2.bf16.xpose.msra.mxu0 0
    %2244 = vmatprep.subr.bf16.mxu0 0
    %2245 = vmatpush2.bf16.xpose.msra.mxu0 0
    %2246 = vmatprep.mubr.bf16.mxu0 0
    %2247 = vmatmul.mubr.bf16.gmra.mxu0 %v2191
    %v2248 = vpop.f32.mrf.mxu0
    %v2249 = vadd.f32 0.0, %v2248
    %v2250 = vpop.f32.mrf.mxu0
    %v2251 = vpop.f32.mrf.mxu0
    %v2252 = vadd.f32 0.0, %v2251
    %v2253 = vpop.f32.mrf.mxu0
    %2254 = vmatprep.mubr.bf16.mxu0 0
    %2255 = vmatmul.mubr.bf16.gmra.mxu0 %v2194
    %v2256 = vpop.f32.mrf.mxu0
    %v2257 = vadd.f32 0.0, %v2256
    %v2258 = vpop.f32.mrf.mxu0
    %v2259 = vpop.f32.mrf.mxu0
    %v2260 = vadd.f32 0.0, %v2259
    %v2261 = vpop.f32.mrf.mxu0
    %2262 = vmatprep.mubr.bf16.mxu0 0
    %2263 = vmatmul.mubr.bf16.gmra.mxu0 %v2197
    %v2264 = vpop.f32.mrf.mxu0
    %v2265 = vadd.f32 0.0, %v2264
    %v2266 = vpop.f32.mrf.mxu0
    %v2267 = vpop.f32.mrf.mxu0
    %v2268 = vadd.f32 0.0, %v2267
    %v2269 = vpop.f32.mrf.mxu0
    %2270 = vmatprep.mubr.bf16.mxu0 0
    %2271 = vmatmul.mubr.bf16.gmra.mxu0 %v2200
    %v2272 = vpop.f32.mrf.mxu0
    %v2273 = vadd.f32 0.0, %v2272
    %v2274 = vpop.f32.mrf.mxu0
    %v2275 = vpop.f32.mrf.mxu0
    %v2276 = vadd.f32 0.0, %v2275
    %v2277 = vpop.f32.mrf.mxu0
    %2278 = vdwg.mxu0
    %v2279 = vmul.f32 %v2249, 0.25
    %v2280 = vmul.f32 %v2252, 0.25
    %v2281 = vmul.f32 %v2257, 0.25
    %v2282 = vmul.f32 %v2260, 0.25
    %v2283 = vmul.f32 %v2265, 0.25
    %v2284 = vmul.f32 %v2268, 0.25
    %v2285 = vmul.f32 %v2273, 0.25
    %v2286 = vmul.f32 %v2276, 0.25
    %v2287 = vadd.f32 %v2279, %v95
    %v2288 = vadd.f32 %v2280, %v96
    %v2289 = vadd.f32 %v2281, %v97
    %v2290 = vadd.f32 %v2282, %v98
    %v2291 = vadd.f32 %v2283, %v99
    %v2292 = vadd.f32 %v2284, %v100
    %v2293 = vadd.f32 %v2285, %v101
    %v2294 = vadd.f32 %v2286, %v102
    %v2295 = vsel %vm458, %v2287, -inf
    %2296 = vmax.xlane.f32.xlu0 %v2295
    %v2297 = vpop.xlane.xlu0 %2296
    %v2298 = vsel %vm458, %v2288, -inf
    %2299 = vmax.xlane.f32.xlu0 %v2298
    %v2300 = vpop.xlane.xlu0 %2299
    %v2301 = vsel %vm458, %v2289, -inf
    %2302 = vmax.xlane.f32.xlu0 %v2301
    %v2303 = vpop.xlane.xlu0 %2302
    %v2304 = vsel %vm458, %v2290, -inf
    %2305 = vmax.xlane.f32.xlu0 %v2304
    %v2306 = vpop.xlane.xlu0 %2305
    %v2307 = vsel %vm458, %v2291, -inf
    %2308 = vmax.xlane.f32.xlu0 %v2307
    %v2309 = vpop.xlane.xlu0 %2308
    %v2310 = vsel %vm458, %v2292, -inf
    %2311 = vmax.xlane.f32.xlu0 %v2310
    %v2312 = vpop.xlane.xlu0 %2311
    %v2313 = vsel %vm458, %v2293, -inf
    %2314 = vmax.xlane.f32.xlu0 %v2313
    %v2315 = vpop.xlane.xlu0 %2314
    %v2316 = vsel %vm458, %v2294, -inf
    %2317 = vmax.xlane.f32.xlu0 %v2316
    %v2318 = vpop.xlane.xlu0 %2317
    %v2319 = vsub.f32 %v2287, %v2297
    %v2320 = vsub.f32 %v2288, %v2300
    %v2321 = vsub.f32 %v2289, %v2303
    %v2322 = vsub.f32 %v2290, %v2306
    %v2323 = vsub.f32 %v2291, %v2309
    %v2324 = vsub.f32 %v2292, %v2312
    %v2325 = vsub.f32 %v2293, %v2315
    %v2326 = vsub.f32 %v2294, %v2318
    %v2327 = vmul.f32 %v2319, 1.442695
    %v2328 = vpow.pop %v2327
    %v2329 = vmul.f32 %v2320, 1.442695
    %v2330 = vpow.pop %v2329
    %v2331 = vmul.f32 %v2321, 1.442695
    %v2332 = vpow.pop %v2331
    %v2333 = vmul.f32 %v2322, 1.442695
    %v2334 = vpow.pop %v2333
    %v2335 = vmul.f32 %v2323, 1.442695
    %v2336 = vpow.pop %v2335
    %v2337 = vmul.f32 %v2324, 1.442695
    %v2338 = vpow.pop %v2337
    %v2339 = vmul.f32 %v2325, 1.442695
    %v2340 = vpow.pop %v2339
    %v2341 = vmul.f32 %v2326, 1.442695
    %v2342 = vpow.pop %v2341
    %v2343 = vsel %vm458, %v2328, 0.0
    %2344 = vadd.xlane.f32.xlu0 %v2343
    %v2345 = vpop.xlane.xlu0 %2344
    %v2346 = vsel %vm458, %v2330, 0.0
    %2347 = vadd.xlane.f32.xlu0 %v2346
    %v2348 = vpop.xlane.xlu0 %2347
    %v2349 = vsel %vm458, %v2332, 0.0
    %2350 = vadd.xlane.f32.xlu0 %v2349
    %v2351 = vpop.xlane.xlu0 %2350
    %v2352 = vsel %vm458, %v2334, 0.0
    %2353 = vadd.xlane.f32.xlu0 %v2352
    %v2354 = vpop.xlane.xlu0 %2353
    %v2355 = vsel %vm458, %v2336, 0.0
    %2356 = vadd.xlane.f32.xlu0 %v2355
    %v2357 = vpop.xlane.xlu0 %2356
    %v2358 = vsel %vm458, %v2338, 0.0
    %2359 = vadd.xlane.f32.xlu0 %v2358
    %v2360 = vpop.xlane.xlu0 %2359
    %v2361 = vsel %vm458, %v2340, 0.0
    %2362 = vadd.xlane.f32.xlu0 %v2361
    %v2363 = vpop.xlane.xlu0 %2362
    %v2364 = vsel %vm458, %v2342, 0.0
    %2365 = vadd.xlane.f32.xlu0 %v2364
    %v2366 = vpop.xlane.xlu0 %2365
    %v2367 = vrcp.pop %v2345
    %v2368 = vrcp.pop %v2348
    %v2369 = vrcp.pop %v2351
    %v2370 = vrcp.pop %v2354
    %v2371 = vrcp.pop %v2357
    %v2372 = vrcp.pop %v2360
    %v2373 = vrcp.pop %v2363
    %v2374 = vrcp.pop %v2366
    %v2375 = vmul.f32 %v2328, %v2367
    %v2376 = vmul.f32 %v2330, %v2368
    %v2377 = vmul.f32 %v2332, %v2369
    %v2378 = vmul.f32 %v2334, %v2370
    %v2379 = vmul.f32 %v2336, %v2371
    %v2380 = vmul.f32 %v2338, %v2372
    %v2381 = vmul.f32 %v2340, %v2373
    %v2382 = vmul.f32 %v2342, %v2374
    %v2383 = vpack.c.bf16 %v2376, %v2375
    %v2384 = vpack.c.bf16 %v2378, %v2377
    %v2385 = vpack.c.bf16 %v2380, %v2379
    %v2386 = vpack.c.bf16 %v2382, %v2381
    %2387 = vrot.lane.b32.xlu0 %v1832, 48
    %v2388 = vpop.permute.xlu0 %2387
    %2389 = vrot.lane.b32.xlu0 %v1833, 48
    %v2390 = vpop.permute.xlu0 %2389
    %2391 = vrot.lane.b32.xlu0 %v1834, 48
    %v2392 = vpop.permute.xlu0 %2391
    %2393 = vrot.lane.b32.xlu0 %v1835, 48
    %v2394 = vpop.permute.xlu0 %2393
    %v2400 = vsel %vm458, %v2383, 0
    %v2403 = vsel %vm458, %v2384, 0
    %v2406 = vsel %vm458, %v2385, 0
    %v2409 = vsel %vm458, %v2386, 0
    %2411 = vmatprep.subr.bf16.mxu0 0
    %2412 = vmatpush1.bf16.msra.mxu0 0
    %2413 = vmatprep.subr.bf16.mxu0 0
    %2414 = vmatpush1.bf16.msra.mxu0 0
    %2415 = vmatprep.subr.bf16.mxu0 0
    %2416 = vmatpush1.bf16.msra.mxu0 0
    %2417 = vmatprep.subr.bf16.mxu0 0
    %2418 = vmatpush1.bf16.msra.mxu0 0
    %2419 = vmatprep.subr.bf16.mxu0 0
    %2420 = vmatpush1.bf16.msra.mxu0 %v2394
    %2421 = vmatprep.subr.bf16.mxu0 0
    %2422 = vmatpush1.bf16.msra.mxu0 %v2392
    %2423 = vmatprep.subr.bf16.mxu0 0
    %2424 = vmatpush1.bf16.msra.mxu0 %v2390
    %2425 = vmatprep.subr.bf16.mxu0 0
    %2426 = vmatpush1.bf16.msra.mxu0 %v2388
    %2427 = vmatprep.subr.bf16.mxu0 0
    %2428 = vmatpush2.bf16.msra.mxu0 0
    %2429 = vmatprep.subr.bf16.mxu0 0
    %2430 = vmatpush2.bf16.msra.mxu0 0
    %2431 = vmatprep.subr.bf16.mxu0 0
    %2432 = vmatpush2.bf16.msra.mxu0 0
    %2433 = vmatprep.subr.bf16.mxu0 0
    %2434 = vmatpush2.bf16.msra.mxu0 0
    %2435 = vmatprep.subr.bf16.mxu0 0
    %2436 = vmatpush2.bf16.msra.mxu0 0
    %2437 = vmatprep.subr.bf16.mxu0 0
    %2438 = vmatpush2.bf16.msra.mxu0 0
    %2439 = vmatprep.subr.bf16.mxu0 0
    %2440 = vmatpush2.bf16.msra.mxu0 0
    %2441 = vmatprep.subr.bf16.mxu0 0
    %2442 = vmatpush2.bf16.msra.mxu0 0
    %2443 = vmatprep.mubr.bf16.mxu0 0
    %2444 = vmatmul.mubr.bf16.gmra.mxu0 %v2400
    %v2445 = vpop.f32.mrf.mxu0
    %v2446 = vadd.f32 0.0, %v2445
    %v2447 = vpop.f32.mrf.mxu0
    %v2448 = vpop.f32.mrf.mxu0
    %v2449 = vadd.f32 0.0, %v2448
    %v2450 = vpop.f32.mrf.mxu0
    %2451 = vmatprep.mubr.bf16.mxu0 0
    %2452 = vmatmul.mubr.bf16.gmra.mxu0 %v2403
    %v2453 = vpop.f32.mrf.mxu0
    %v2454 = vadd.f32 0.0, %v2453
    %v2455 = vpop.f32.mrf.mxu0
    %v2456 = vpop.f32.mrf.mxu0
    %v2457 = vadd.f32 0.0, %v2456
    %v2458 = vpop.f32.mrf.mxu0
    %2459 = vmatprep.mubr.bf16.mxu0 0
    %2460 = vmatmul.mubr.bf16.gmra.mxu0 %v2406
    %v2461 = vpop.f32.mrf.mxu0
    %v2462 = vadd.f32 0.0, %v2461
    %v2463 = vpop.f32.mrf.mxu0
    %v2464 = vpop.f32.mrf.mxu0
    %v2465 = vadd.f32 0.0, %v2464
    %v2466 = vpop.f32.mrf.mxu0
    %2467 = vmatprep.mubr.bf16.mxu0 0
    %2468 = vmatmul.mubr.bf16.gmra.mxu0 %v2409
    %v2469 = vpop.f32.mrf.mxu0
    %v2470 = vadd.f32 0.0, %v2469
    %v2471 = vpop.f32.mrf.mxu0
    %v2472 = vpop.f32.mrf.mxu0
    %v2473 = vadd.f32 0.0, %v2472
    %v2474 = vpop.f32.mrf.mxu0
    %2475 = vdwg.mxu0
    %v2476 = vpack.c.bf16 %v2449, %v2446
    %v2477 = vpack.c.bf16 %v2457, %v2454
    %v2478 = vpack.c.bf16 %v2465, %v2462
    %v2479 = vpack.c.bf16 %v2473, %v2470
    %v2484 = vunpack.c.l.b16 %v2476
    %v2485 = vunpack.c.h.b16 %v2476
    %v2486 = vunpack.c.l.b16 %v2477
    %v2487 = vunpack.c.h.b16 %v2477
    %v2488 = vunpack.c.l.b16 %v2478
    %v2489 = vunpack.c.h.b16 %v2478
    %v2490 = vunpack.c.l.b16 %v2479
    %v2491 = vunpack.c.h.b16 %v2479
    %v2492 = vpack.c.b16 %v2484, %v2484
    %v2493 = vpack.c.b16 %v2485, %v2485
    %v2494 = vpack.c.b16 %v2486, %v2486
    %v2495 = vpack.c.b16 %v2487, %v2487
    %v2496 = vpack.c.b16 %v2488, %v2488
    %v2497 = vpack.c.b16 %v2489, %v2489
    %v2498 = vpack.c.b16 %v2490, %v2490
    %v2499 = vpack.c.b16 %v2491, %v2491
    %2500 = vrot.lane.b32.xlu0 %v2492, 16
    %v2501 = vpop.permute.xlu0 %2500
    %2502 = vrot.lane.b32.xlu0 %v2493, 16
    %v2503 = vpop.permute.xlu0 %2502
    %2504 = vrot.lane.b32.xlu0 %v2494, 16
    %v2505 = vpop.permute.xlu0 %2504
    %2506 = vrot.lane.b32.xlu0 %v2495, 16
    %v2507 = vpop.permute.xlu0 %2506
    %2508 = vrot.lane.b32.xlu0 %v2496, 16
    %v2509 = vpop.permute.xlu0 %2508
    %2510 = vrot.lane.b32.xlu0 %v2497, 16
    %v2511 = vpop.permute.xlu0 %2510
    %2512 = vrot.lane.b32.xlu0 %v2498, 16
    %v2513 = vpop.permute.xlu0 %2512
    %2514 = vrot.lane.b32.xlu0 %v2499, 16
    %v2515 = vpop.permute.xlu0 %2514
    %2524 = vst.msk [vmem:[#allocation2] sm:$0xf] %vm1031, %v2501
    %2525 = vst.msk [vmem:[#allocation2 + $0x4] sm:$0xf] %vm1031, %v2503
    %2526 = vst.msk [vmem:[#allocation2 + $0x8] sm:$0xf] %vm1031, %v2505
    %2527 = vst.msk [vmem:[#allocation2 + $0xc] sm:$0xf] %vm1031, %v2507
    %2528 = vst.msk [vmem:[#allocation2 + $0x10] sm:$0xf] %vm1031, %v2509
    %2529 = vst.msk [vmem:[#allocation2 + $0x14] sm:$0xf] %vm1031, %v2511
    %2530 = vst.msk [vmem:[#allocation2 + $0x18] sm:$0xf] %vm1031, %v2513
    %2531 = vst.msk [vmem:[#allocation2 + $0x1c] sm:$0xf] %vm1031, %v2515
    %v2532 = vld [vmem:[#allocation2] sm:$0xf]
    %v2533 = vld [vmem:[#allocation2 + $0x4] sm:$0xf]
    %v2534 = vld [vmem:[#allocation2 + $0x8] sm:$0xf]
    %v2535 = vld [vmem:[#allocation2 + $0xc] sm:$0xf]
    %v2536 = vld [vmem:[#allocation2 + $0x10] sm:$0xf]
    %v2537 = vld [vmem:[#allocation2 + $0x14] sm:$0xf]
    %v2538 = vld [vmem:[#allocation2 + $0x18] sm:$0xf]
    %v2539 = vld [vmem:[#allocation2 + $0x1c] sm:$0xf]
    %s2540 = scalar_lea.vmem [#allocation6], 16
    %v2541 = vld [vmem:[%s2540] sm:$0xf]
    %v2542 = vld [vmem:[%s2540 + $0x4] sm:$0xf]
    %v2543 = vld [vmem:[%s2540 + $0x8] sm:$0xf]
    %v2544 = vld [vmem:[%s2540 + $0xc] sm:$0xf]
    %s2545 = scalar_lea.vmem %s6, 1
    %v2546 = vld [vmem:[%s2545] sm:$0x1]
    %v2548 = vlaneseq
    %v2549 = vshrl.u32 %v2548, 7
    %v2550 = vsub.s32 0, %v2549
    %v2551 = vrot.slane %v2546, %v2550
    %v2561 = vunpack.c.l.b16 %v2532
    %v2562 = vunpack.c.l.b16 %v2533
    %v2563 = vunpack.c.l.b16 %v2534
    %v2564 = vunpack.c.l.b16 %v2535
    %v2565 = vunpack.c.l.b16 %v2536
    %v2566 = vunpack.c.l.b16 %v2537
    %v2567 = vunpack.c.l.b16 %v2538
    %v2568 = vunpack.c.l.b16 %v2539
    %v2569 = vpack.c.b16 %v2562, %v2561
    %v2570 = vpack.c.b16 %v2564, %v2563
    %v2571 = vpack.c.b16 %v2566, %v2565
    %v2572 = vpack.c.b16 %v2568, %v2567
    %v2577 = vunpack.c.l.b16 %v2541
    %v2578 = vunpack.c.l.b16 %v2542
    %v2579 = vunpack.c.l.b16 %v2543
    %v2580 = vunpack.c.l.b16 %v2544
    %v2581 = vpack.c.b16 %v2578, %v2577
    %v2582 = vpack.c.b16 %v2580, %v2579
    %v2586 = vsel %vm103, %v2569, 0
    %v2589 = vsel %vm103, %v2570, 0
    %v2592 = vsel %vm103, %v2571, 0
    %v2595 = vsel %vm103, %v2572, 0
    %2597 = vmatprep.subr.bf16.mxu0 0
    %2598 = vmatpush1.bf16.msra.mxu0 0
    %2599 = vmatprep.subr.bf16.mxu0 0
    %2600 = vmatpush1.bf16.msra.mxu0 0
    %2601 = vmatprep.subr.bf16.mxu0 0
    %2602 = vmatpush1.bf16.msra.mxu0 0
    %2603 = vmatprep.subr.bf16.mxu0 0
    %2604 = vmatpush1.bf16.msra.mxu0 0
    %2605 = vmatprep.subr.bf16.mxu0 0
    %2606 = vmatpush1.bf16.msra.mxu0 0
    %2607 = vmatprep.subr.bf16.mxu0 0
    %2608 = vmatpush1.bf16.msra.mxu0 0
    %2609 = vmatprep.subr.bf16.mxu0 0
    %2610 = vmatpush1.bf16.msra.mxu0 %v2582
    %2611 = vmatprep.subr.bf16.mxu0 0
    %2612 = vmatpush1.bf16.msra.mxu0 %v2581
    %2613 = vmatprep.subr.bf16.mxu0 0
    %2614 = vmatpush2.bf16.msra.mxu0 0
    %2615 = vmatprep.subr.bf16.mxu0 0
    %2616 = vmatpush2.bf16.msra.mxu0 0
    %2617 = vmatprep.subr.bf16.mxu0 0
    %2618 = vmatpush2.bf16.msra.mxu0 0
    %2619 = vmatprep.subr.bf16.mxu0 0
    %2620 = vmatpush2.bf16.msra.mxu0 0
    %2621 = vmatprep.subr.bf16.mxu0 0
    %2622 = vmatpush2.bf16.msra.mxu0 0
    %2623 = vmatprep.subr.bf16.mxu0 0
    %2624 = vmatpush2.bf16.msra.mxu0 0
    %2625 = vmatprep.subr.bf16.mxu0 0
    %2626 = vmatpush2.bf16.msra.mxu0 0
    %2627 = vmatprep.subr.bf16.mxu0 0
    %2628 = vmatpush2.bf16.msra.mxu0 0
    %2629 = vmatprep.mubr.bf16.mxu0 0
    %2630 = vmatmul.mubr.bf16.gmra.mxu0 %v2586
    %v2631 = vpop.f32.mrf.mxu0
    %v2632 = vadd.f32 %v2551, %v2631
    %v2633 = vpop.f32.mrf.mxu0
    %v2634 = vpop.f32.mrf.mxu0
    %v2635 = vadd.f32 %v2551, %v2634
    %v2636 = vpop.f32.mrf.mxu0
    %2637 = vmatprep.mubr.bf16.mxu0 0
    %2638 = vmatmul.mubr.bf16.gmra.mxu0 %v2589
    %v2639 = vpop.f32.mrf.mxu0
    %v2640 = vadd.f32 %v2551, %v2639
    %v2641 = vpop.f32.mrf.mxu0
    %v2642 = vpop.f32.mrf.mxu0
    %v2643 = vadd.f32 %v2551, %v2642
    %v2644 = vpop.f32.mrf.mxu0
    %2645 = vmatprep.mubr.bf16.mxu0 0
    %2646 = vmatmul.mubr.bf16.gmra.mxu0 %v2592
    %v2647 = vpop.f32.mrf.mxu0
    %v2648 = vadd.f32 %v2551, %v2647
    %v2649 = vpop.f32.mrf.mxu0
    %v2650 = vpop.f32.mrf.mxu0
    %v2651 = vadd.f32 %v2551, %v2650
    %v2652 = vpop.f32.mrf.mxu0
    %2653 = vmatprep.mubr.bf16.mxu0 0
    %2654 = vmatmul.mubr.bf16.gmra.mxu0 %v2595
    %v2655 = vpop.f32.mrf.mxu0
    %v2656 = vadd.f32 %v2551, %v2655
    %v2657 = vpop.f32.mrf.mxu0
    %v2658 = vpop.f32.mrf.mxu0
    %v2659 = vadd.f32 %v2551, %v2658
    %v2660 = vpop.f32.mrf.mxu0
    %2661 = vdwg.mxu0
    %v2662 = vadd.f32 %v1590, %v2632
    %v2663 = vadd.f32 %v1591, %v2635
    %v2664 = vadd.f32 %v1592, %v2640
    %v2665 = vadd.f32 %v1593, %v2643
    %v2666 = vadd.f32 %v1594, %v2648
    %v2667 = vadd.f32 %v1595, %v2651
    %v2668 = vadd.f32 %v1596, %v2656
    %v2669 = vadd.f32 %v1597, %v2659
    %v2670 = vsel %vm103, %v2662, 0.0
    %2671 = vadd.xlane.f32.xlu0 %v2670
    %v2672 = vpop.xlane.xlu0 %2671
    %v2673 = vsel %vm103, %v2663, 0.0
    %2674 = vadd.xlane.f32.xlu0 %v2673
    %v2675 = vpop.xlane.xlu0 %2674
    %v2676 = vsel %vm103, %v2664, 0.0
    %2677 = vadd.xlane.f32.xlu0 %v2676
    %v2678 = vpop.xlane.xlu0 %2677
    %v2679 = vsel %vm103, %v2665, 0.0
    %2680 = vadd.xlane.f32.xlu0 %v2679
    %v2681 = vpop.xlane.xlu0 %2680
    %v2682 = vsel %vm103, %v2666, 0.0
    %2683 = vadd.xlane.f32.xlu0 %v2682
    %v2684 = vpop.xlane.xlu0 %2683
    %v2685 = vsel %vm103, %v2667, 0.0
    %2686 = vadd.xlane.f32.xlu0 %v2685
    %v2687 = vpop.xlane.xlu0 %2686
    %v2688 = vsel %vm103, %v2668, 0.0
    %2689 = vadd.xlane.f32.xlu0 %v2688
    %v2690 = vpop.xlane.xlu0 %2689
    %v2691 = vsel %vm103, %v2669, 0.0
    %2692 = vadd.xlane.f32.xlu0 %v2691
    %v2693 = vpop.xlane.xlu0 %2692
    %v2694 = vmul.f32 %v2672, %v128
    %v2695 = vmul.f32 %v2675, %v128
    %v2696 = vmul.f32 %v2678, %v128
    %v2697 = vmul.f32 %v2681, %v128
    %v2698 = vmul.f32 %v2684, %v128
    %v2699 = vmul.f32 %v2687, %v128
    %v2700 = vmul.f32 %v2690, %v128
    %v2701 = vmul.f32 %v2693, %v128
    %v2702 = vsub.f32 %v2662, %v2694
    %v2703 = vsub.f32 %v2663, %v2695
    %v2704 = vsub.f32 %v2664, %v2696
    %v2705 = vsub.f32 %v2665, %v2697
    %v2706 = vsub.f32 %v2666, %v2698
    %v2707 = vsub.f32 %v2667, %v2699
    %v2708 = vsub.f32 %v2668, %v2700
    %v2709 = vsub.f32 %v2669, %v2701
    %v2710 = vmul.f32 %v2702, %v2702
    %v2711 = vmul.f32 %v2703, %v2703
    %v2712 = vmul.f32 %v2704, %v2704
    %v2713 = vmul.f32 %v2705, %v2705
    %v2714 = vmul.f32 %v2706, %v2706
    %v2715 = vmul.f32 %v2707, %v2707
    %v2716 = vmul.f32 %v2708, %v2708
    %v2717 = vmul.f32 %v2709, %v2709
    %v2718 = vsel %vm103, %v2710, 0.0
    %2719 = vadd.xlane.f32.xlu0 %v2718
    %v2720 = vpop.xlane.xlu0 %2719
    %v2721 = vsel %vm103, %v2711, 0.0
    %2722 = vadd.xlane.f32.xlu0 %v2721
    %v2723 = vpop.xlane.xlu0 %2722
    %v2724 = vsel %vm103, %v2712, 0.0
    %2725 = vadd.xlane.f32.xlu0 %v2724
    %v2726 = vpop.xlane.xlu0 %2725
    %v2727 = vsel %vm103, %v2713, 0.0
    %2728 = vadd.xlane.f32.xlu0 %v2727
    %v2729 = vpop.xlane.xlu0 %2728
    %v2730 = vsel %vm103, %v2714, 0.0
    %2731 = vadd.xlane.f32.xlu0 %v2730
    %v2732 = vpop.xlane.xlu0 %2731
    %v2733 = vsel %vm103, %v2715, 0.0
    %2734 = vadd.xlane.f32.xlu0 %v2733
    %v2735 = vpop.xlane.xlu0 %2734
    %v2736 = vsel %vm103, %v2716, 0.0
    %2737 = vadd.xlane.f32.xlu0 %v2736
    %v2738 = vpop.xlane.xlu0 %2737
    %v2739 = vsel %vm103, %v2717, 0.0
    %2740 = vadd.xlane.f32.xlu0 %v2739
    %v2741 = vpop.xlane.xlu0 %2740
    %v2742 = vmul.f32 %v2720, %v128
    %v2743 = vmul.f32 %v2723, %v128
    %v2744 = vmul.f32 %v2726, %v128
    %v2745 = vmul.f32 %v2729, %v128
    %v2746 = vmul.f32 %v2732, %v128
    %v2747 = vmul.f32 %v2735, %v128
    %v2748 = vmul.f32 %v2738, %v128
    %v2749 = vmul.f32 %v2741, %v128
    %v2750 = vadd.f32 %v2742, 1e-05
    %v2751 = vadd.f32 %v2743, 1e-05
    %v2752 = vadd.f32 %v2744, 1e-05
    %v2753 = vadd.f32 %v2745, 1e-05
    %v2754 = vadd.f32 %v2746, 1e-05
    %v2755 = vadd.f32 %v2747, 1e-05
    %v2756 = vadd.f32 %v2748, 1e-05
    %v2757 = vadd.f32 %v2749, 1e-05
    %v2758 = vrsqrt.pop %v2750
    %v2759 = vrsqrt.pop %v2751
    %v2760 = vrsqrt.pop %v2752
    %v2761 = vrsqrt.pop %v2753
    %v2762 = vrsqrt.pop %v2754
    %v2763 = vrsqrt.pop %v2755
    %v2764 = vrsqrt.pop %v2756
    %v2765 = vrsqrt.pop %v2757
    %v2766 = vmul.f32 %v2702, %v2758
    %v2767 = vmul.f32 %v2703, %v2759
    %v2768 = vmul.f32 %v2704, %v2760
    %v2769 = vmul.f32 %v2705, %v2761
    %v2770 = vmul.f32 %v2706, %v2762
    %v2771 = vmul.f32 %v2707, %v2763
    %v2772 = vmul.f32 %v2708, %v2764
    %v2773 = vmul.f32 %v2709, %v2765
    %s2774 = scalar_lea.vmem %s7, 1
    %v2775 = vld [vmem:[%s2774] sm:$0x1]
    %v2777 = vlaneseq
    %v2778 = vshrl.u32 %v2777, 7
    %v2779 = vsub.s32 0, %v2778
    %v2780 = vrot.slane %v2775, %v2779
    %v2782 = vmul.f32 %v2766, %v2780
    %v2783 = vmul.f32 %v2767, %v2780
    %v2784 = vmul.f32 %v2768, %v2780
    %v2785 = vmul.f32 %v2769, %v2780
    %v2786 = vmul.f32 %v2770, %v2780
    %v2787 = vmul.f32 %v2771, %v2780
    %v2788 = vmul.f32 %v2772, %v2780
    %v2789 = vmul.f32 %v2773, %v2780
    %s2790 = scalar_lea.vmem %s8, 1
    %v2791 = vld [vmem:[%s2790] sm:$0x1]
    %v2793 = vlaneseq
    %v2794 = vshrl.u32 %v2793, 7
    %v2795 = vsub.s32 0, %v2794
    %v2796 = vrot.slane %v2791, %v2795
    %v2798 = vadd.f32 %v2782, %v2796
    %v2799 = vadd.f32 %v2783, %v2796
    %v2800 = vadd.f32 %v2784, %v2796
    %v2801 = vadd.f32 %v2785, %v2796
    %v2802 = vadd.f32 %v2786, %v2796
    %v2803 = vadd.f32 %v2787, %v2796
    %v2804 = vadd.f32 %v2788, %v2796
    %v2805 = vadd.f32 %v2789, %v2796
    %v2806 = vpack.c.bf16 %v2799, %v2798
    %v2807 = vpack.c.bf16 %v2801, %v2800
    %v2808 = vpack.c.bf16 %v2803, %v2802
    %v2809 = vpack.c.bf16 %v2805, %v2804
    %s2810 = scalar_lea.vmem [#allocation8], 16
    %v2811 = vld [vmem:[%s2810] sm:$0xf]
    %v2812 = vld [vmem:[%s2810 + $0x4] sm:$0xf]
    %v2813 = vld [vmem:[%s2810 + $0x8] sm:$0xf]
    %v2814 = vld [vmem:[%s2810 + $0xc] sm:$0xf]
    %s2815 = scalar_lea.vmem %s10, 1
    %v2816 = vld [vmem:[%s2815] sm:$0x1]
    %v2818 = vlaneseq
    %v2819 = vshrl.u32 %v2818, 7
    %v2820 = vsub.s32 0, %v2819
    %v2821 = vrot.slane %v2816, %v2820
    %v2827 = vunpack.c.l.b16 %v2811
    %v2828 = vunpack.c.l.b16 %v2812
    %v2829 = vunpack.c.l.b16 %v2813
    %v2830 = vunpack.c.l.b16 %v2814
    %v2831 = vpack.c.b16 %v2828, %v2827
    %v2832 = vpack.c.b16 %v2830, %v2829
    %v2836 = vsel %vm103, %v2806, 0
    %v2839 = vsel %vm103, %v2807, 0
    %v2842 = vsel %vm103, %v2808, 0
    %v2845 = vsel %vm103, %v2809, 0
    %2847 = vmatprep.subr.bf16.mxu0 0
    %2848 = vmatpush1.bf16.msra.mxu0 0
    %2849 = vmatprep.subr.bf16.mxu0 0
    %2850 = vmatpush1.bf16.msra.mxu0 0
    %2851 = vmatprep.subr.bf16.mxu0 0
    %2852 = vmatpush1.bf16.msra.mxu0 0
    %2853 = vmatprep.subr.bf16.mxu0 0
    %2854 = vmatpush1.bf16.msra.mxu0 0
    %2855 = vmatprep.subr.bf16.mxu0 0
    %2856 = vmatpush1.bf16.msra.mxu0 0
    %2857 = vmatprep.subr.bf16.mxu0 0
    %2858 = vmatpush1.bf16.msra.mxu0 0
    %2859 = vmatprep.subr.bf16.mxu0 0
    %2860 = vmatpush1.bf16.msra.mxu0 %v2832
    %2861 = vmatprep.subr.bf16.mxu0 0
    %2862 = vmatpush1.bf16.msra.mxu0 %v2831
    %2863 = vmatprep.subr.bf16.mxu0 0
    %2864 = vmatpush2.bf16.msra.mxu0 0
    %2865 = vmatprep.subr.bf16.mxu0 0
    %2866 = vmatpush2.bf16.msra.mxu0 0
    %2867 = vmatprep.subr.bf16.mxu0 0
    %2868 = vmatpush2.bf16.msra.mxu0 0
    %2869 = vmatprep.subr.bf16.mxu0 0
    %2870 = vmatpush2.bf16.msra.mxu0 0
    %2871 = vmatprep.subr.bf16.mxu0 0
    %2872 = vmatpush2.bf16.msra.mxu0 0
    %2873 = vmatprep.subr.bf16.mxu0 0
    %2874 = vmatpush2.bf16.msra.mxu0 0
    %2875 = vmatprep.subr.bf16.mxu0 0
    %2876 = vmatpush2.bf16.msra.mxu0 0
    %2877 = vmatprep.subr.bf16.mxu0 0
    %2878 = vmatpush2.bf16.msra.mxu0 0
    %2879 = vmatprep.mubr.bf16.mxu0 0
    %2880 = vmatmul.mubr.bf16.gmra.mxu0 %v2836
    %v2881 = vpop.f32.mrf.mxu0
    %v2882 = vadd.f32 %v2821, %v2881
    %v2883 = vpop.f32.mrf.mxu0
    %v2884 = vpop.f32.mrf.mxu0
    %v2885 = vadd.f32 %v2821, %v2884
    %v2886 = vpop.f32.mrf.mxu0
    %2887 = vmatprep.mubr.bf16.mxu0 0
    %2888 = vmatmul.mubr.bf16.gmra.mxu0 %v2839
    %v2889 = vpop.f32.mrf.mxu0
    %v2890 = vadd.f32 %v2821, %v2889
    %v2891 = vpop.f32.mrf.mxu0
    %v2892 = vpop.f32.mrf.mxu0
    %v2893 = vadd.f32 %v2821, %v2892
    %v2894 = vpop.f32.mrf.mxu0
    %2895 = vmatprep.mubr.bf16.mxu0 0
    %2896 = vmatmul.mubr.bf16.gmra.mxu0 %v2842
    %v2897 = vpop.f32.mrf.mxu0
    %v2898 = vadd.f32 %v2821, %v2897
    %v2899 = vpop.f32.mrf.mxu0
    %v2900 = vpop.f32.mrf.mxu0
    %v2901 = vadd.f32 %v2821, %v2900
    %v2902 = vpop.f32.mrf.mxu0
    %2903 = vmatprep.mubr.bf16.mxu0 0
    %2904 = vmatmul.mubr.bf16.gmra.mxu0 %v2845
    %v2905 = vpop.f32.mrf.mxu0
    %v2906 = vadd.f32 %v2821, %v2905
    %v2907 = vpop.f32.mrf.mxu0
    %v2908 = vpop.f32.mrf.mxu0
    %v2909 = vadd.f32 %v2821, %v2908
    %v2910 = vpop.f32.mrf.mxu0
    %2911 = vdwg.mxu0
    %v2912 = vxor.u32 %v2882, 2147483648
    %v2913 = vxor.u32 %v2885, 2147483648
    %v2914 = vxor.u32 %v2890, 2147483648
    %v2915 = vxor.u32 %v2893, 2147483648
    %v2916 = vxor.u32 %v2898, 2147483648
    %v2917 = vxor.u32 %v2901, 2147483648
    %v2918 = vxor.u32 %v2906, 2147483648
    %v2919 = vxor.u32 %v2909, 2147483648
    %v2920 = vmul.f32 %v2912, 1.442695
    %v2921 = vpow.pop %v2920
    %v2922 = vmul.f32 %v2913, 1.442695
    %v2923 = vpow.pop %v2922
    %v2924 = vmul.f32 %v2914, 1.442695
    %v2925 = vpow.pop %v2924
    %v2926 = vmul.f32 %v2915, 1.442695
    %v2927 = vpow.pop %v2926
    %v2928 = vmul.f32 %v2916, 1.442695
    %v2929 = vpow.pop %v2928
    %v2930 = vmul.f32 %v2917, 1.442695
    %v2931 = vpow.pop %v2930
    %v2932 = vmul.f32 %v2918, 1.442695
    %v2933 = vpow.pop %v2932
    %v2934 = vmul.f32 %v2919, 1.442695
    %v2935 = vpow.pop %v2934
    %v2936 = vadd.f32 %v2921, 1.0
    %v2937 = vadd.f32 %v2923, 1.0
    %v2938 = vadd.f32 %v2925, 1.0
    %v2939 = vadd.f32 %v2927, 1.0
    %v2940 = vadd.f32 %v2929, 1.0
    %v2941 = vadd.f32 %v2931, 1.0
    %v2942 = vadd.f32 %v2933, 1.0
    %v2943 = vadd.f32 %v2935, 1.0
    %v2944 = vrcp.pop %v2936
    %v2945 = vmul.f32 1.0, %v2944
    %v2946 = vrcp.pop %v2937
    %v2947 = vmul.f32 1.0, %v2946
    %v2948 = vrcp.pop %v2938
    %v2949 = vmul.f32 1.0, %v2948
    %v2950 = vrcp.pop %v2939
    %v2951 = vmul.f32 1.0, %v2950
    %v2952 = vrcp.pop %v2940
    %v2953 = vmul.f32 1.0, %v2952
    %v2954 = vrcp.pop %v2941
    %v2955 = vmul.f32 1.0, %v2954
    %v2956 = vrcp.pop %v2942
    %v2957 = vmul.f32 1.0, %v2956
    %v2958 = vrcp.pop %v2943
    %v2959 = vmul.f32 1.0, %v2958
    %v2960 = vmul.f32 %v2882, %v2945
    %v2961 = vmul.f32 %v2885, %v2947
    %v2962 = vmul.f32 %v2890, %v2949
    %v2963 = vmul.f32 %v2893, %v2951
    %v2964 = vmul.f32 %v2898, %v2953
    %v2965 = vmul.f32 %v2901, %v2955
    %v2966 = vmul.f32 %v2906, %v2957
    %v2967 = vmul.f32 %v2909, %v2959
    %v2968 = vpack.c.bf16 %v2961, %v2960
    %v2969 = vpack.c.bf16 %v2963, %v2962
    %v2970 = vpack.c.bf16 %v2965, %v2964
    %v2971 = vpack.c.bf16 %v2967, %v2966
    %s2972 = scalar_lea.vmem %s11, 32
    %v2973 = vld [vmem:[%s2972] sm:$0xf]
    %v2974 = vld [vmem:[%s2972 + $0x4] sm:$0xf]
    %v2975 = vld [vmem:[%s2972 + $0x8] sm:$0xf]
    %v2976 = vld [vmem:[%s2972 + $0xc] sm:$0xf]
    %v2977 = vld [vmem:[%s2972 + $0x10] sm:$0xf]
    %v2978 = vld [vmem:[%s2972 + $0x14] sm:$0xf]
    %v2979 = vld [vmem:[%s2972 + $0x18] sm:$0xf]
    %v2980 = vld [vmem:[%s2972 + $0x1c] sm:$0xf]
    %s2981 = scalar_lea.vmem %s12, 1
    %v2982 = vld [vmem:[%s2981] sm:$0x1]
    %v2984 = vlaneseq
    %v2985 = vshrl.u32 %v2984, 7
    %v2986 = vsub.s32 0, %v2985
    %v2987 = vrot.slane %v2982, %v2986
    %v2997 = vunpack.c.l.b16 %v2973
    %v2998 = vunpack.c.l.b16 %v2974
    %v2999 = vunpack.c.l.b16 %v2975
    %v3000 = vunpack.c.l.b16 %v2976
    %v3001 = vunpack.c.l.b16 %v2977
    %v3002 = vunpack.c.l.b16 %v2978
    %v3003 = vunpack.c.l.b16 %v2979
    %v3004 = vunpack.c.l.b16 %v2980
    %v3005 = vpack.c.b16 %v2998, %v2997
    %v3006 = vpack.c.b16 %v3000, %v2999
    %v3007 = vpack.c.b16 %v3002, %v3001
    %v3008 = vpack.c.b16 %v3004, %v3003
    %v3014 = vsel %vm458, %v2968, 0
    %v3017 = vsel %vm458, %v2969, 0
    %v3020 = vsel %vm458, %v2970, 0
    %v3023 = vsel %vm458, %v2971, 0
    %3025 = vmatprep.subr.bf16.mxu0 0
    %3026 = vmatpush1.bf16.msra.mxu0 0
    %3027 = vmatprep.subr.bf16.mxu0 0
    %3028 = vmatpush1.bf16.msra.mxu0 0
    %3029 = vmatprep.subr.bf16.mxu0 0
    %3030 = vmatpush1.bf16.msra.mxu0 0
    %3031 = vmatprep.subr.bf16.mxu0 0
    %3032 = vmatpush1.bf16.msra.mxu0 0
    %3033 = vmatprep.subr.bf16.mxu0 0
    %3034 = vmatpush1.bf16.msra.mxu0 %v3008
    %3035 = vmatprep.subr.bf16.mxu0 0
    %3036 = vmatpush1.bf16.msra.mxu0 %v3007
    %3037 = vmatprep.subr.bf16.mxu0 0
    %3038 = vmatpush1.bf16.msra.mxu0 %v3006
    %3039 = vmatprep.subr.bf16.mxu0 0
    %3040 = vmatpush1.bf16.msra.mxu0 %v3005
    %3041 = vmatprep.subr.bf16.mxu0 0
    %3042 = vmatpush2.bf16.msra.mxu0 0
    %3043 = vmatprep.subr.bf16.mxu0 0
    %3044 = vmatpush2.bf16.msra.mxu0 0
    %3045 = vmatprep.subr.bf16.mxu0 0
    %3046 = vmatpush2.bf16.msra.mxu0 0
    %3047 = vmatprep.subr.bf16.mxu0 0
    %3048 = vmatpush2.bf16.msra.mxu0 0
    %3049 = vmatprep.subr.bf16.mxu0 0
    %3050 = vmatpush2.bf16.msra.mxu0 0
    %3051 = vmatprep.subr.bf16.mxu0 0
    %3052 = vmatpush2.bf16.msra.mxu0 0
    %3053 = vmatprep.subr.bf16.mxu0 0
    %3054 = vmatpush2.bf16.msra.mxu0 0
    %3055 = vmatprep.subr.bf16.mxu0 0
    %3056 = vmatpush2.bf16.msra.mxu0 0
    %3057 = vmatprep.mubr.bf16.mxu0 0
    %3058 = vmatmul.mubr.bf16.gmra.mxu0 %v3014
    %v3059 = vpop.f32.mrf.mxu0
    %v3060 = vadd.f32 %v2987, %v3059
    %v3061 = vpop.f32.mrf.mxu0
    %v3062 = vpop.f32.mrf.mxu0
    %v3063 = vadd.f32 %v2987, %v3062
    %v3064 = vpop.f32.mrf.mxu0
    %3065 = vmatprep.mubr.bf16.mxu0 0
    %3066 = vmatmul.mubr.bf16.gmra.mxu0 %v3017
    %v3067 = vpop.f32.mrf.mxu0
    %v3068 = vadd.f32 %v2987, %v3067
    %v3069 = vpop.f32.mrf.mxu0
    %v3070 = vpop.f32.mrf.mxu0
    %v3071 = vadd.f32 %v2987, %v3070
    %v3072 = vpop.f32.mrf.mxu0
    %3073 = vmatprep.mubr.bf16.mxu0 0
    %3074 = vmatmul.mubr.bf16.gmra.mxu0 %v3020
    %v3075 = vpop.f32.mrf.mxu0
    %v3076 = vadd.f32 %v2987, %v3075
    %v3077 = vpop.f32.mrf.mxu0
    %v3078 = vpop.f32.mrf.mxu0
    %v3079 = vadd.f32 %v2987, %v3078
    %v3080 = vpop.f32.mrf.mxu0
    %3081 = vmatprep.mubr.bf16.mxu0 0
    %3082 = vmatmul.mubr.bf16.gmra.mxu0 %v3023
    %v3083 = vpop.f32.mrf.mxu0
    %v3084 = vadd.f32 %v2987, %v3083
    %v3085 = vpop.f32.mrf.mxu0
    %v3086 = vpop.f32.mrf.mxu0
    %v3087 = vadd.f32 %v2987, %v3086
    %v3088 = vpop.f32.mrf.mxu0
    %3089 = vdwg.mxu0
    %v3090 = vadd.f32 %v2662, %v3060
    %v3091 = vadd.f32 %v2663, %v3063
    %v3092 = vadd.f32 %v2664, %v3068
    %v3093 = vadd.f32 %v2665, %v3071
    %v3094 = vadd.f32 %v2666, %v3076
    %v3095 = vadd.f32 %v2667, %v3079
    %v3096 = vadd.f32 %v2668, %v3084
    %v3097 = vadd.f32 %v2669, %v3087
    %3098 = vst.msk [vmem:[#allocation9] sm:$0xff] %vm103, %v3090
    %3099 = vst.msk [vmem:[#allocation9 + $0x8] sm:$0xff] %vm103, %v3091
    %3100 = vst.msk [vmem:[#allocation9 + $0x10] sm:$0xff] %vm103, %v3092
    %3101 = vst.msk [vmem:[#allocation9 + $0x18] sm:$0xff] %vm103, %v3093
    %3102 = vst.msk [vmem:[#allocation9 + $0x20] sm:$0xff] %vm103, %v3094
    %3103 = vst.msk [vmem:[#allocation9 + $0x28] sm:$0xff] %vm103, %v3095
    %3104 = vst.msk [vmem:[#allocation9 + $0x30] sm:$0xff] %vm103, %v3096
    %3105 = vst.msk [vmem:[#allocation9 + $0x38] sm:$0xff] %vm103, %v3097
    // Predicated region
    $region66: #{tpu_custom_call.1} parent=1 // pred_check
      _
    $region67: #{tpu_custom_call.1} parent=1 // pred_check_branch
      %3107 = sbr.rel (0) target = $region69
    $region68: #{tpu_custom_call.1} parent=1 // pred_region
      %s3109 = ssub.s32 1024, 1024
      %3110 = vsyncadd [#allocation5], %s3109
      %s3111 = sshll.u32 [#allocation9], 4
      %s3112 = int_to_ptr.vmem [resolvable:$true] %s3111
      %3117 = dma.vmem_to_hbm [thread:$0]  %s3112, 1024, %s13, [#allocation5], 128, 128, 8
    $region69: #{tpu_custom_call.1} parent=1 // pred_fallthru
      _
    // Predicated region
    $region70: #{tpu_custom_call.1} parent=1 // pred_check
      _
    $region71: #{tpu_custom_call.1} parent=1 // pred_check_branch
      %3119 = sbr.rel (0) target = $region73
    $region72: #{tpu_custom_call.1} parent=1 // pred_region
      %3120 = dma.done [#allocation5], 1024
    $region73: #{tpu_custom_call.1} parent=1 // pred_fallthru
      _
    %3121 = vsyncpa [#allocation4], 1
    %3122 = vsyncpa [#allocation7], 1
    %3123 = vsyncpa [#allocation5], 1

</llo_original>
